<compile_context>
chip_gen: v7x
topology: tpu7x:2x2x1
jax: 0.10.0
libtpu: 0.0.40
codegen_flags: <defaults>
</compile_context>

<pallas_src>
import jax
import jax.numpy as jnp
from jax import lax
from jax.experimental import pallas as pl
from jax.experimental.pallas import tpu as pltpu


def _coattention_kernel(s_ref, c_ref, wl_ref, wc_ref, ws_ref, whs_ref, whc_ref,
                        co_ref, as_ref, ac_ref):
    TB, N, D = s_ref.shape
    _, M, _ = c_ref.shape
    K = wc_ref.shape[0]
    f32 = jnp.float32
    bf16 = jnp.bfloat16

    s = s_ref[...]                          # (TB, N, D)  bf16
    c = c_ref[...]                          # (TB, M, D)  bf16
    s2 = s.reshape(TB * N, D)               # free reshape (sublane regroup only)
    c2 = c.reshape(TB * M, D)

    wl = wl_ref[...]                        # (D, D) bf16
    wc = wc_ref[...]                        # (K, D) bf16
    ws = ws_ref[...]                        # (K, D) bf16
    whs = whs_ref[...].reshape(1, 1, K)     # (1,1,K) f32
    whc = whc_ref[...].reshape(1, 1, K)     # (1,1,K) f32

    dn_t = (((1,), (1,)), ((), ()))         # contract last dims:  A @ B^T

    # ---- weight-shared matmuls, flattened over the batch tile (big MXU passes) ----
    cwl = jnp.dot(c2, wl, preferred_element_type=f32)                  # (TB*M, D)
    sws = lax.dot_general(s2, ws, dn_t, preferred_element_type=f32)    # (TB*N, K) = S Ws^T
    cwc = lax.dot_general(c2, wc, dn_t, preferred_element_type=f32)    # (TB*M, K) = C Wc^T

    cwl_b = cwl.reshape(TB, M, D).astype(bf16)                         # (TB, M, D)
    sws_b = sws.reshape(TB, N, K)                                      # (TB, N, K) f32
    cwc_b = cwc.reshape(TB, M, K)                                      # (TB, M, K) f32

    # ---- inherently batched pieces (small per-batch matmuls, A@B^T / A@B forms) ----
    bt = (((2,), (2,)), ((0,), (0,)))       # batched A @ B^T
    bm = (((2,), (1,)), ((0,), (0,)))       # batched A @ B
    # L[b] = tanh((C[b] Wl) S[b]^T)  and its transpose
    L = jnp.tanh(lax.dot_general(cwl_b, s, bt, preferred_element_type=f32))      # (TB, M, N)
    L_t = jnp.tanh(lax.dot_general(s, cwl_b, bt, preferred_element_type=f32))    # (TB, N, M)
    L = L.astype(bf16)
    L_t = L_t.astype(bf16)

    # Hs^T[b] = tanh( (S Ws^T)[b] + L[b]^T (C Wc^T)[b] )   -> (TB, N, K)
    hs_t = jnp.tanh(sws_b + lax.dot_general(L_t, cwc_b.astype(bf16), bm,
                                            preferred_element_type=f32))
    # Hc^T[b] = tanh( (C Wc^T)[b] + L[b] (S Ws^T)[b] )     -> (TB, M, K)
    hc_t = jnp.tanh(cwc_b + lax.dot_general(L, sws_b.astype(bf16), bm,
                                            preferred_element_type=f32))

    # ---- attention logits: VPU multiply + lane reduce (frees the MXU) ----
    as_logits = jnp.sum(hs_t * whs, axis=-1, keepdims=True)            # (TB, N, 1)
    ac_logits = jnp.sum(hc_t * whc, axis=-1, keepdims=True)            # (TB, M, 1)

    def _softmax_seq(x):                    # softmax over the sequence axis (axis=1)
        m = jnp.max(x, axis=1, keepdims=True)
        e = jnp.exp(x - m)
        return e / jnp.sum(e, axis=1, keepdims=True)

    a_s = _softmax_seq(as_logits)           # (TB, N, 1) f32
    a_c = _softmax_seq(ac_logits)           # (TB, M, 1) f32

    # co_s[b] = S[b]^T As[b]  ;  co_c[b] = C[b]^T Ac[b]   (weighted sums, VPU + XLU)
    co_s = jnp.sum(a_s * s.astype(f32), axis=1)                        # (TB, D)
    co_c = jnp.sum(a_c * c.astype(f32), axis=1)                        # (TB, D)

    # write the two halves directly (no concat temporary); D is lane-aligned
    co_ref[:, :D] = co_s
    co_ref[:, D:] = co_c
    as_ref[...] = a_s
    ac_ref[...] = a_c


def coattention_forward(sentence_rep, comment_rep, params, *, tb=16):
    """Pallas implementation of CoAttention.forward."""
    wl, wc, ws, whs, whc = (params["Wl"], params["Wc"], params["Ws"],
                            params["whs"], params["whc"])
    B, N, D = sentence_rep.shape
    _, M, _ = comment_rep.shape
    K = wc.shape[0]

    # Batch tile: ~16 -> TB*M≈256 / TB*N≈128-row MXU passes (v6e/v7x), TB*M≈128+
    # on v5e.  Keep at least 2 grid steps so the "parallel" axis feeds both v7x TCs.
    tb = max(1, min(tb, B))
    if B >= 2 and -(-B // tb) < 2:
        tb = max(1, (B + 1) // 2)
    steps = -(-B // tb)
    b_pad = steps * tb

    if b_pad != B:
        pad = ((0, b_pad - B), (0, 0), (0, 0))
        sentence_rep = jnp.pad(sentence_rep, pad)
        comment_rep = jnp.pad(comment_rep, pad)

    # bf16 MXU operands (half the DMA bytes, ~3x MXU rate); accumulation stays f32.
    # whs/whc stay f32 (used only on the VPU reduce path; v5e has no bf16 VPU).
    s_bf = sentence_rep.astype(jnp.bfloat16)
    c_bf = comment_rep.astype(jnp.bfloat16)
    wl_bf = wl.astype(jnp.bfloat16)
    wc_bf = wc.astype(jnp.bfloat16)
    ws_bf = ws.astype(jnp.bfloat16)
    whs_f = whs.astype(jnp.float32)
    whc_f = whc.astype(jnp.float32)

    out_shapes = (
        jax.ShapeDtypeStruct((b_pad, 2 * D), jnp.float32),   # co_sc
        jax.ShapeDtypeStruct((b_pad, N, 1), jnp.float32),    # As (final layout)
        jax.ShapeDtypeStruct((b_pad, M, 1), jnp.float32),    # Ac (final layout)
    )

    grid_spec = pltpu.PrefetchScalarGridSpec(
        num_scalar_prefetch=0,
        grid=(steps,),
        in_specs=[
            pl.BlockSpec((tb, N, D), lambda i: (i, 0, 0)),   # sentence_rep
            pl.BlockSpec((tb, M, D), lambda i: (i, 0, 0)),   # comment_rep
            pl.BlockSpec((D, D), lambda i: (0, 0)),          # Wl (resident, no re-DMA)
            pl.BlockSpec((K, D), lambda i: (0, 0)),          # Wc
            pl.BlockSpec((K, D), lambda i: (0, 0)),          # Ws
            pl.BlockSpec((1, K), lambda i: (0, 0)),          # whs
            pl.BlockSpec((1, K), lambda i: (0, 0)),          # whc
        ],
        out_specs=[
            pl.BlockSpec((tb, 2 * D), lambda i: (i, 0)),     # lane-dense 2D slab
            pl.BlockSpec((tb, N, 1), lambda i: (i, 0, 0)),
            pl.BlockSpec((tb, M, 1), lambda i: (i, 0, 0)),
        ],
    )

    co_raw, as_raw, ac_raw = pl.pallas_call(
        _coattention_kernel,
        out_shape=out_shapes,
        grid_spec=grid_spec,
        compiler_params=pltpu.CompilerParams(dimension_semantics=("parallel",)),
    )(s_bf, c_bf, wl_bf, wc_bf, ws_bf, whs_f, whc_f)

    co_sc = co_raw[:B]          # (B, 2D)
    As = as_raw[:B]             # (B, N, 1)
    Ac = ac_raw[:B]             # (B, M, 1)
    return co_sc, As, Ac


def coattention_ref(sentence_rep, comment_rep, params):
    """Pure-JAX f32 reference mirroring the PyTorch forward, for validation."""
    Wl, Wc, Ws, whs, whc = (params["Wl"], params["Wc"], params["Ws"],
                            params["whs"], params["whc"])
    s_t = jnp.swapaxes(sentence_rep, 1, 2)                       # (B, D, N)
    c_t = jnp.swapaxes(comment_rep, 1, 2)                        # (B, D, M)
    L = jnp.tanh(jnp.matmul(jnp.matmul(comment_rep, Wl), s_t))   # (B, M, N)
    L_t = jnp.swapaxes(L, 1, 2)
    Hs = jnp.tanh(jnp.matmul(Ws, s_t) + jnp.matmul(jnp.matmul(Wc, c_t), L))
    Hc = jnp.tanh(jnp.matmul(Wc, c_t) + jnp.matmul(jnp.matmul(Ws, s_t), L_t))
    As = jax.nn.softmax(jnp.matmul(whs, Hs), axis=2)
    Ac = jax.nn.softmax(jnp.matmul(whc, Hc), axis=2)
    As = jnp.swapaxes(As, 1, 2)
    Ac = jnp.swapaxes(Ac, 1, 2)
    co_s = jnp.matmul(s_t, As)
    co_c = jnp.matmul(c_t, Ac)
    co_sc = jnp.concatenate([co_s, co_c], axis=1)
    return jnp.squeeze(co_sc, -1), As, Ac


if __name__ == "__main__":
    B, N, M = 32, 8, 16           # batch, sentence len, comment len (TB=16 -> 2 grid steps)
    D, K = 128, 80                # latent_dim, k (module defaults)

    key = jax.random.PRNGKey(0)
    ks = jax.random.split(key, 7)
    sentence = jax.random.normal(ks[0], (B, N, D), jnp.float32)
    comment = jax.random.normal(ks[1], (B, M, D), jnp.float32)
    # Deterministic synthetic params (randn-like init, scaled so tanh/softmax are
    # not fully saturated and the numerical check is meaningful).
    params = {
        "Wl":  jax.random.normal(ks[2], (D, D), jnp.float32) * 0.05,
        "Wc":  jax.random.normal(ks[3], (K, D), jnp.float32) * 0.05,
        "Ws":  jax.random.normal(ks[4], (K, D), jnp.float32) * 0.05,
        "whs": jax.random.normal(ks[5], (1, K), jnp.float32) * 0.05,
        "whc": jax.random.normal(ks[6], (1, K), jnp.float32) * 0.05,
    }

    out = jax.jit(coattention_forward)(sentence, comment, params)
    out = jax.block_until_ready(out)

    ref = coattention_ref(sentence, comment, params)
    names = ("co_sc", "As", "Ac")
    # bf16 matmul operands (f32 accumulation) -> loosened tolerance vs. the f32 reference.
    for name, a, b in zip(names, out, ref):
        assert a.shape == b.shape, (name, a.shape, b.shape)
        assert jnp.allclose(a, b, atol=5e-2, rtol=5e-2), name

    print("KERNEL_OK")
</pallas_src>

<mosaic_0001>
module attributes {stable_mosaic.version = 11 : i64} {
  func.func @_coattention_kernel(%arg0: i32, %arg1: memref<16x8x128xbf16, #tpu.memory_space<vmem>>, %arg2: memref<16x16x128xbf16, #tpu.memory_space<vmem>>, %arg3: memref<128x128xbf16, #tpu.memory_space<vmem>>, %arg4: memref<80x128xbf16, #tpu.memory_space<vmem>>, %arg5: memref<80x128xbf16, #tpu.memory_space<vmem>>, %arg6: memref<1x80xf32, #tpu.memory_space<vmem>>, %arg7: memref<1x80xf32, #tpu.memory_space<vmem>>, %arg8: memref<16x256xf32, #tpu.memory_space<vmem>>, %arg9: memref<16x8x1xf32, #tpu.memory_space<vmem>>, %arg10: memref<16x16x1xf32, #tpu.memory_space<vmem>>) attributes {dimension_semantics = [#tpu.dimension_semantics<parallel>], iteration_bounds = array<i64: 2>, scalar_prefetch = 0 : i64, scratch_operands = 0 : i64, tpu.core_type = #tpu.core_type<tc>, window_params = [{transform_indices = @transform_0, window_bounds = array<i64: 16, 8, 128>}, {transform_indices = @transform_1, window_bounds = array<i64: 16, 16, 128>}, {pipeline_mode = #tpu.pipeline_mode<synchronous>, transform_indices = @transform_2, window_bounds = array<i64: 128, 128>}, {pipeline_mode = #tpu.pipeline_mode<synchronous>, transform_indices = @transform_3, window_bounds = array<i64: 80, 128>}, {pipeline_mode = #tpu.pipeline_mode<synchronous>, transform_indices = @transform_4, window_bounds = array<i64: 80, 128>}, {pipeline_mode = #tpu.pipeline_mode<synchronous>, transform_indices = @transform_5, window_bounds = array<i64: 1, 80>}, {pipeline_mode = #tpu.pipeline_mode<synchronous>, transform_indices = @transform_6, window_bounds = array<i64: 1, 80>}, {transform_indices = @transform_7, window_bounds = array<i64: 16, 256>}, {transform_indices = @transform_8, window_bounds = array<i64: 16, 8, 1>}, {transform_indices = @transform_9, window_bounds = array<i64: 16, 16, 1>}]} {
    %c0 = arith.constant 0 : index
    %c0_0 = arith.constant 0 : index
    %c0_1 = arith.constant 0 : index
    %0 = vector.load %arg1[%c0, %c0_0, %c0_1] : memref<16x8x128xbf16, #tpu.memory_space<vmem>>, vector<16x8x128xbf16>
    %c0_2 = arith.constant 0 : index
    %c0_3 = arith.constant 0 : index
    %c0_4 = arith.constant 0 : index
    %1 = vector.load %arg2[%c0_2, %c0_3, %c0_4] : memref<16x16x128xbf16, #tpu.memory_space<vmem>>, vector<16x16x128xbf16>
    %2 = vector.shape_cast %0 : vector<16x8x128xbf16> to vector<128x128xbf16>
    %3 = vector.shape_cast %1 : vector<16x16x128xbf16> to vector<256x128xbf16>
    %c0_5 = arith.constant 0 : index
    %c0_6 = arith.constant 0 : index
    %4 = vector.load %arg3[%c0_5, %c0_6] : memref<128x128xbf16, #tpu.memory_space<vmem>>, vector<128x128xbf16>
    %c0_7 = arith.constant 0 : index
    %c0_8 = arith.constant 0 : index
    %5 = vector.load %arg4[%c0_7, %c0_8] : memref<80x128xbf16, #tpu.memory_space<vmem>>, vector<80x128xbf16>
    %c0_9 = arith.constant 0 : index
    %c0_10 = arith.constant 0 : index
    %6 = vector.load %arg5[%c0_9, %c0_10] : memref<80x128xbf16, #tpu.memory_space<vmem>>, vector<80x128xbf16>
    %c0_11 = arith.constant 0 : index
    %c0_12 = arith.constant 0 : index
    %7 = vector.load %arg6[%c0_11, %c0_12] : memref<1x80xf32, #tpu.memory_space<vmem>>, vector<1x80xf32>
    %8 = vector.shape_cast %7 : vector<1x80xf32> to vector<1x1x80xf32>
    %c0_13 = arith.constant 0 : index
    %c0_14 = arith.constant 0 : index
    %9 = vector.load %arg7[%c0_13, %c0_14] : memref<1x80xf32, #tpu.memory_space<vmem>>, vector<1x80xf32>
    %10 = vector.shape_cast %9 : vector<1x80xf32> to vector<1x1x80xf32>
    %cst = arith.constant dense<0.000000e+00> : vector<256x128xf32>
    %11 = tpu.matmul %3, %4, %cst {dimension_numbers = #tpu.dot_dimension_numbers<[1], [0], [0], [1], [0, 0, 1, 1], [], []>} : vector<256x128xbf16>, vector<128x128xbf16>, vector<256x128xf32> -> vector<256x128xf32>
    %cst_15 = arith.constant dense<0.000000e+00> : vector<128x80xf32>
    %12 = tpu.matmul %2, %6, %cst_15 {dimension_numbers = #tpu.dot_dimension_numbers<[1], [1], [0], [0], [0, 0, 1, 0], [], []>} : vector<128x128xbf16>, vector<80x128xbf16>, vector<128x80xf32> -> vector<128x80xf32>
    %cst_16 = arith.constant dense<0.000000e+00> : vector<256x80xf32>
    %13 = tpu.matmul %3, %5, %cst_16 {dimension_numbers = #tpu.dot_dimension_numbers<[1], [1], [0], [0], [0, 0, 1, 0], [], []>} : vector<256x128xbf16>, vector<80x128xbf16>, vector<256x80xf32> -> vector<256x80xf32>
    %14 = vector.shape_cast %11 : vector<256x128xf32> to vector<16x16x128xf32>
    %15 = arith.truncf %14 : vector<16x16x128xf32> to vector<16x16x128xbf16>
    %16 = vector.shape_cast %12 : vector<128x80xf32> to vector<16x8x80xf32>
    %17 = vector.shape_cast %13 : vector<256x80xf32> to vector<16x16x80xf32>
    %cst_17 = arith.constant dense<0.000000e+00> : vector<16x16x8xf32>
    %18 = tpu.matmul %15, %0, %cst_17 {dimension_numbers = #tpu.dot_dimension_numbers<[2], [2], [1], [1], [0, 0, 0, 1, 1, 1], [0], [0]>} : vector<16x16x128xbf16>, vector<16x8x128xbf16>, vector<16x16x8xf32> -> vector<16x16x8xf32>
    %19 = math.tanh %18 : vector<16x16x8xf32>
    %cst_18 = arith.constant dense<0.000000e+00> : vector<16x8x16xf32>
    %20 = tpu.matmul %0, %15, %cst_18 {dimension_numbers = #tpu.dot_dimension_numbers<[2], [2], [1], [1], [0, 0, 0, 1, 1, 1], [0], [0]>} : vector<16x8x128xbf16>, vector<16x16x128xbf16>, vector<16x8x16xf32> -> vector<16x8x16xf32>
    %21 = math.tanh %20 : vector<16x8x16xf32>
    %22 = arith.truncf %19 : vector<16x16x8xf32> to vector<16x16x8xbf16>
    %23 = arith.truncf %21 : vector<16x8x16xf32> to vector<16x8x16xbf16>
    %24 = arith.truncf %17 : vector<16x16x80xf32> to vector<16x16x80xbf16>
    %cst_19 = arith.constant dense<0.000000e+00> : vector<16x8x80xf32>
    %25 = tpu.matmul %23, %24, %cst_19 {dimension_numbers = #tpu.dot_dimension_numbers<[2], [1], [1], [2], [0, 0, 0, 1, 1, 2], [0], [0]>} : vector<16x8x16xbf16>, vector<16x16x80xbf16>, vector<16x8x80xf32> -> vector<16x8x80xf32>
    %26 = arith.addf %16, %25 : vector<16x8x80xf32>
    %27 = math.tanh %26 : vector<16x8x80xf32>
    %28 = arith.truncf %16 : vector<16x8x80xf32> to vector<16x8x80xbf16>
    %cst_20 = arith.constant dense<0.000000e+00> : vector<16x16x80xf32>
    %29 = tpu.matmul %22, %28, %cst_20 {dimension_numbers = #tpu.dot_dimension_numbers<[2], [1], [1], [2], [0, 0, 0, 1, 1, 2], [0], [0]>} : vector<16x16x8xbf16>, vector<16x8x80xbf16>, vector<16x16x80xf32> -> vector<16x16x80xf32>
    %30 = arith.addf %17, %29 : vector<16x16x80xf32>
    %31 = math.tanh %30 : vector<16x16x80xf32>
    %32 = vector.broadcast %8 : vector<1x1x80xf32> to vector<16x8x80xf32>
    %33 = arith.mulf %27, %32 : vector<16x8x80xf32>
    %cst_21 = arith.constant dense<0.000000e+00> : vector<16x8xf32>
    %34 = vector.multi_reduction <add>, %33, %cst_21 [2] : vector<16x8x80xf32> to vector<16x8xf32>
    %35 = vector.shape_cast %34 : vector<16x8xf32> to vector<16x8x1xf32>
    %36 = vector.broadcast %10 : vector<1x1x80xf32> to vector<16x16x80xf32>
    %37 = arith.mulf %31, %36 : vector<16x16x80xf32>
    %cst_22 = arith.constant dense<0.000000e+00> : vector<16x16xf32>
    %38 = vector.multi_reduction <add>, %37, %cst_22 [2] : vector<16x16x80xf32> to vector<16x16xf32>
    %39 = vector.shape_cast %38 : vector<16x16xf32> to vector<16x16x1xf32>
    %cst_23 = arith.constant dense<0xFF800000> : vector<16x1xf32>
    %40 = vector.multi_reduction <maximumf>, %35, %cst_23 [1] : vector<16x8x1xf32> to vector<16x1xf32>
    %41 = vector.shape_cast %40 : vector<16x1xf32> to vector<16x1x1xf32>
    %42 = vector.broadcast %41 : vector<16x1x1xf32> to vector<16x8x1xf32>
    %43 = arith.subf %35, %42 : vector<16x8x1xf32>
    %44 = math.exp %43 : vector<16x8x1xf32>
    %cst_24 = arith.constant dense<0.000000e+00> : vector<16x1xf32>
    %45 = vector.multi_reduction <add>, %44, %cst_24 [1] : vector<16x8x1xf32> to vector<16x1xf32>
    %46 = vector.shape_cast %45 : vector<16x1xf32> to vector<16x1x1xf32>
    %47 = vector.broadcast %46 : vector<16x1x1xf32> to vector<16x8x1xf32>
    %48 = arith.divf %44, %47 : vector<16x8x1xf32>
    %cst_25 = arith.constant dense<0xFF800000> : vector<16x1xf32>
    %49 = vector.multi_reduction <maximumf>, %39, %cst_25 [1] : vector<16x16x1xf32> to vector<16x1xf32>
    %50 = vector.shape_cast %49 : vector<16x1xf32> to vector<16x1x1xf32>
    %51 = vector.broadcast %50 : vector<16x1x1xf32> to vector<16x16x1xf32>
    %52 = arith.subf %39, %51 : vector<16x16x1xf32>
    %53 = math.exp %52 : vector<16x16x1xf32>
    %cst_26 = arith.constant dense<0.000000e+00> : vector<16x1xf32>
    %54 = vector.multi_reduction <add>, %53, %cst_26 [1] : vector<16x16x1xf32> to vector<16x1xf32>
    %55 = vector.shape_cast %54 : vector<16x1xf32> to vector<16x1x1xf32>
    %56 = vector.broadcast %55 : vector<16x1x1xf32> to vector<16x16x1xf32>
    %57 = arith.divf %53, %56 : vector<16x16x1xf32>
    %58 = arith.extf %0 : vector<16x8x128xbf16> to vector<16x8x128xf32>
    %59 = vector.broadcast %48 : vector<16x8x1xf32> to vector<16x8x128xf32>
    %60 = arith.mulf %59, %58 : vector<16x8x128xf32>
    %cst_27 = arith.constant dense<0.000000e+00> : vector<16x128xf32>
    %61 = vector.multi_reduction <add>, %60, %cst_27 [1] : vector<16x8x128xf32> to vector<16x128xf32>
    %62 = arith.extf %1 : vector<16x16x128xbf16> to vector<16x16x128xf32>
    %63 = vector.broadcast %57 : vector<16x16x1xf32> to vector<16x16x128xf32>
    %64 = arith.mulf %63, %62 : vector<16x16x128xf32>
    %cst_28 = arith.constant dense<0.000000e+00> : vector<16x128xf32>
    %65 = vector.multi_reduction <add>, %64, %cst_28 [1] : vector<16x16x128xf32> to vector<16x128xf32>
    %c0_29 = arith.constant 0 : index
    %c0_30 = arith.constant 0 : index
    %66 = vector.load %arg8[%c0_29, %c0_30] : memref<16x256xf32, #tpu.memory_space<vmem>>, vector<16x128xf32>
    tpu.vector_store %arg8[%c0_29, %c0_30], %61 {strides = array<i32>} : memref<16x256xf32, #tpu.memory_space<vmem>>, vector<16x128xf32>,
    %c0_31 = arith.constant 0 : index
    %c128 = arith.constant 128 : index
    %67 = vector.load %arg8[%c0_31, %c128] : memref<16x256xf32, #tpu.memory_space<vmem>>, vector<16x128xf32>
    tpu.vector_store %arg8[%c0_31, %c128], %65 {strides = array<i32>} : memref<16x256xf32, #tpu.memory_space<vmem>>, vector<16x128xf32>,
    %c0_32 = arith.constant 0 : index
    %c0_33 = arith.constant 0 : index
    %c0_34 = arith.constant 0 : index
    %68 = vector.load %arg9[%c0_32, %c0_33, %c0_34] : memref<16x8x1xf32, #tpu.memory_space<vmem>>, vector<16x8x1xf32>
    tpu.vector_store %arg9[%c0_32, %c0_33, %c0_34], %48 {strides = array<i32>} : memref<16x8x1xf32, #tpu.memory_space<vmem>>, vector<16x8x1xf32>,
    %c0_35 = arith.constant 0 : index
    %c0_36 = arith.constant 0 : index
    %c0_37 = arith.constant 0 : index
    %69 = vector.load %arg10[%c0_35, %c0_36, %c0_37] : memref<16x16x1xf32, #tpu.memory_space<vmem>>, vector<16x16x1xf32>
    tpu.vector_store %arg10[%c0_35, %c0_36, %c0_37], %57 {strides = array<i32>} : memref<16x16x1xf32, #tpu.memory_space<vmem>>, vector<16x16x1xf32>,
    return
  }
  func.func @transform_0(%arg0: i32) -> (i32, i32, i32) {
    %c0_i32 = arith.constant 0 : i32
    %c0_i32_0 = arith.constant 0 : i32
    %c0_i32_1 = arith.constant 0 : i32
    return %arg0, %c0_i32, %c0_i32_0 : i32, i32, i32
  }
  func.func @transform_1(%arg0: i32) -> (i32, i32, i32) {
    %c0_i32 = arith.constant 0 : i32
    %c0_i32_0 = arith.constant 0 : i32
    %c0_i32_1 = arith.constant 0 : i32
    return %arg0, %c0_i32, %c0_i32_0 : i32, i32, i32
  }
  func.func @transform_2(%arg0: i32) -> (i32, i32) {
    %c0_i32 = arith.constant 0 : i32
    %c0_i32_0 = arith.constant 0 : i32
    %c0_i32_1 = arith.constant 0 : i32
    return %c0_i32, %c0_i32_0 : i32, i32
  }
  func.func @transform_3(%arg0: i32) -> (i32, i32) {
    %c0_i32 = arith.constant 0 : i32
    %c0_i32_0 = arith.constant 0 : i32
    %c0_i32_1 = arith.constant 0 : i32
    return %c0_i32, %c0_i32_0 : i32, i32
  }
  func.func @transform_4(%arg0: i32) -> (i32, i32) {
    %c0_i32 = arith.constant 0 : i32
    %c0_i32_0 = arith.constant 0 : i32
    %c0_i32_1 = arith.constant 0 : i32
    return %c0_i32, %c0_i32_0 : i32, i32
  }
  func.func @transform_5(%arg0: i32) -> (i32, i32) {
    %c0_i32 = arith.constant 0 : i32
    %c0_i32_0 = arith.constant 0 : i32
    %c0_i32_1 = arith.constant 0 : i32
    return %c0_i32, %c0_i32_0 : i32, i32
  }
  func.func @transform_6(%arg0: i32) -> (i32, i32) {
    %c0_i32 = arith.constant 0 : i32
    %c0_i32_0 = arith.constant 0 : i32
    %c0_i32_1 = arith.constant 0 : i32
    return %c0_i32, %c0_i32_0 : i32, i32
  }
  func.func @transform_7(%arg0: i32) -> (i32, i32) {
    %c0_i32 = arith.constant 0 : i32
    %c0_i32_0 = arith.constant 0 : i32
    return %arg0, %c0_i32 : i32, i32
  }
  func.func @transform_8(%arg0: i32) -> (i32, i32, i32) {
    %c0_i32 = arith.constant 0 : i32
    %c0_i32_0 = arith.constant 0 : i32
    %c0_i32_1 = arith.constant 0 : i32
    return %arg0, %c0_i32, %c0_i32_0 : i32, i32, i32
  }
  func.func @transform_9(%arg0: i32) -> (i32, i32, i32) {
    %c0_i32 = arith.constant 0 : i32
    %c0_i32_0 = arith.constant 0 : i32
    %c0_i32_1 = arith.constant 0 : i32
    return %arg0, %c0_i32, %c0_i32_0 : i32, i32, i32
  }
}

</mosaic_0001>

<llo_original>
// kernel: coattention_forward.1
$region0: #{coattention_forward.1}
  #allocation0 [shape = 'u32[]', space=smem, size = 0x4, offset = 0x4, fixed_abs, tag = 'smem constant byte address 0x4 - core index']
  #allocation1 [shape = 'u32[144,128]{1,0:T(1,128)}', space=vmem, size = 0x12000, scoped, tag = 'internal scratch']
  %s0 = inlined_call_operand.vmem [shape: bf16[32,8,128], index: 0, kind: input, shape index: {}]
  %s1 = inlined_call_operand.vmem [shape: bf16[32,16,128], index: 1, kind: input, shape index: {}]
  %s2 = inlined_call_operand.vmem [shape: bf16[128,128], index: 2, kind: input, shape index: {}]
  %s3 = inlined_call_operand.vmem [shape: bf16[80,128], index: 3, kind: input, shape index: {}]
  %s4 = inlined_call_operand.vmem [shape: bf16[80,128], index: 4, kind: input, shape index: {}]
  %s5 = inlined_call_operand.vmem [shape: f32[1,80], index: 5, kind: input, shape index: {}]
  %s6 = inlined_call_operand.vmem [shape: f32[1,80], index: 6, kind: input, shape index: {}]
  %s7 = inlined_call_operand.hbm [shape: f32[32,256], index: 7, kind: output, shape index: {0}]
  %s8 = inlined_call_operand.vmem [shape: f32[32,8,1], index: 8, kind: output, shape index: {1}]
  %s9 = inlined_call_operand.vmem [shape: f32[32,16,1], index: 9, kind: output, shape index: {2}]
  %10 = xla_tuple %s7, %s8, %s9
  %s11 = sld [smem:[#allocation0]]
  $region77: #{coattention_forward.1} parent=0
    _
  %s13 = ssub.s32 1, %s11
  %s14 = scalar_select 0, %s13, %s11
  $region1: #{coattention_forward.1} parent=0
    #allocation2 [shape = 'u8[32768]{0}', space=vmem, size = 0x8000, scoped, tag = 'output window, operand 0']
    #allocation3 [shape = 's32[2]{0}', space=sflag, size = 0x8, scoped, tag = 'scoped memory for coattention_forward.1']
    %15 = vsyncpa [#allocation3], 0
    %s16 = scalar_lea.sflag [#allocation3], 1
    %17 = vsyncpa %s16, 0
    loop: start=0, step=1, limit=4
    $region2: #{coattention_forward.1} parent=1 // loop_pre_header
      _
    $region3: #{coattention_forward.1} parent=1 // loop_header
      %s19 = sphi 0, %s23
      %p20 = scmp.ge.s32.totalorder %s19, 4
      %s29 = sphi 0, %s31
      %s32 = sphi 0, %s29
      %s33 = sphi 0, %s32
      %s49 = sphi 0, %s33
      %s55 = sphi 0, %s57
      %s58 = sphi 0, %s55
      %s59 = sphi 0, %s58
      %s75 = sphi 0, %s59
      %s79 = sphi 0, %s79
      %s81 = sphi 0, %s79
      %s82 = sphi 0, %s81
      %s96 = sphi 0, %s82
      %s100 = sphi 0, %s100
      %s102 = sphi 0, %s100
      %s103 = sphi 0, %s102
      %s117 = sphi 0, %s103
      %s121 = sphi 0, %s121
      %s123 = sphi 0, %s121
      %s124 = sphi 0, %s123
      %s138 = sphi 0, %s124
      %s142 = sphi 0, %s142
      %s144 = sphi 0, %s142
      %s145 = sphi 0, %s144
      %s159 = sphi 0, %s145
      %s163 = sphi 0, %s163
      %s165 = sphi 0, %s163
      %s166 = sphi 0, %s165
      %s180 = sphi 0, %s166
      %s186 = sphi 0, %s188
      %s189 = sphi 0, %s186
      %s190 = sphi 0, %s189
      %s206 = sphi 0, %s190
      %s212 = sphi 0, %s214
      %s215 = sphi 0, %s212
      %s216 = sphi 0, %s215
      %s232 = sphi 0, %s216
      %s238 = sphi 0, %s240
      %s241 = sphi 0, %s238
      %s242 = sphi 0, %s241
      %s258 = sphi 0, %s242
    $region4: #{coattention_forward.1} parent=1 // loop_header_branch
      %22 = sbr.rel (%p20) target = $region8
    $region5: #{coattention_forward.1} parent=1 // loop_body
      %s24 = ssub.s32 %s19, 1
      %s25 = ssub.s32 %s19, 2
      %s26 = sadd.s32 %s19, 1
      %s27 = ssub.s32 %s19, %s26
      %p28 = scmp.eq.s32.totalorder %s27, 0
      %s30 = sadd.s32 %s29, 1
      %s31 = scalar_select %p28, %s29, %s30
      %p34 = pneg %p28
      %p35 = scmp.eq.s32.totalorder %s19, 1
      %p36 = por %p34, %p35
      %p37 = scmp.ne.s32.totalorder %s29, %s32
      %p38 = scmp.eq.s32.totalorder %s19, 0
      %p39 = por %p37, %p38
      %p40 = scmp.ne.s32.totalorder %s29, %s32
      %p41 = scmp.eq.s32.totalorder %s24, 1
      %p42 = por %p40, %p41
      %p43 = scmp.ne.s32.totalorder %s32, %s33
      %p44 = scmp.eq.s32.totalorder %s24, 0
      %p45 = por %p43, %p44
      %p46 = scmp.ne.s32.totalorder %s32, %s33
      %p47 = scmp.eq.s32.totalorder %s25, 1
      %p48 = por %p46, %p47
      %p50 = scmp.ne.s32.totalorder %s33, %s49
      %p51 = scmp.eq.s32.totalorder %s25, 0
      %p52 = por %p50, %p51
      %s53 = ssub.s32 %s19, %s26
      %p54 = scmp.eq.s32.totalorder %s53, 0
      %s56 = sadd.s32 %s55, 1
      %s57 = scalar_select %p54, %s55, %s56
      %p60 = pneg %p54
      %p61 = scmp.eq.s32.totalorder %s19, 1
      %p62 = por %p60, %p61
      %p63 = scmp.ne.s32.totalorder %s55, %s58
      %p64 = scmp.eq.s32.totalorder %s19, 0
      %p65 = por %p63, %p64
      %p66 = scmp.ne.s32.totalorder %s55, %s58
      %p67 = scmp.eq.s32.totalorder %s24, 1
      %p68 = por %p66, %p67
      %p69 = scmp.ne.s32.totalorder %s58, %s59
      %p70 = scmp.eq.s32.totalorder %s24, 0
      %p71 = por %p69, %p70
      %p72 = scmp.ne.s32.totalorder %s58, %s59
      %p73 = scmp.eq.s32.totalorder %s25, 1
      %p74 = por %p72, %p73
      %p76 = scmp.ne.s32.totalorder %s59, %s75
      %p77 = scmp.eq.s32.totalorder %s25, 0
      %p78 = por %p76, %p77
      %s80 = sadd.s32 %s79, 1
      %p83 = scmp.eq.s32.totalorder %s19, 1
      %p84 = scmp.ne.s32.totalorder %s79, %s81
      %p85 = scmp.eq.s32.totalorder %s19, 0
      %p86 = por %p84, %p85
      %p87 = scmp.ne.s32.totalorder %s79, %s81
      %p88 = scmp.eq.s32.totalorder %s24, 1
      %p89 = por %p87, %p88
      %p90 = scmp.ne.s32.totalorder %s81, %s82
      %p91 = scmp.eq.s32.totalorder %s24, 0
      %p92 = por %p90, %p91
      %p93 = scmp.ne.s32.totalorder %s81, %s82
      %p94 = scmp.eq.s32.totalorder %s25, 1
      %p95 = por %p93, %p94
      %p97 = scmp.ne.s32.totalorder %s82, %s96
      %p98 = scmp.eq.s32.totalorder %s25, 0
      %p99 = por %p97, %p98
      %s101 = sadd.s32 %s100, 1
      %p104 = scmp.eq.s32.totalorder %s19, 1
      %p105 = scmp.ne.s32.totalorder %s100, %s102
      %p106 = scmp.eq.s32.totalorder %s19, 0
      %p107 = por %p105, %p106
      %p108 = scmp.ne.s32.totalorder %s100, %s102
      %p109 = scmp.eq.s32.totalorder %s24, 1
      %p110 = por %p108, %p109
      %p111 = scmp.ne.s32.totalorder %s102, %s103
      %p112 = scmp.eq.s32.totalorder %s24, 0
      %p113 = por %p111, %p112
      %p114 = scmp.ne.s32.totalorder %s102, %s103
      %p115 = scmp.eq.s32.totalorder %s25, 1
      %p116 = por %p114, %p115
      %p118 = scmp.ne.s32.totalorder %s103, %s117
      %p119 = scmp.eq.s32.totalorder %s25, 0
      %p120 = por %p118, %p119
      %s122 = sadd.s32 %s121, 1
      %p125 = scmp.eq.s32.totalorder %s19, 1
      %p126 = scmp.ne.s32.totalorder %s121, %s123
      %p127 = scmp.eq.s32.totalorder %s19, 0
      %p128 = por %p126, %p127
      %p129 = scmp.ne.s32.totalorder %s121, %s123
      %p130 = scmp.eq.s32.totalorder %s24, 1
      %p131 = por %p129, %p130
      %p132 = scmp.ne.s32.totalorder %s123, %s124
      %p133 = scmp.eq.s32.totalorder %s24, 0
      %p134 = por %p132, %p133
      %p135 = scmp.ne.s32.totalorder %s123, %s124
      %p136 = scmp.eq.s32.totalorder %s25, 1
      %p137 = por %p135, %p136
      %p139 = scmp.ne.s32.totalorder %s124, %s138
      %p140 = scmp.eq.s32.totalorder %s25, 0
      %p141 = por %p139, %p140
      %s143 = sadd.s32 %s142, 1
      %p146 = scmp.eq.s32.totalorder %s19, 1
      %p147 = scmp.ne.s32.totalorder %s142, %s144
      %p148 = scmp.eq.s32.totalorder %s19, 0
      %p149 = por %p147, %p148
      %p150 = scmp.ne.s32.totalorder %s142, %s144
      %p151 = scmp.eq.s32.totalorder %s24, 1
      %p152 = por %p150, %p151
      %p153 = scmp.ne.s32.totalorder %s144, %s145
      %p154 = scmp.eq.s32.totalorder %s24, 0
      %p155 = por %p153, %p154
      %p156 = scmp.ne.s32.totalorder %s144, %s145
      %p157 = scmp.eq.s32.totalorder %s25, 1
      %p158 = por %p156, %p157
      %p160 = scmp.ne.s32.totalorder %s145, %s159
      %p161 = scmp.eq.s32.totalorder %s25, 0
      %p162 = por %p160, %p161
      %s164 = sadd.s32 %s163, 1
      %p167 = scmp.eq.s32.totalorder %s19, 1
      %p168 = scmp.ne.s32.totalorder %s163, %s165
      %p169 = scmp.eq.s32.totalorder %s19, 0
      %p170 = por %p168, %p169
      %p171 = scmp.ne.s32.totalorder %s163, %s165
      %p172 = scmp.eq.s32.totalorder %s24, 1
      %p173 = por %p171, %p172
      %p174 = scmp.ne.s32.totalorder %s165, %s166
      %p175 = scmp.eq.s32.totalorder %s24, 0
      %p176 = por %p174, %p175
      %p177 = scmp.ne.s32.totalorder %s165, %s166
      %p178 = scmp.eq.s32.totalorder %s25, 1
      %p179 = por %p177, %p178
      %p181 = scmp.ne.s32.totalorder %s166, %s180
      %p182 = scmp.eq.s32.totalorder %s25, 0
      %p183 = por %p181, %p182
      %s184 = ssub.s32 %s19, %s26
      %p185 = scmp.eq.s32.totalorder %s184, 0
      %s187 = sadd.s32 %s186, 1
      %s188 = scalar_select %p185, %s186, %s187
      %p191 = pneg %p185
      %p192 = scmp.eq.s32.totalorder %s19, 1
      %p193 = por %p191, %p192
      %p194 = scmp.ne.s32.totalorder %s186, %s189
      %p195 = scmp.eq.s32.totalorder %s19, 0
      %p196 = por %p194, %p195
      %p197 = scmp.ne.s32.totalorder %s186, %s189
      %p198 = scmp.eq.s32.totalorder %s24, 1
      %p199 = por %p197, %p198
      %p200 = scmp.ne.s32.totalorder %s189, %s190
      %p201 = scmp.eq.s32.totalorder %s24, 0
      %p202 = por %p200, %p201
      %p203 = scmp.ne.s32.totalorder %s189, %s190
      %p204 = scmp.eq.s32.totalorder %s25, 1
      %p205 = por %p203, %p204
      %p207 = scmp.ne.s32.totalorder %s190, %s206
      %p208 = scmp.eq.s32.totalorder %s25, 0
      %p209 = por %p207, %p208
      %s210 = ssub.s32 %s19, %s26
      %p211 = scmp.eq.s32.totalorder %s210, 0
      %s213 = sadd.s32 %s212, 1
      %s214 = scalar_select %p211, %s212, %s213
      %p217 = pneg %p211
      %p218 = scmp.eq.s32.totalorder %s19, 1
      %p219 = por %p217, %p218
      %p220 = scmp.ne.s32.totalorder %s212, %s215
      %p221 = scmp.eq.s32.totalorder %s19, 0
      %p222 = por %p220, %p221
      %p223 = scmp.ne.s32.totalorder %s212, %s215
      %p224 = scmp.eq.s32.totalorder %s24, 1
      %p225 = por %p223, %p224
      %p226 = scmp.ne.s32.totalorder %s215, %s216
      %p227 = scmp.eq.s32.totalorder %s24, 0
      %p228 = por %p226, %p227
      %p229 = scmp.ne.s32.totalorder %s215, %s216
      %p230 = scmp.eq.s32.totalorder %s25, 1
      %p231 = por %p229, %p230
      %p233 = scmp.ne.s32.totalorder %s216, %s232
      %p234 = scmp.eq.s32.totalorder %s25, 0
      %p235 = por %p233, %p234
      %s236 = ssub.s32 %s19, %s26
      %p237 = scmp.eq.s32.totalorder %s236, 0
      %s239 = sadd.s32 %s238, 1
      %s240 = scalar_select %p237, %s238, %s239
      %p243 = pneg %p237
      %p244 = scmp.eq.s32.totalorder %s19, 1
      %p245 = por %p243, %p244
      %p246 = scmp.ne.s32.totalorder %s238, %s241
      %p247 = scmp.eq.s32.totalorder %s19, 0
      %p248 = por %p246, %p247
      %p249 = scmp.ne.s32.totalorder %s238, %s241
      %p250 = scmp.eq.s32.totalorder %s24, 1
      %p251 = por %p249, %p250
      %p252 = scmp.ne.s32.totalorder %s241, %s242
      %p253 = scmp.eq.s32.totalorder %s24, 0
      %p254 = por %p252, %p253
      %p255 = scmp.ne.s32.totalorder %s241, %s242
      %p256 = scmp.eq.s32.totalorder %s25, 1
      %p257 = por %p255, %p256
      %p259 = scmp.ne.s32.totalorder %s242, %s258
      %p260 = scmp.eq.s32.totalorder %s25, 0
      %p261 = por %p259, %p260
      %p262 = scmp.le.s32.totalorder 1, %s19
      %p263 = scmp.lt.s32.totalorder %s19, 3
      %p264 = pnand %p262, %p263
      %p265 = pneg %p264
      // Predicated region
      $region9: #{coattention_forward.1} parent=5 // pred_check
        _
      $region10: #{coattention_forward.1} parent=5 // pred_check_branch
        %267 = sbr.rel (%p264) target = $region12
      $region11: #{coattention_forward.1} parent=5 // pred_region
        %s268 = ssub.s32 %s19, 1
        // Predicated region
        $region13: #{coattention_forward.1} parent=11 // pred_check
          %p269 = pneg %p92
        $region14: #{coattention_forward.1} parent=11 // pred_check_branch
          %271 = sbr.rel (%p269) target = $region16
        $region15: #{coattention_forward.1} parent=11 // pred_region
          _
        $region16: #{coattention_forward.1} parent=11 // pred_fallthru
          _
        // Predicated region
        $region17: #{coattention_forward.1} parent=11 // pred_check
          %p272 = pneg %p113
        $region18: #{coattention_forward.1} parent=11 // pred_check_branch
          %274 = sbr.rel (%p272) target = $region20
        $region19: #{coattention_forward.1} parent=11 // pred_region
          _
        $region20: #{coattention_forward.1} parent=11 // pred_fallthru
          _
        // Predicated region
        $region21: #{coattention_forward.1} parent=11 // pred_check
          %p275 = pneg %p134
        $region22: #{coattention_forward.1} parent=11 // pred_check_branch
          %277 = sbr.rel (%p275) target = $region24
        $region23: #{coattention_forward.1} parent=11 // pred_region
          _
        $region24: #{coattention_forward.1} parent=11 // pred_fallthru
          _
        // Predicated region
        $region25: #{coattention_forward.1} parent=11 // pred_check
          %p278 = pneg %p155
        $region26: #{coattention_forward.1} parent=11 // pred_check_branch
          %280 = sbr.rel (%p278) target = $region28
        $region27: #{coattention_forward.1} parent=11 // pred_region
          _
        $region28: #{coattention_forward.1} parent=11 // pred_fallthru
          _
        // Predicated region
        $region29: #{coattention_forward.1} parent=11 // pred_check
          %p281 = pneg %p176
        $region30: #{coattention_forward.1} parent=11 // pred_check_branch
          %283 = sbr.rel (%p281) target = $region32
        $region31: #{coattention_forward.1} parent=11 // pred_region
          _
        $region32: #{coattention_forward.1} parent=11 // pred_fallthru
          _
      $region12: #{coattention_forward.1} parent=5 // pred_fallthru
        _
      %p284 = scmp.lt.s32.totalorder %s19, 2
      // Predicated region
      $region33: #{coattention_forward.1} parent=5 // pred_check
        %p285 = pneg %p284
      $region34: #{coattention_forward.1} parent=5 // pred_check_branch
        %287 = sbr.rel (%p285) target = $region36
      $region35: #{coattention_forward.1} parent=5 // pred_region
        // Predicated region
        $region37: #{coattention_forward.1} parent=35 // pred_check
          %p288 = pneg %p39
        $region38: #{coattention_forward.1} parent=35 // pred_check_branch
          %290 = sbr.rel (%p288) target = $region40
        $region39: #{coattention_forward.1} parent=35 // pred_region
          %s291 = smul.u32 16, %s19
          %p292 = scmp.lt.s32.totalorder %s291, 31
          %s293 = scalar_select %p292, %s291, 31
          %s294 = smul.addr %s293, 4
          %s295 = scalar_lea.vmem %s0, %s294
          %s296 = smul.u32 16, %s19
        $region40: #{coattention_forward.1} parent=35 // pred_fallthru
          _
        // Predicated region
        $region41: #{coattention_forward.1} parent=35 // pred_check
          %p297 = pneg %p65
        $region42: #{coattention_forward.1} parent=35 // pred_check_branch
          %299 = sbr.rel (%p297) target = $region44
        $region43: #{coattention_forward.1} parent=35 // pred_region
          %s300 = smul.u32 16, %s19
          %p301 = scmp.lt.s32.totalorder %s300, 31
          %s302 = scalar_select %p301, %s300, 31
          %s303 = smul.addr %s302, 2
          %s304 = smul.addr %s303, 4
          %s305 = scalar_lea.vmem %s1, %s304
          %s306 = smul.u32 16, %s19
        $region44: #{coattention_forward.1} parent=35 // pred_fallthru
          _
      $region36: #{coattention_forward.1} parent=5 // pred_fallthru
        _
      %p307 = scmp.le.s32.totalorder 1, %s19
      %p308 = scmp.lt.s32.totalorder %s19, 3
      %p309 = pnand %p307, %p308
      %p310 = pneg %p309
      // Predicated region
      $region45: #{coattention_forward.1} parent=5 // pred_check
        _
      $region46: #{coattention_forward.1} parent=5 // pred_check_branch
        %312 = sbr.rel (%p309) target = $region48
      $region47: #{coattention_forward.1} parent=5 // pred_region
        %s313 = ssub.s32 %s19, 1
        %s314 = smul.u32 16, %s24
        %p315 = scmp.lt.s32.totalorder %s314, 31
        %s316 = scalar_select %p315, %s314, 31
        %s317 = smul.addr %s316, 4
        %s318 = scalar_lea.vmem %s0, %s317
        %p319 = pneg %p45
        %p320 = pneg %p42
        %s321 = smul.u32 16, %s24
        %p322 = scmp.lt.s32.totalorder %s321, 31
        %s323 = scalar_select %p322, %s321, 31
        %s324 = smul.addr %s323, 2
        %s325 = smul.addr %s324, 4
        %s326 = scalar_lea.vmem %s1, %s325
        %p327 = pneg %p71
        %p328 = pneg %p68
        %p329 = pneg %p92
        %p330 = pneg %p89
        %p331 = pneg %p113
        %p332 = pneg %p110
        %p333 = pneg %p134
        %p334 = pneg %p131
        %p335 = pneg %p155
        %p336 = pneg %p152
        %p337 = pneg %p176
        %p338 = pneg %p173
        %p339 = pneg %p202
        %p340 = pneg %p199
        %s341 = sand.u32 %s189, 1
        %s342 = scalar_lea.sflag [#allocation3], %s341
        %s343 = sand.u32 %s189, 1
        %s344 = smul.addr %s343, 32
        %s345 = scalar_lea.vmem [#allocation2], %s344
        %p346 = pneg %p228
        %p347 = pneg %p225
        %s348 = smul.u32 16, %s24
        %p349 = scmp.lt.s32.totalorder %s348, 31
        %s350 = scalar_select %p349, %s348, 31
        %s351 = smul.addr %s350, 8
        %s352 = scalar_lea.vmem %s8, %s351
        %p353 = pneg %p254
        %p354 = pneg %p251
        %s355 = smul.u32 16, %s24
        %p356 = scmp.lt.s32.totalorder %s355, 31
        %s357 = scalar_select %p356, %s355, 31
        %s358 = smul.addr %s357, 2
        %s359 = smul.addr %s358, 8
        %s360 = scalar_lea.vmem %s9, %s359
        %s361 = smul.u32 16, %s24
        %p362 = scmp.lt.s32.totalorder %s361, 31
        %s363 = scalar_select %p362, %s361, 31
        %s364 = smul.addr %s363, 4
        %s365 = scalar_lea.vmem %s0, %s364
        %s366 = smul.u32 16, %s24
        %s367 = smul.u32 16, %s24
        %p368 = scmp.lt.s32.totalorder %s367, 31
        %s369 = scalar_select %p368, %s367, 31
        %s370 = smul.addr %s369, 2
        %s371 = smul.addr %s370, 4
        %s372 = scalar_lea.vmem %s1, %s371
        %s373 = smul.u32 16, %s24
        %s374 = smul.u32 2, %s24
        %s375 = smul.u32 16, %s24
        %p376 = scmp.lt.s32.totalorder %s375, 31
        %s377 = scalar_select %p376, %s375, 31
        %s378 = smul.addr %s377, 8
        %s379 = scalar_lea.vmem %s8, %s378
        %s380 = smul.u32 16, %s24
        %s381 = smul.u32 16, %s24
        %p382 = scmp.lt.s32.totalorder %s381, 31
        %s383 = scalar_select %p382, %s381, 31
        %s384 = smul.addr %s383, 2
        %s385 = smul.addr %s384, 8
        %s386 = scalar_lea.vmem %s9, %s385
        %s387 = smul.u32 16, %s24
        %v389 = vld [vmem:[%s365] sm:$0xf]
        %v390 = vld [vmem:[%s365 + $0x4] sm:$0xf]
        %v391 = vld [vmem:[%s365 + $0x8] sm:$0xf]
        %v392 = vld [vmem:[%s365 + $0xc] sm:$0xf]
        %v393 = vld [vmem:[%s365 + $0x10] sm:$0xf]
        %v394 = vld [vmem:[%s365 + $0x14] sm:$0xf]
        %v395 = vld [vmem:[%s365 + $0x18] sm:$0xf]
        %v396 = vld [vmem:[%s365 + $0x1c] sm:$0xf]
        %v397 = vld [vmem:[%s365 + $0x20] sm:$0xf]
        %v398 = vld [vmem:[%s365 + $0x24] sm:$0xf]
        %v399 = vld [vmem:[%s365 + $0x28] sm:$0xf]
        %v400 = vld [vmem:[%s365 + $0x2c] sm:$0xf]
        %v401 = vld [vmem:[%s365 + $0x30] sm:$0xf]
        %v402 = vld [vmem:[%s365 + $0x34] sm:$0xf]
        %v403 = vld [vmem:[%s365 + $0x38] sm:$0xf]
        %v404 = vld [vmem:[%s365 + $0x3c] sm:$0xf]
        %v405 = vld [vmem:[%s372] sm:$0xf]
        %v406 = vld [vmem:[%s372 + $0x4] sm:$0xf]
        %v407 = vld [vmem:[%s372 + $0x8] sm:$0xf]
        %v408 = vld [vmem:[%s372 + $0xc] sm:$0xf]
        %v409 = vld [vmem:[%s372 + $0x10] sm:$0xf]
        %v410 = vld [vmem:[%s372 + $0x14] sm:$0xf]
        %v411 = vld [vmem:[%s372 + $0x18] sm:$0xf]
        %v412 = vld [vmem:[%s372 + $0x1c] sm:$0xf]
        %v413 = vld [vmem:[%s372 + $0x20] sm:$0xf]
        %v414 = vld [vmem:[%s372 + $0x24] sm:$0xf]
        %v415 = vld [vmem:[%s372 + $0x28] sm:$0xf]
        %v416 = vld [vmem:[%s372 + $0x2c] sm:$0xf]
        %v417 = vld [vmem:[%s372 + $0x30] sm:$0xf]
        %v418 = vld [vmem:[%s372 + $0x34] sm:$0xf]
        %v419 = vld [vmem:[%s372 + $0x38] sm:$0xf]
        %v420 = vld [vmem:[%s372 + $0x3c] sm:$0xf]
        %v421 = vld [vmem:[%s372 + $0x40] sm:$0xf]
        %v422 = vld [vmem:[%s372 + $0x44] sm:$0xf]
        %v423 = vld [vmem:[%s372 + $0x48] sm:$0xf]
        %v424 = vld [vmem:[%s372 + $0x4c] sm:$0xf]
        %v425 = vld [vmem:[%s372 + $0x50] sm:$0xf]
        %v426 = vld [vmem:[%s372 + $0x54] sm:$0xf]
        %v427 = vld [vmem:[%s372 + $0x58] sm:$0xf]
        %v428 = vld [vmem:[%s372 + $0x5c] sm:$0xf]
        %v429 = vld [vmem:[%s372 + $0x60] sm:$0xf]
        %v430 = vld [vmem:[%s372 + $0x64] sm:$0xf]
        %v431 = vld [vmem:[%s372 + $0x68] sm:$0xf]
        %v432 = vld [vmem:[%s372 + $0x6c] sm:$0xf]
        %v433 = vld [vmem:[%s372 + $0x70] sm:$0xf]
        %v434 = vld [vmem:[%s372 + $0x74] sm:$0xf]
        %v435 = vld [vmem:[%s372 + $0x78] sm:$0xf]
        %v436 = vld [vmem:[%s372 + $0x7c] sm:$0xf]
        %v437 = vld [vmem:[%s2] sm:$0xf]
        %v438 = vld [vmem:[%s2 + $0x4] sm:$0xf]
        %v439 = vld [vmem:[%s2 + $0x8] sm:$0xf]
        %v440 = vld [vmem:[%s2 + $0xc] sm:$0xf]
        %v441 = vld [vmem:[%s2 + $0x10] sm:$0xf]
        %v442 = vld [vmem:[%s2 + $0x14] sm:$0xf]
        %v443 = vld [vmem:[%s2 + $0x18] sm:$0xf]
        %v444 = vld [vmem:[%s2 + $0x1c] sm:$0xf]
        %v445 = vld [vmem:[%s2 + $0x20] sm:$0xf]
        %v446 = vld [vmem:[%s2 + $0x24] sm:$0xf]
        %v447 = vld [vmem:[%s2 + $0x28] sm:$0xf]
        %v448 = vld [vmem:[%s2 + $0x2c] sm:$0xf]
        %v449 = vld [vmem:[%s2 + $0x30] sm:$0xf]
        %v450 = vld [vmem:[%s2 + $0x34] sm:$0xf]
        %v451 = vld [vmem:[%s2 + $0x38] sm:$0xf]
        %v452 = vld [vmem:[%s2 + $0x3c] sm:$0xf]
        %v453 = vld [vmem:[%s3] sm:$0xf]
        %v454 = vld [vmem:[%s3 + $0x4] sm:$0xf]
        %v455 = vld [vmem:[%s3 + $0x8] sm:$0xf]
        %v456 = vld [vmem:[%s3 + $0xc] sm:$0xf]
        %v457 = vld [vmem:[%s3 + $0x10] sm:$0xf]
        %v458 = vld [vmem:[%s3 + $0x14] sm:$0xf]
        %v459 = vld [vmem:[%s3 + $0x18] sm:$0xf]
        %v460 = vld [vmem:[%s3 + $0x1c] sm:$0xf]
        %v461 = vld [vmem:[%s3 + $0x20] sm:$0xf]
        %v462 = vld [vmem:[%s3 + $0x24] sm:$0xf]
        %v463 = vld [vmem:[%s4] sm:$0xf]
        %v464 = vld [vmem:[%s4 + $0x4] sm:$0xf]
        %v465 = vld [vmem:[%s4 + $0x8] sm:$0xf]
        %v466 = vld [vmem:[%s4 + $0xc] sm:$0xf]
        %v467 = vld [vmem:[%s4 + $0x10] sm:$0xf]
        %v468 = vld [vmem:[%s4 + $0x14] sm:$0xf]
        %v469 = vld [vmem:[%s4 + $0x18] sm:$0xf]
        %v470 = vld [vmem:[%s4 + $0x1c] sm:$0xf]
        %v471 = vld [vmem:[%s4 + $0x20] sm:$0xf]
        %v472 = vld [vmem:[%s4 + $0x24] sm:$0xf]
        %v473 = vld [vmem:[%s5] sm:$0x1]
        %v474 = vld [vmem:[%s6] sm:$0x1]
        %v507 = vunpack.c.l.b16 %v405
        %v508 = vunpack.c.l.b16 %v406
        %v509 = vunpack.c.l.b16 %v407
        %v510 = vunpack.c.l.b16 %v408
        %v511 = vunpack.c.l.b16 %v409
        %v512 = vunpack.c.l.b16 %v410
        %v513 = vunpack.c.l.b16 %v411
        %v514 = vunpack.c.l.b16 %v412
        %v515 = vunpack.c.l.b16 %v413
        %v516 = vunpack.c.l.b16 %v414
        %v517 = vunpack.c.l.b16 %v415
        %v518 = vunpack.c.l.b16 %v416
        %v519 = vunpack.c.l.b16 %v417
        %v520 = vunpack.c.l.b16 %v418
        %v521 = vunpack.c.l.b16 %v419
        %v522 = vunpack.c.l.b16 %v420
        %v523 = vunpack.c.l.b16 %v421
        %v524 = vunpack.c.l.b16 %v422
        %v525 = vunpack.c.l.b16 %v423
        %v526 = vunpack.c.l.b16 %v424
        %v527 = vunpack.c.l.b16 %v425
        %v528 = vunpack.c.l.b16 %v426
        %v529 = vunpack.c.l.b16 %v427
        %v530 = vunpack.c.l.b16 %v428
        %v531 = vunpack.c.l.b16 %v429
        %v532 = vunpack.c.l.b16 %v430
        %v533 = vunpack.c.l.b16 %v431
        %v534 = vunpack.c.l.b16 %v432
        %v535 = vunpack.c.l.b16 %v433
        %v536 = vunpack.c.l.b16 %v434
        %v537 = vunpack.c.l.b16 %v435
        %v538 = vunpack.c.l.b16 %v436
        %v539 = vpack.c.b16 %v508, %v507
        %v540 = vpack.c.b16 %v510, %v509
        %v541 = vpack.c.b16 %v512, %v511
        %v542 = vpack.c.b16 %v514, %v513
        %v543 = vpack.c.b16 %v516, %v515
        %v544 = vpack.c.b16 %v518, %v517
        %v545 = vpack.c.b16 %v520, %v519
        %v546 = vpack.c.b16 %v522, %v521
        %v547 = vpack.c.b16 %v524, %v523
        %v548 = vpack.c.b16 %v526, %v525
        %v549 = vpack.c.b16 %v528, %v527
        %v550 = vpack.c.b16 %v530, %v529
        %v551 = vpack.c.b16 %v532, %v531
        %v552 = vpack.c.b16 %v534, %v533
        %v553 = vpack.c.b16 %v536, %v535
        %v554 = vpack.c.b16 %v538, %v537
        %v587 = vunpack.c.l.b16 %v437
        %v588 = vunpack.c.l.b16 %v438
        %v589 = vunpack.c.l.b16 %v439
        %v590 = vunpack.c.l.b16 %v440
        %v591 = vunpack.c.l.b16 %v441
        %v592 = vunpack.c.l.b16 %v442
        %v593 = vunpack.c.l.b16 %v443
        %v594 = vunpack.c.l.b16 %v444
        %v595 = vunpack.c.l.b16 %v445
        %v596 = vunpack.c.l.b16 %v446
        %v597 = vunpack.c.l.b16 %v447
        %v598 = vunpack.c.l.b16 %v448
        %v599 = vunpack.c.l.b16 %v449
        %v600 = vunpack.c.l.b16 %v450
        %v601 = vunpack.c.l.b16 %v451
        %v602 = vunpack.c.l.b16 %v452
        %v603 = vpack.c.b16 %v588, %v587
        %v604 = vpack.c.b16 %v590, %v589
        %v605 = vpack.c.b16 %v592, %v591
        %v606 = vpack.c.b16 %v594, %v593
        %v607 = vpack.c.b16 %v596, %v595
        %v608 = vpack.c.b16 %v598, %v597
        %v609 = vpack.c.b16 %v600, %v599
        %v610 = vpack.c.b16 %v602, %v601
        %619 = vmatprep.subr.bf16.mxu0 0
        %620 = vmatpush1.bf16.msra.mxu0 %v603
        %621 = vmatprep.subr.bf16.mxu0 0
        %622 = vmatpush1.bf16.msra.mxu0 %v604
        %623 = vmatprep.subr.bf16.mxu0 0
        %624 = vmatpush1.bf16.msra.mxu0 %v605
        %625 = vmatprep.subr.bf16.mxu0 0
        %626 = vmatpush1.bf16.msra.mxu0 %v606
        %627 = vmatprep.subr.bf16.mxu0 0
        %628 = vmatpush1.bf16.msra.mxu0 %v607
        %629 = vmatprep.subr.bf16.mxu0 0
        %630 = vmatpush1.bf16.msra.mxu0 %v608
        %631 = vmatprep.subr.bf16.mxu0 0
        %632 = vmatpush1.bf16.msra.mxu0 %v609
        %633 = vmatprep.subr.bf16.mxu0 0
        %634 = vmatpush1.bf16.msra.mxu0 %v610
        %635 = vmatprep.subr.bf16.mxu0 0
        %636 = vmatpush1.bf16.msra.mxu0 0
        %637 = vmatprep.subr.bf16.mxu0 0
        %638 = vmatpush1.bf16.msra.mxu0 0
        %639 = vmatprep.subr.bf16.mxu0 0
        %640 = vmatpush1.bf16.msra.mxu0 0
        %641 = vmatprep.subr.bf16.mxu0 0
        %642 = vmatpush1.bf16.msra.mxu0 0
        %643 = vmatprep.subr.bf16.mxu0 0
        %644 = vmatpush1.bf16.msra.mxu0 0
        %645 = vmatprep.subr.bf16.mxu0 0
        %646 = vmatpush1.bf16.msra.mxu0 0
        %647 = vmatprep.subr.bf16.mxu0 0
        %648 = vmatpush1.bf16.msra.mxu0 0
        %649 = vmatprep.subr.bf16.mxu0 0
        %650 = vmatpush1.bf16.msra.mxu0 0
        %651 = vmatprep.mubr.bf16.mxu0 0
        %652 = vmatmul.mubr.bf16.gmra.mrb[0].mxu0 %v539
        %v653 = vpop.f32.mrb[0].mxu0
        %v654 = vadd.f32 0.0, %v653
        %v655 = vpop.f32.mrb[0].mxu0
        %v656 = vpop.f32.mrb[0].mxu0
        %v657 = vadd.f32 0.0, %v656
        %v658 = vpop.f32.mrb[0].mxu0
        %659 = vmatprep.mubr.bf16.mxu0 0
        %660 = vmatmul.mubr.bf16.gmra.mrb[0].mxu0 %v540
        %v661 = vpop.f32.mrb[0].mxu0
        %v662 = vadd.f32 0.0, %v661
        %v663 = vpop.f32.mrb[0].mxu0
        %v664 = vpop.f32.mrb[0].mxu0
        %v665 = vadd.f32 0.0, %v664
        %v666 = vpop.f32.mrb[0].mxu0
        %667 = vmatprep.mubr.bf16.mxu0 0
        %668 = vmatmul.mubr.bf16.gmra.mrb[0].mxu0 %v541
        %v669 = vpop.f32.mrb[0].mxu0
        %v670 = vadd.f32 0.0, %v669
        %v671 = vpop.f32.mrb[0].mxu0
        %v672 = vpop.f32.mrb[0].mxu0
        %v673 = vadd.f32 0.0, %v672
        %v674 = vpop.f32.mrb[0].mxu0
        %675 = vmatprep.mubr.bf16.mxu0 0
        %676 = vmatmul.mubr.bf16.gmra.mrb[0].mxu0 %v542
        %v677 = vpop.f32.mrb[0].mxu0
        %v678 = vadd.f32 0.0, %v677
        %v679 = vpop.f32.mrb[0].mxu0
        %v680 = vpop.f32.mrb[0].mxu0
        %v681 = vadd.f32 0.0, %v680
        %v682 = vpop.f32.mrb[0].mxu0
        %683 = vmatprep.mubr.bf16.mxu0 0
        %684 = vmatmul.mubr.bf16.gmra.mrb[0].mxu0 %v543
        %v685 = vpop.f32.mrb[0].mxu0
        %v686 = vadd.f32 0.0, %v685
        %v687 = vpop.f32.mrb[0].mxu0
        %v688 = vpop.f32.mrb[0].mxu0
        %v689 = vadd.f32 0.0, %v688
        %v690 = vpop.f32.mrb[0].mxu0
        %691 = vmatprep.mubr.bf16.mxu0 0
        %692 = vmatmul.mubr.bf16.gmra.mrb[0].mxu0 %v544
        %v693 = vpop.f32.mrb[0].mxu0
        %v694 = vadd.f32 0.0, %v693
        %v695 = vpop.f32.mrb[0].mxu0
        %v696 = vpop.f32.mrb[0].mxu0
        %v697 = vadd.f32 0.0, %v696
        %v698 = vpop.f32.mrb[0].mxu0
        %699 = vmatprep.mubr.bf16.mxu0 0
        %700 = vmatmul.mubr.bf16.gmra.mrb[0].mxu0 %v545
        %v701 = vpop.f32.mrb[0].mxu0
        %v702 = vadd.f32 0.0, %v701
        %v703 = vpop.f32.mrb[0].mxu0
        %v704 = vpop.f32.mrb[0].mxu0
        %v705 = vadd.f32 0.0, %v704
        %v706 = vpop.f32.mrb[0].mxu0
        %707 = vmatprep.mubr.bf16.mxu0 0
        %708 = vmatmul.mubr.bf16.gmra.mrb[0].mxu0 %v546
        %v709 = vpop.f32.mrb[0].mxu0
        %v710 = vadd.f32 0.0, %v709
        %v711 = vpop.f32.mrb[0].mxu0
        %v712 = vpop.f32.mrb[0].mxu0
        %v713 = vadd.f32 0.0, %v712
        %v714 = vpop.f32.mrb[0].mxu0
        %715 = vmatprep.mubr.bf16.mxu0 0
        %716 = vmatmul.mubr.bf16.gmra.mrb[0].mxu0 %v547
        %v717 = vpop.f32.mrb[0].mxu0
        %v718 = vadd.f32 0.0, %v717
        %v719 = vpop.f32.mrb[0].mxu0
        %v720 = vpop.f32.mrb[0].mxu0
        %v721 = vadd.f32 0.0, %v720
        %v722 = vpop.f32.mrb[0].mxu0
        %723 = vmatprep.mubr.bf16.mxu0 0
        %724 = vmatmul.mubr.bf16.gmra.mrb[0].mxu0 %v548
        %v725 = vpop.f32.mrb[0].mxu0
        %v726 = vadd.f32 0.0, %v725
        %v727 = vpop.f32.mrb[0].mxu0
        %v728 = vpop.f32.mrb[0].mxu0
        %v729 = vadd.f32 0.0, %v728
        %v730 = vpop.f32.mrb[0].mxu0
        %731 = vmatprep.mubr.bf16.mxu0 0
        %732 = vmatmul.mubr.bf16.gmra.mrb[0].mxu0 %v549
        %v733 = vpop.f32.mrb[0].mxu0
        %v734 = vadd.f32 0.0, %v733
        %v735 = vpop.f32.mrb[0].mxu0
        %v736 = vpop.f32.mrb[0].mxu0
        %v737 = vadd.f32 0.0, %v736
        %v738 = vpop.f32.mrb[0].mxu0
        %739 = vmatprep.mubr.bf16.mxu0 0
        %740 = vmatmul.mubr.bf16.gmra.mrb[0].mxu0 %v550
        %v741 = vpop.f32.mrb[0].mxu0
        %v742 = vadd.f32 0.0, %v741
        %v743 = vpop.f32.mrb[0].mxu0
        %v744 = vpop.f32.mrb[0].mxu0
        %v745 = vadd.f32 0.0, %v744
        %v746 = vpop.f32.mrb[0].mxu0
        %747 = vmatprep.mubr.bf16.mxu0 0
        %748 = vmatmul.mubr.bf16.gmra.mrb[0].mxu0 %v551
        %v749 = vpop.f32.mrb[0].mxu0
        %v750 = vadd.f32 0.0, %v749
        %v751 = vpop.f32.mrb[0].mxu0
        %v752 = vpop.f32.mrb[0].mxu0
        %v753 = vadd.f32 0.0, %v752
        %v754 = vpop.f32.mrb[0].mxu0
        %755 = vmatprep.mubr.bf16.mxu0 0
        %756 = vmatmul.mubr.bf16.gmra.mrb[0].mxu0 %v552
        %v757 = vpop.f32.mrb[0].mxu0
        %v758 = vadd.f32 0.0, %v757
        %v759 = vpop.f32.mrb[0].mxu0
        %v760 = vpop.f32.mrb[0].mxu0
        %v761 = vadd.f32 0.0, %v760
        %v762 = vpop.f32.mrb[0].mxu0
        %763 = vmatprep.mubr.bf16.mxu0 0
        %764 = vmatmul.mubr.bf16.gmra.mrb[0].mxu0 %v553
        %v765 = vpop.f32.mrb[0].mxu0
        %v766 = vadd.f32 0.0, %v765
        %v767 = vpop.f32.mrb[0].mxu0
        %v768 = vpop.f32.mrb[0].mxu0
        %v769 = vadd.f32 0.0, %v768
        %v770 = vpop.f32.mrb[0].mxu0
        %771 = vmatprep.mubr.bf16.mxu0 0
        %772 = vmatmul.mubr.bf16.gmra.mrb[0].mxu0 %v554
        %v773 = vpop.f32.mrb[0].mxu0
        %v774 = vadd.f32 0.0, %v773
        %v775 = vpop.f32.mrb[0].mxu0
        %v776 = vpop.f32.mrb[0].mxu0
        %v777 = vadd.f32 0.0, %v776
        %v778 = vpop.f32.mrb[0].mxu0
        %779 = vdwg.mxu0
        %v796 = vunpack.c.l.b16 %v389
        %v797 = vunpack.c.l.b16 %v390
        %v798 = vunpack.c.l.b16 %v391
        %v799 = vunpack.c.l.b16 %v392
        %v800 = vunpack.c.l.b16 %v393
        %v801 = vunpack.c.l.b16 %v394
        %v802 = vunpack.c.l.b16 %v395
        %v803 = vunpack.c.l.b16 %v396
        %v804 = vunpack.c.l.b16 %v397
        %v805 = vunpack.c.l.b16 %v398
        %v806 = vunpack.c.l.b16 %v399
        %v807 = vunpack.c.l.b16 %v400
        %v808 = vunpack.c.l.b16 %v401
        %v809 = vunpack.c.l.b16 %v402
        %v810 = vunpack.c.l.b16 %v403
        %v811 = vunpack.c.l.b16 %v404
        %v812 = vpack.c.b16 %v797, %v796
        %v813 = vpack.c.b16 %v799, %v798
        %v814 = vpack.c.b16 %v801, %v800
        %v815 = vpack.c.b16 %v803, %v802
        %v816 = vpack.c.b16 %v805, %v804
        %v817 = vpack.c.b16 %v807, %v806
        %v818 = vpack.c.b16 %v809, %v808
        %v819 = vpack.c.b16 %v811, %v810
        %v838 = vunpack.c.l.b16 %v463
        %v839 = vunpack.c.l.b16 %v464
        %v840 = vunpack.c.l.b16 %v465
        %v841 = vunpack.c.l.b16 %v466
        %v842 = vunpack.c.l.b16 %v467
        %v843 = vunpack.c.l.b16 %v468
        %v844 = vunpack.c.l.b16 %v469
        %v845 = vunpack.c.l.b16 %v470
        %v846 = vunpack.c.l.b16 %v471
        %v847 = vunpack.c.l.b16 %v472
        %v848 = vpack.c.b16 %v839, %v838
        %v849 = vpack.c.b16 %v841, %v840
        %v850 = vpack.c.b16 %v843, %v842
        %v851 = vpack.c.b16 %v845, %v844
        %v852 = vpack.c.b16 %v847, %v846
        %858 = vmatprep.subr.bf16.mxu0 0
        %859 = vmatpush1.bf16.xpose.msra.mxu0 %v848
        %860 = vmatprep.subr.bf16.mxu0 0
        %861 = vmatpush1.bf16.xpose.msra.mxu0 %v849
        %862 = vmatprep.subr.bf16.mxu0 0
        %863 = vmatpush1.bf16.xpose.msra.mxu0 %v850
        %864 = vmatprep.subr.bf16.mxu0 0
        %865 = vmatpush1.bf16.xpose.msra.mxu0 %v851
        %866 = vmatprep.subr.bf16.mxu0 0
        %867 = vmatpush1.bf16.xpose.msra.mxu0 %v852
        %868 = vmatprep.subr.bf16.mxu0 0
        %869 = vmatpush1.bf16.xpose.msra.mxu0 0
        %870 = vmatprep.subr.bf16.mxu0 0
        %871 = vmatpush1.bf16.xpose.msra.mxu0 0
        %872 = vmatprep.subr.bf16.mxu0 0
        %873 = vmatpush1.bf16.xpose.msra.mxu0 0
        %874 = vmatprep.subr.bf16.mxu0 0
        %875 = vmatpush1.bf16.xpose.msra.mxu0 0
        %876 = vmatprep.subr.bf16.mxu0 0
        %877 = vmatpush1.bf16.xpose.msra.mxu0 0
        %878 = vmatprep.subr.bf16.mxu0 0
        %879 = vmatpush1.bf16.xpose.msra.mxu0 0
        %880 = vmatprep.subr.bf16.mxu0 0
        %881 = vmatpush1.bf16.xpose.msra.mxu0 0
        %882 = vmatprep.subr.bf16.mxu0 0
        %883 = vmatpush1.bf16.xpose.msra.mxu0 0
        %884 = vmatprep.subr.bf16.mxu0 0
        %885 = vmatpush1.bf16.xpose.msra.mxu0 0
        %886 = vmatprep.subr.bf16.mxu0 0
        %887 = vmatpush1.bf16.xpose.msra.mxu0 0
        %888 = vmatprep.subr.bf16.mxu0 0
        %889 = vmatpush1.bf16.xpose.msra.mxu0 0
        %890 = vmatprep.mubr.bf16.mxu0 0
        %891 = vmatmul.mubr.bf16.gmra.mrb[0].mxu0 %v812
        %v892 = vpop.f32.mrb[0].mxu0
        %v893 = vadd.f32 0.0, %v892
        %v894 = vpop.f32.mrb[0].mxu0
        %v895 = vpop.f32.mrb[0].mxu0
        %v896 = vadd.f32 0.0, %v895
        %v897 = vpop.f32.mrb[0].mxu0
        %898 = vmatprep.mubr.bf16.mxu0 0
        %899 = vmatmul.mubr.bf16.gmra.mrb[0].mxu0 %v813
        %v900 = vpop.f32.mrb[0].mxu0
        %v901 = vadd.f32 0.0, %v900
        %v902 = vpop.f32.mrb[0].mxu0
        %v903 = vpop.f32.mrb[0].mxu0
        %v904 = vadd.f32 0.0, %v903
        %v905 = vpop.f32.mrb[0].mxu0
        %906 = vmatprep.mubr.bf16.mxu0 0
        %907 = vmatmul.mubr.bf16.gmra.mrb[0].mxu0 %v814
        %v908 = vpop.f32.mrb[0].mxu0
        %v909 = vadd.f32 0.0, %v908
        %v910 = vpop.f32.mrb[0].mxu0
        %v911 = vpop.f32.mrb[0].mxu0
        %v912 = vadd.f32 0.0, %v911
        %v913 = vpop.f32.mrb[0].mxu0
        %914 = vmatprep.mubr.bf16.mxu0 0
        %915 = vmatmul.mubr.bf16.gmra.mrb[0].mxu0 %v815
        %v916 = vpop.f32.mrb[0].mxu0
        %v917 = vadd.f32 0.0, %v916
        %v918 = vpop.f32.mrb[0].mxu0
        %v919 = vpop.f32.mrb[0].mxu0
        %v920 = vadd.f32 0.0, %v919
        %v921 = vpop.f32.mrb[0].mxu0
        %922 = vmatprep.mubr.bf16.mxu0 0
        %923 = vmatmul.mubr.bf16.gmra.mrb[0].mxu0 %v816
        %v924 = vpop.f32.mrb[0].mxu0
        %v925 = vadd.f32 0.0, %v924
        %v926 = vpop.f32.mrb[0].mxu0
        %v927 = vpop.f32.mrb[0].mxu0
        %v928 = vadd.f32 0.0, %v927
        %v929 = vpop.f32.mrb[0].mxu0
        %930 = vmatprep.mubr.bf16.mxu0 0
        %931 = vmatmul.mubr.bf16.gmra.mrb[0].mxu0 %v817
        %v932 = vpop.f32.mrb[0].mxu0
        %v933 = vadd.f32 0.0, %v932
        %v934 = vpop.f32.mrb[0].mxu0
        %v935 = vpop.f32.mrb[0].mxu0
        %v936 = vadd.f32 0.0, %v935
        %v937 = vpop.f32.mrb[0].mxu0
        %938 = vmatprep.mubr.bf16.mxu0 0
        %939 = vmatmul.mubr.bf16.gmra.mrb[0].mxu0 %v818
        %v940 = vpop.f32.mrb[0].mxu0
        %v941 = vadd.f32 0.0, %v940
        %v942 = vpop.f32.mrb[0].mxu0
        %v943 = vpop.f32.mrb[0].mxu0
        %v944 = vadd.f32 0.0, %v943
        %v945 = vpop.f32.mrb[0].mxu0
        %946 = vmatprep.mubr.bf16.mxu0 0
        %947 = vmatmul.mubr.bf16.gmra.mrb[0].mxu0 %v819
        %v948 = vpop.f32.mrb[0].mxu0
        %v949 = vadd.f32 0.0, %v948
        %v950 = vpop.f32.mrb[0].mxu0
        %v951 = vpop.f32.mrb[0].mxu0
        %v952 = vadd.f32 0.0, %v951
        %v953 = vpop.f32.mrb[0].mxu0
        %954 = vdwg.mxu0
        %v965 = vunpack.c.l.b16 %v453
        %v966 = vunpack.c.l.b16 %v454
        %v967 = vunpack.c.l.b16 %v455
        %v968 = vunpack.c.l.b16 %v456
        %v969 = vunpack.c.l.b16 %v457
        %v970 = vunpack.c.l.b16 %v458
        %v971 = vunpack.c.l.b16 %v459
        %v972 = vunpack.c.l.b16 %v460
        %v973 = vunpack.c.l.b16 %v461
        %v974 = vunpack.c.l.b16 %v462
        %v975 = vpack.c.b16 %v966, %v965
        %v976 = vpack.c.b16 %v968, %v967
        %v977 = vpack.c.b16 %v970, %v969
        %v978 = vpack.c.b16 %v972, %v971
        %v979 = vpack.c.b16 %v974, %v973
        %985 = vmatprep.subr.bf16.mxu0 0
        %986 = vmatpush1.bf16.xpose.msra.mxu0 %v975
        %987 = vmatprep.subr.bf16.mxu0 0
        %988 = vmatpush1.bf16.xpose.msra.mxu0 %v976
        %989 = vmatprep.subr.bf16.mxu0 0
        %990 = vmatpush1.bf16.xpose.msra.mxu0 %v977
        %991 = vmatprep.subr.bf16.mxu0 0
        %992 = vmatpush1.bf16.xpose.msra.mxu0 %v978
        %993 = vmatprep.subr.bf16.mxu0 0
        %994 = vmatpush1.bf16.xpose.msra.mxu0 %v979
        %995 = vmatprep.subr.bf16.mxu0 0
        %996 = vmatpush1.bf16.xpose.msra.mxu0 0
        %997 = vmatprep.subr.bf16.mxu0 0
        %998 = vmatpush1.bf16.xpose.msra.mxu0 0
        %999 = vmatprep.subr.bf16.mxu0 0
        %1000 = vmatpush1.bf16.xpose.msra.mxu0 0
        %1001 = vmatprep.subr.bf16.mxu0 0
        %1002 = vmatpush1.bf16.xpose.msra.mxu0 0
        %1003 = vmatprep.subr.bf16.mxu0 0
        %1004 = vmatpush1.bf16.xpose.msra.mxu0 0
        %1005 = vmatprep.subr.bf16.mxu0 0
        %1006 = vmatpush1.bf16.xpose.msra.mxu0 0
        %1007 = vmatprep.subr.bf16.mxu0 0
        %1008 = vmatpush1.bf16.xpose.msra.mxu0 0
        %1009 = vmatprep.subr.bf16.mxu0 0
        %1010 = vmatpush1.bf16.xpose.msra.mxu0 0
        %1011 = vmatprep.subr.bf16.mxu0 0
        %1012 = vmatpush1.bf16.xpose.msra.mxu0 0
        %1013 = vmatprep.subr.bf16.mxu0 0
        %1014 = vmatpush1.bf16.xpose.msra.mxu0 0
        %1015 = vmatprep.subr.bf16.mxu0 0
        %1016 = vmatpush1.bf16.xpose.msra.mxu0 0
        %1017 = vmatprep.mubr.bf16.mxu0 0
        %1018 = vmatmul.mubr.bf16.gmra.mrb[0].mxu0 %v539
        %v1019 = vpop.f32.mrb[0].mxu0
        %v1020 = vadd.f32 0.0, %v1019
        %v1021 = vpop.f32.mrb[0].mxu0
        %v1022 = vpop.f32.mrb[0].mxu0
        %v1023 = vadd.f32 0.0, %v1022
        %v1024 = vpop.f32.mrb[0].mxu0
        %1025 = vmatprep.mubr.bf16.mxu0 0
        %1026 = vmatmul.mubr.bf16.gmra.mrb[0].mxu0 %v540
        %v1027 = vpop.f32.mrb[0].mxu0
        %v1028 = vadd.f32 0.0, %v1027
        %v1029 = vpop.f32.mrb[0].mxu0
        %v1030 = vpop.f32.mrb[0].mxu0
        %v1031 = vadd.f32 0.0, %v1030
        %v1032 = vpop.f32.mrb[0].mxu0
        %1033 = vmatprep.mubr.bf16.mxu0 0
        %1034 = vmatmul.mubr.bf16.gmra.mrb[0].mxu0 %v541
        %v1035 = vpop.f32.mrb[0].mxu0
        %v1036 = vadd.f32 0.0, %v1035
        %v1037 = vpop.f32.mrb[0].mxu0
        %v1038 = vpop.f32.mrb[0].mxu0
        %v1039 = vadd.f32 0.0, %v1038
        %v1040 = vpop.f32.mrb[0].mxu0
        %1041 = vmatprep.mubr.bf16.mxu0 0
        %1042 = vmatmul.mubr.bf16.gmra.mrb[0].mxu0 %v542
        %v1043 = vpop.f32.mrb[0].mxu0
        %v1044 = vadd.f32 0.0, %v1043
        %v1045 = vpop.f32.mrb[0].mxu0
        %v1046 = vpop.f32.mrb[0].mxu0
        %v1047 = vadd.f32 0.0, %v1046
        %v1048 = vpop.f32.mrb[0].mxu0
        %1049 = vmatprep.mubr.bf16.mxu0 0
        %1050 = vmatmul.mubr.bf16.gmra.mrb[0].mxu0 %v543
        %v1051 = vpop.f32.mrb[0].mxu0
        %v1052 = vadd.f32 0.0, %v1051
        %v1053 = vpop.f32.mrb[0].mxu0
        %v1054 = vpop.f32.mrb[0].mxu0
        %v1055 = vadd.f32 0.0, %v1054
        %v1056 = vpop.f32.mrb[0].mxu0
        %1057 = vmatprep.mubr.bf16.mxu0 0
        %1058 = vmatmul.mubr.bf16.gmra.mrb[0].mxu0 %v544
        %v1059 = vpop.f32.mrb[0].mxu0
        %v1060 = vadd.f32 0.0, %v1059
        %v1061 = vpop.f32.mrb[0].mxu0
        %v1062 = vpop.f32.mrb[0].mxu0
        %v1063 = vadd.f32 0.0, %v1062
        %v1064 = vpop.f32.mrb[0].mxu0
        %1065 = vmatprep.mubr.bf16.mxu0 0
        %1066 = vmatmul.mubr.bf16.gmra.mrb[0].mxu0 %v545
        %v1067 = vpop.f32.mrb[0].mxu0
        %v1068 = vadd.f32 0.0, %v1067
        %v1069 = vpop.f32.mrb[0].mxu0
        %v1070 = vpop.f32.mrb[0].mxu0
        %v1071 = vadd.f32 0.0, %v1070
        %v1072 = vpop.f32.mrb[0].mxu0
        %1073 = vmatprep.mubr.bf16.mxu0 0
        %1074 = vmatmul.mubr.bf16.gmra.mrb[0].mxu0 %v546
        %v1075 = vpop.f32.mrb[0].mxu0
        %v1076 = vadd.f32 0.0, %v1075
        %v1077 = vpop.f32.mrb[0].mxu0
        %v1078 = vpop.f32.mrb[0].mxu0
        %v1079 = vadd.f32 0.0, %v1078
        %v1080 = vpop.f32.mrb[0].mxu0
        %1081 = vmatprep.mubr.bf16.mxu0 0
        %1082 = vmatmul.mubr.bf16.gmra.mrb[0].mxu0 %v547
        %v1083 = vpop.f32.mrb[0].mxu0
        %v1084 = vadd.f32 0.0, %v1083
        %v1085 = vpop.f32.mrb[0].mxu0
        %v1086 = vpop.f32.mrb[0].mxu0
        %v1087 = vadd.f32 0.0, %v1086
        %v1088 = vpop.f32.mrb[0].mxu0
        %1089 = vmatprep.mubr.bf16.mxu0 0
        %1090 = vmatmul.mubr.bf16.gmra.mrb[0].mxu0 %v548
        %v1091 = vpop.f32.mrb[0].mxu0
        %v1092 = vadd.f32 0.0, %v1091
        %v1093 = vpop.f32.mrb[0].mxu0
        %v1094 = vpop.f32.mrb[0].mxu0
        %v1095 = vadd.f32 0.0, %v1094
        %v1096 = vpop.f32.mrb[0].mxu0
        %1097 = vmatprep.mubr.bf16.mxu0 0
        %1098 = vmatmul.mubr.bf16.gmra.mrb[0].mxu0 %v549
        %v1099 = vpop.f32.mrb[0].mxu0
        %v1100 = vadd.f32 0.0, %v1099
        %v1101 = vpop.f32.mrb[0].mxu0
        %v1102 = vpop.f32.mrb[0].mxu0
        %v1103 = vadd.f32 0.0, %v1102
        %v1104 = vpop.f32.mrb[0].mxu0
        %1105 = vmatprep.mubr.bf16.mxu0 0
        %1106 = vmatmul.mubr.bf16.gmra.mrb[0].mxu0 %v550
        %v1107 = vpop.f32.mrb[0].mxu0
        %v1108 = vadd.f32 0.0, %v1107
        %v1109 = vpop.f32.mrb[0].mxu0
        %v1110 = vpop.f32.mrb[0].mxu0
        %v1111 = vadd.f32 0.0, %v1110
        %v1112 = vpop.f32.mrb[0].mxu0
        %1113 = vmatprep.mubr.bf16.mxu0 0
        %1114 = vmatmul.mubr.bf16.gmra.mrb[0].mxu0 %v551
        %v1115 = vpop.f32.mrb[0].mxu0
        %v1116 = vadd.f32 0.0, %v1115
        %v1117 = vpop.f32.mrb[0].mxu0
        %v1118 = vpop.f32.mrb[0].mxu0
        %v1119 = vadd.f32 0.0, %v1118
        %v1120 = vpop.f32.mrb[0].mxu0
        %1121 = vmatprep.mubr.bf16.mxu0 0
        %1122 = vmatmul.mubr.bf16.gmra.mrb[0].mxu0 %v552
        %v1123 = vpop.f32.mrb[0].mxu0
        %v1124 = vadd.f32 0.0, %v1123
        %v1125 = vpop.f32.mrb[0].mxu0
        %v1126 = vpop.f32.mrb[0].mxu0
        %v1127 = vadd.f32 0.0, %v1126
        %v1128 = vpop.f32.mrb[0].mxu0
        %1129 = vmatprep.mubr.bf16.mxu0 0
        %1130 = vmatmul.mubr.bf16.gmra.mrb[0].mxu0 %v553
        %v1131 = vpop.f32.mrb[0].mxu0
        %v1132 = vadd.f32 0.0, %v1131
        %v1133 = vpop.f32.mrb[0].mxu0
        %v1134 = vpop.f32.mrb[0].mxu0
        %v1135 = vadd.f32 0.0, %v1134
        %v1136 = vpop.f32.mrb[0].mxu0
        %1137 = vmatprep.mubr.bf16.mxu0 0
        %1138 = vmatmul.mubr.bf16.gmra.mrb[0].mxu0 %v554
        %v1139 = vpop.f32.mrb[0].mxu0
        %v1140 = vadd.f32 0.0, %v1139
        %v1141 = vpop.f32.mrb[0].mxu0
        %v1142 = vpop.f32.mrb[0].mxu0
        %v1143 = vadd.f32 0.0, %v1142
        %v1144 = vpop.f32.mrb[0].mxu0
        %1145 = vdwg.mxu0
        %v1146 = vpack.c.bf16 %v657, %v654
        %v1147 = vpack.c.bf16 %v665, %v662
        %v1148 = vpack.c.bf16 %v673, %v670
        %v1149 = vpack.c.bf16 %v681, %v678
        %v1150 = vpack.c.bf16 %v689, %v686
        %v1151 = vpack.c.bf16 %v697, %v694
        %v1152 = vpack.c.bf16 %v705, %v702
        %v1153 = vpack.c.bf16 %v713, %v710
        %v1154 = vpack.c.bf16 %v721, %v718
        %v1155 = vpack.c.bf16 %v729, %v726
        %v1156 = vpack.c.bf16 %v737, %v734
        %v1157 = vpack.c.bf16 %v745, %v742
        %v1158 = vpack.c.bf16 %v753, %v750
        %v1159 = vpack.c.bf16 %v761, %v758
        %v1160 = vpack.c.bf16 %v769, %v766
        %v1161 = vpack.c.bf16 %v777, %v774
        %1162 = vmatprep.subr.bf16.mxu0 0
        %1163 = vmatpush1.bf16.xpose.msra.mxu0 %v389
        %1164 = vmatprep.subr.bf16.mxu0 0
        %1165 = vmatpush1.bf16.xpose.msra.mxu0 0
        %1166 = vmatprep.subr.bf16.mxu0 0
        %1167 = vmatpush1.bf16.xpose.msra.mxu0 0
        %1168 = vmatprep.subr.bf16.mxu0 0
        %1169 = vmatpush1.bf16.xpose.msra.mxu0 0
        %1170 = vmatprep.subr.bf16.mxu0 0
        %1171 = vmatpush1.bf16.xpose.msra.mxu0 0
        %1172 = vmatprep.subr.bf16.mxu0 0
        %1173 = vmatpush1.bf16.xpose.msra.mxu0 0
        %1174 = vmatprep.subr.bf16.mxu0 0
        %1175 = vmatpush1.bf16.xpose.msra.mxu0 0
        %1176 = vmatprep.subr.bf16.mxu0 0
        %1177 = vmatpush1.bf16.xpose.msra.mxu0 0
        %1178 = vmatprep.subr.bf16.mxu0 0
        %1179 = vmatpush1.bf16.xpose.msra.mxu0 0
        %1180 = vmatprep.subr.bf16.mxu0 0
        %1181 = vmatpush1.bf16.xpose.msra.mxu0 0
        %1182 = vmatprep.subr.bf16.mxu0 0
        %1183 = vmatpush1.bf16.xpose.msra.mxu0 0
        %1184 = vmatprep.subr.bf16.mxu0 0
        %1185 = vmatpush1.bf16.xpose.msra.mxu0 0
        %1186 = vmatprep.subr.bf16.mxu0 0
        %1187 = vmatpush1.bf16.xpose.msra.mxu0 0
        %1188 = vmatprep.subr.bf16.mxu0 0
        %1189 = vmatpush1.bf16.xpose.msra.mxu0 0
        %1190 = vmatprep.subr.bf16.mxu0 0
        %1191 = vmatpush1.bf16.xpose.msra.mxu0 0
        %1192 = vmatprep.subr.bf16.mxu0 0
        %1193 = vmatpush1.bf16.xpose.msra.mxu0 0
        %1194 = vmatprep.mubr.bf16.mxu0 0
        %1195 = vmatmul.mubr.bf16.gmra.mrb[0].mxu0 %v1146
        %v1196 = vpop.f32.mrb[0].mxu0
        %v1197 = vadd.f32 0.0, %v1196
        %v1198 = vpop.f32.mrb[0].mxu0
        %v1199 = vpop.f32.mrb[0].mxu0
        %v1200 = vadd.f32 0.0, %v1199
        %v1201 = vpop.f32.mrb[0].mxu0
        %1202 = vdwg.mxu0
        %1203 = vmatprep.subr.bf16.mxu0 0
        %1204 = vmatpush1.bf16.xpose.msra.mxu0 %v390
        %1205 = vmatprep.subr.bf16.mxu0 0
        %1206 = vmatpush1.bf16.xpose.msra.mxu0 0
        %1207 = vmatprep.subr.bf16.mxu0 0
        %1208 = vmatpush1.bf16.xpose.msra.mxu0 0
        %1209 = vmatprep.subr.bf16.mxu0 0
        %1210 = vmatpush1.bf16.xpose.msra.mxu0 0
        %1211 = vmatprep.subr.bf16.mxu0 0
        %1212 = vmatpush1.bf16.xpose.msra.mxu0 0
        %1213 = vmatprep.subr.bf16.mxu0 0
        %1214 = vmatpush1.bf16.xpose.msra.mxu0 0
        %1215 = vmatprep.subr.bf16.mxu0 0
        %1216 = vmatpush1.bf16.xpose.msra.mxu0 0
        %1217 = vmatprep.subr.bf16.mxu0 0
        %1218 = vmatpush1.bf16.xpose.msra.mxu0 0
        %1219 = vmatprep.subr.bf16.mxu0 0
        %1220 = vmatpush1.bf16.xpose.msra.mxu0 0
        %1221 = vmatprep.subr.bf16.mxu0 0
        %1222 = vmatpush1.bf16.xpose.msra.mxu0 0
        %1223 = vmatprep.subr.bf16.mxu0 0
        %1224 = vmatpush1.bf16.xpose.msra.mxu0 0
        %1225 = vmatprep.subr.bf16.mxu0 0
        %1226 = vmatpush1.bf16.xpose.msra.mxu0 0
        %1227 = vmatprep.subr.bf16.mxu0 0
        %1228 = vmatpush1.bf16.xpose.msra.mxu0 0
        %1229 = vmatprep.subr.bf16.mxu0 0
        %1230 = vmatpush1.bf16.xpose.msra.mxu0 0
        %1231 = vmatprep.subr.bf16.mxu0 0
        %1232 = vmatpush1.bf16.xpose.msra.mxu0 0
        %1233 = vmatprep.subr.bf16.mxu0 0
        %1234 = vmatpush1.bf16.xpose.msra.mxu0 0
        %1235 = vmatprep.mubr.bf16.mxu0 0
        %1236 = vmatmul.mubr.bf16.gmra.mrb[0].mxu0 %v1147
        %v1237 = vpop.f32.mrb[0].mxu0
        %v1238 = vadd.f32 0.0, %v1237
        %v1239 = vpop.f32.mrb[0].mxu0
        %v1240 = vpop.f32.mrb[0].mxu0
        %v1241 = vadd.f32 0.0, %v1240
        %v1242 = vpop.f32.mrb[0].mxu0
        %1243 = vdwg.mxu0
        %1244 = vmatprep.subr.bf16.mxu0 0
        %1245 = vmatpush1.bf16.xpose.msra.mxu0 %v391
        %1246 = vmatprep.subr.bf16.mxu0 0
        %1247 = vmatpush1.bf16.xpose.msra.mxu0 0
        %1248 = vmatprep.subr.bf16.mxu0 0
        %1249 = vmatpush1.bf16.xpose.msra.mxu0 0
        %1250 = vmatprep.subr.bf16.mxu0 0
        %1251 = vmatpush1.bf16.xpose.msra.mxu0 0
        %1252 = vmatprep.subr.bf16.mxu0 0
        %1253 = vmatpush1.bf16.xpose.msra.mxu0 0
        %1254 = vmatprep.subr.bf16.mxu0 0
        %1255 = vmatpush1.bf16.xpose.msra.mxu0 0
        %1256 = vmatprep.subr.bf16.mxu0 0
        %1257 = vmatpush1.bf16.xpose.msra.mxu0 0
        %1258 = vmatprep.subr.bf16.mxu0 0
        %1259 = vmatpush1.bf16.xpose.msra.mxu0 0
        %1260 = vmatprep.subr.bf16.mxu0 0
        %1261 = vmatpush1.bf16.xpose.msra.mxu0 0
        %1262 = vmatprep.subr.bf16.mxu0 0
        %1263 = vmatpush1.bf16.xpose.msra.mxu0 0
        %1264 = vmatprep.subr.bf16.mxu0 0
        %1265 = vmatpush1.bf16.xpose.msra.mxu0 0
        %1266 = vmatprep.subr.bf16.mxu0 0
        %1267 = vmatpush1.bf16.xpose.msra.mxu0 0
        %1268 = vmatprep.subr.bf16.mxu0 0
        %1269 = vmatpush1.bf16.xpose.msra.mxu0 0
        %1270 = vmatprep.subr.bf16.mxu0 0
        %1271 = vmatpush1.bf16.xpose.msra.mxu0 0
        %1272 = vmatprep.subr.bf16.mxu0 0
        %1273 = vmatpush1.bf16.xpose.msra.mxu0 0
        %1274 = vmatprep.subr.bf16.mxu0 0
        %1275 = vmatpush1.bf16.xpose.msra.mxu0 0
        %1276 = vmatprep.mubr.bf16.mxu0 0
        %1277 = vmatmul.mubr.bf16.gmra.mrb[0].mxu0 %v1148
        %v1278 = vpop.f32.mrb[0].mxu0
        %v1279 = vadd.f32 0.0, %v1278
        %v1280 = vpop.f32.mrb[0].mxu0
        %v1281 = vpop.f32.mrb[0].mxu0
        %v1282 = vadd.f32 0.0, %v1281
        %v1283 = vpop.f32.mrb[0].mxu0
        %1284 = vdwg.mxu0
        %1285 = vmatprep.subr.bf16.mxu0 0
        %1286 = vmatpush1.bf16.xpose.msra.mxu0 %v392
        %1287 = vmatprep.subr.bf16.mxu0 0
        %1288 = vmatpush1.bf16.xpose.msra.mxu0 0
        %1289 = vmatprep.subr.bf16.mxu0 0
        %1290 = vmatpush1.bf16.xpose.msra.mxu0 0
        %1291 = vmatprep.subr.bf16.mxu0 0
        %1292 = vmatpush1.bf16.xpose.msra.mxu0 0
        %1293 = vmatprep.subr.bf16.mxu0 0
        %1294 = vmatpush1.bf16.xpose.msra.mxu0 0
        %1295 = vmatprep.subr.bf16.mxu0 0
        %1296 = vmatpush1.bf16.xpose.msra.mxu0 0
        %1297 = vmatprep.subr.bf16.mxu0 0
        %1298 = vmatpush1.bf16.xpose.msra.mxu0 0
        %1299 = vmatprep.subr.bf16.mxu0 0
        %1300 = vmatpush1.bf16.xpose.msra.mxu0 0
        %1301 = vmatprep.subr.bf16.mxu0 0
        %1302 = vmatpush1.bf16.xpose.msra.mxu0 0
        %1303 = vmatprep.subr.bf16.mxu0 0
        %1304 = vmatpush1.bf16.xpose.msra.mxu0 0
        %1305 = vmatprep.subr.bf16.mxu0 0
        %1306 = vmatpush1.bf16.xpose.msra.mxu0 0
        %1307 = vmatprep.subr.bf16.mxu0 0
        %1308 = vmatpush1.bf16.xpose.msra.mxu0 0
        %1309 = vmatprep.subr.bf16.mxu0 0
        %1310 = vmatpush1.bf16.xpose.msra.mxu0 0
        %1311 = vmatprep.subr.bf16.mxu0 0
        %1312 = vmatpush1.bf16.xpose.msra.mxu0 0
        %1313 = vmatprep.subr.bf16.mxu0 0
        %1314 = vmatpush1.bf16.xpose.msra.mxu0 0
        %1315 = vmatprep.subr.bf16.mxu0 0
        %1316 = vmatpush1.bf16.xpose.msra.mxu0 0
        %1317 = vmatprep.mubr.bf16.mxu0 0
        %1318 = vmatmul.mubr.bf16.gmra.mrb[0].mxu0 %v1149
        %v1319 = vpop.f32.mrb[0].mxu0
        %v1320 = vadd.f32 0.0, %v1319
        %v1321 = vpop.f32.mrb[0].mxu0
        %v1322 = vpop.f32.mrb[0].mxu0
        %v1323 = vadd.f32 0.0, %v1322
        %v1324 = vpop.f32.mrb[0].mxu0
        %1325 = vdwg.mxu0
        %1326 = vmatprep.subr.bf16.mxu0 0
        %1327 = vmatpush1.bf16.xpose.msra.mxu0 %v393
        %1328 = vmatprep.subr.bf16.mxu0 0
        %1329 = vmatpush1.bf16.xpose.msra.mxu0 0
        %1330 = vmatprep.subr.bf16.mxu0 0
        %1331 = vmatpush1.bf16.xpose.msra.mxu0 0
        %1332 = vmatprep.subr.bf16.mxu0 0
        %1333 = vmatpush1.bf16.xpose.msra.mxu0 0
        %1334 = vmatprep.subr.bf16.mxu0 0
        %1335 = vmatpush1.bf16.xpose.msra.mxu0 0
        %1336 = vmatprep.subr.bf16.mxu0 0
        %1337 = vmatpush1.bf16.xpose.msra.mxu0 0
        %1338 = vmatprep.subr.bf16.mxu0 0
        %1339 = vmatpush1.bf16.xpose.msra.mxu0 0
        %1340 = vmatprep.subr.bf16.mxu0 0
        %1341 = vmatpush1.bf16.xpose.msra.mxu0 0
        %1342 = vmatprep.subr.bf16.mxu0 0
        %1343 = vmatpush1.bf16.xpose.msra.mxu0 0
        %1344 = vmatprep.subr.bf16.mxu0 0
        %1345 = vmatpush1.bf16.xpose.msra.mxu0 0
        %1346 = vmatprep.subr.bf16.mxu0 0
        %1347 = vmatpush1.bf16.xpose.msra.mxu0 0
        %1348 = vmatprep.subr.bf16.mxu0 0
        %1349 = vmatpush1.bf16.xpose.msra.mxu0 0
        %1350 = vmatprep.subr.bf16.mxu0 0
        %1351 = vmatpush1.bf16.xpose.msra.mxu0 0
        %1352 = vmatprep.subr.bf16.mxu0 0
        %1353 = vmatpush1.bf16.xpose.msra.mxu0 0
        %1354 = vmatprep.subr.bf16.mxu0 0
        %1355 = vmatpush1.bf16.xpose.msra.mxu0 0
        %1356 = vmatprep.subr.bf16.mxu0 0
        %1357 = vmatpush1.bf16.xpose.msra.mxu0 0
        %1358 = vmatprep.mubr.bf16.mxu0 0
        %1359 = vmatmul.mubr.bf16.gmra.mrb[0].mxu0 %v1150
        %v1360 = vpop.f32.mrb[0].mxu0
        %v1361 = vadd.f32 0.0, %v1360
        %v1362 = vpop.f32.mrb[0].mxu0
        %v1363 = vpop.f32.mrb[0].mxu0
        %v1364 = vadd.f32 0.0, %v1363
        %v1365 = vpop.f32.mrb[0].mxu0
        %1366 = vdwg.mxu0
        %1367 = vmatprep.subr.bf16.mxu0 0
        %1368 = vmatpush1.bf16.xpose.msra.mxu0 %v394
        %1369 = vmatprep.subr.bf16.mxu0 0
        %1370 = vmatpush1.bf16.xpose.msra.mxu0 0
        %1371 = vmatprep.subr.bf16.mxu0 0
        %1372 = vmatpush1.bf16.xpose.msra.mxu0 0
        %1373 = vmatprep.subr.bf16.mxu0 0
        %1374 = vmatpush1.bf16.xpose.msra.mxu0 0
        %1375 = vmatprep.subr.bf16.mxu0 0
        %1376 = vmatpush1.bf16.xpose.msra.mxu0 0
        %1377 = vmatprep.subr.bf16.mxu0 0
        %1378 = vmatpush1.bf16.xpose.msra.mxu0 0
        %1379 = vmatprep.subr.bf16.mxu0 0
        %1380 = vmatpush1.bf16.xpose.msra.mxu0 0
        %1381 = vmatprep.subr.bf16.mxu0 0
        %1382 = vmatpush1.bf16.xpose.msra.mxu0 0
        %1383 = vmatprep.subr.bf16.mxu0 0
        %1384 = vmatpush1.bf16.xpose.msra.mxu0 0
        %1385 = vmatprep.subr.bf16.mxu0 0
        %1386 = vmatpush1.bf16.xpose.msra.mxu0 0
        %1387 = vmatprep.subr.bf16.mxu0 0
        %1388 = vmatpush1.bf16.xpose.msra.mxu0 0
        %1389 = vmatprep.subr.bf16.mxu0 0
        %1390 = vmatpush1.bf16.xpose.msra.mxu0 0
        %1391 = vmatprep.subr.bf16.mxu0 0
        %1392 = vmatpush1.bf16.xpose.msra.mxu0 0
        %1393 = vmatprep.subr.bf16.mxu0 0
        %1394 = vmatpush1.bf16.xpose.msra.mxu0 0
        %1395 = vmatprep.subr.bf16.mxu0 0
        %1396 = vmatpush1.bf16.xpose.msra.mxu0 0
        %1397 = vmatprep.subr.bf16.mxu0 0
        %1398 = vmatpush1.bf16.xpose.msra.mxu0 0
        %1399 = vmatprep.mubr.bf16.mxu0 0
        %1400 = vmatmul.mubr.bf16.gmra.mrb[0].mxu0 %v1151
        %v1401 = vpop.f32.mrb[0].mxu0
        %v1402 = vadd.f32 0.0, %v1401
        %v1403 = vpop.f32.mrb[0].mxu0
        %v1404 = vpop.f32.mrb[0].mxu0
        %v1405 = vadd.f32 0.0, %v1404
        %v1406 = vpop.f32.mrb[0].mxu0
        %1407 = vdwg.mxu0
        %1408 = vmatprep.subr.bf16.mxu0 0
        %1409 = vmatpush1.bf16.xpose.msra.mxu0 %v395
        %1410 = vmatprep.subr.bf16.mxu0 0
        %1411 = vmatpush1.bf16.xpose.msra.mxu0 0
        %1412 = vmatprep.subr.bf16.mxu0 0
        %1413 = vmatpush1.bf16.xpose.msra.mxu0 0
        %1414 = vmatprep.subr.bf16.mxu0 0
        %1415 = vmatpush1.bf16.xpose.msra.mxu0 0
        %1416 = vmatprep.subr.bf16.mxu0 0
        %1417 = vmatpush1.bf16.xpose.msra.mxu0 0
        %1418 = vmatprep.subr.bf16.mxu0 0
        %1419 = vmatpush1.bf16.xpose.msra.mxu0 0
        %1420 = vmatprep.subr.bf16.mxu0 0
        %1421 = vmatpush1.bf16.xpose.msra.mxu0 0
        %1422 = vmatprep.subr.bf16.mxu0 0
        %1423 = vmatpush1.bf16.xpose.msra.mxu0 0
        %1424 = vmatprep.subr.bf16.mxu0 0
        %1425 = vmatpush1.bf16.xpose.msra.mxu0 0
        %1426 = vmatprep.subr.bf16.mxu0 0
        %1427 = vmatpush1.bf16.xpose.msra.mxu0 0
        %1428 = vmatprep.subr.bf16.mxu0 0
        %1429 = vmatpush1.bf16.xpose.msra.mxu0 0
        %1430 = vmatprep.subr.bf16.mxu0 0
        %1431 = vmatpush1.bf16.xpose.msra.mxu0 0
        %1432 = vmatprep.subr.bf16.mxu0 0
        %1433 = vmatpush1.bf16.xpose.msra.mxu0 0
        %1434 = vmatprep.subr.bf16.mxu0 0
        %1435 = vmatpush1.bf16.xpose.msra.mxu0 0
        %1436 = vmatprep.subr.bf16.mxu0 0
        %1437 = vmatpush1.bf16.xpose.msra.mxu0 0
        %1438 = vmatprep.subr.bf16.mxu0 0
        %1439 = vmatpush1.bf16.xpose.msra.mxu0 0
        %1440 = vmatprep.mubr.bf16.mxu0 0
        %1441 = vmatmul.mubr.bf16.gmra.mrb[0].mxu0 %v1152
        %v1442 = vpop.f32.mrb[0].mxu0
        %v1443 = vadd.f32 0.0, %v1442
        %v1444 = vpop.f32.mrb[0].mxu0
        %v1445 = vpop.f32.mrb[0].mxu0
        %v1446 = vadd.f32 0.0, %v1445
        %v1447 = vpop.f32.mrb[0].mxu0
        %1448 = vdwg.mxu0
        %1449 = vmatprep.subr.bf16.mxu0 0
        %1450 = vmatpush1.bf16.xpose.msra.mxu0 %v396
        %1451 = vmatprep.subr.bf16.mxu0 0
        %1452 = vmatpush1.bf16.xpose.msra.mxu0 0
        %1453 = vmatprep.subr.bf16.mxu0 0
        %1454 = vmatpush1.bf16.xpose.msra.mxu0 0
        %1455 = vmatprep.subr.bf16.mxu0 0
        %1456 = vmatpush1.bf16.xpose.msra.mxu0 0
        %1457 = vmatprep.subr.bf16.mxu0 0
        %1458 = vmatpush1.bf16.xpose.msra.mxu0 0
        %1459 = vmatprep.subr.bf16.mxu0 0
        %1460 = vmatpush1.bf16.xpose.msra.mxu0 0
        %1461 = vmatprep.subr.bf16.mxu0 0
        %1462 = vmatpush1.bf16.xpose.msra.mxu0 0
        %1463 = vmatprep.subr.bf16.mxu0 0
        %1464 = vmatpush1.bf16.xpose.msra.mxu0 0
        %1465 = vmatprep.subr.bf16.mxu0 0
        %1466 = vmatpush1.bf16.xpose.msra.mxu0 0
        %1467 = vmatprep.subr.bf16.mxu0 0
        %1468 = vmatpush1.bf16.xpose.msra.mxu0 0
        %1469 = vmatprep.subr.bf16.mxu0 0
        %1470 = vmatpush1.bf16.xpose.msra.mxu0 0
        %1471 = vmatprep.subr.bf16.mxu0 0
        %1472 = vmatpush1.bf16.xpose.msra.mxu0 0
        %1473 = vmatprep.subr.bf16.mxu0 0
        %1474 = vmatpush1.bf16.xpose.msra.mxu0 0
        %1475 = vmatprep.subr.bf16.mxu0 0
        %1476 = vmatpush1.bf16.xpose.msra.mxu0 0
        %1477 = vmatprep.subr.bf16.mxu0 0
        %1478 = vmatpush1.bf16.xpose.msra.mxu0 0
        %1479 = vmatprep.subr.bf16.mxu0 0
        %1480 = vmatpush1.bf16.xpose.msra.mxu0 0
        %1481 = vmatprep.mubr.bf16.mxu0 0
        %1482 = vmatmul.mubr.bf16.gmra.mrb[0].mxu0 %v1153
        %v1483 = vpop.f32.mrb[0].mxu0
        %v1484 = vadd.f32 0.0, %v1483
        %v1485 = vpop.f32.mrb[0].mxu0
        %v1486 = vpop.f32.mrb[0].mxu0
        %v1487 = vadd.f32 0.0, %v1486
        %v1488 = vpop.f32.mrb[0].mxu0
        %1489 = vdwg.mxu0
        %1490 = vmatprep.subr.bf16.mxu0 0
        %1491 = vmatpush1.bf16.xpose.msra.mxu0 %v397
        %1492 = vmatprep.subr.bf16.mxu0 0
        %1493 = vmatpush1.bf16.xpose.msra.mxu0 0
        %1494 = vmatprep.subr.bf16.mxu0 0
        %1495 = vmatpush1.bf16.xpose.msra.mxu0 0
        %1496 = vmatprep.subr.bf16.mxu0 0
        %1497 = vmatpush1.bf16.xpose.msra.mxu0 0
        %1498 = vmatprep.subr.bf16.mxu0 0
        %1499 = vmatpush1.bf16.xpose.msra.mxu0 0
        %1500 = vmatprep.subr.bf16.mxu0 0
        %1501 = vmatpush1.bf16.xpose.msra.mxu0 0
        %1502 = vmatprep.subr.bf16.mxu0 0
        %1503 = vmatpush1.bf16.xpose.msra.mxu0 0
        %1504 = vmatprep.subr.bf16.mxu0 0
        %1505 = vmatpush1.bf16.xpose.msra.mxu0 0
        %1506 = vmatprep.subr.bf16.mxu0 0
        %1507 = vmatpush1.bf16.xpose.msra.mxu0 0
        %1508 = vmatprep.subr.bf16.mxu0 0
        %1509 = vmatpush1.bf16.xpose.msra.mxu0 0
        %1510 = vmatprep.subr.bf16.mxu0 0
        %1511 = vmatpush1.bf16.xpose.msra.mxu0 0
        %1512 = vmatprep.subr.bf16.mxu0 0
        %1513 = vmatpush1.bf16.xpose.msra.mxu0 0
        %1514 = vmatprep.subr.bf16.mxu0 0
        %1515 = vmatpush1.bf16.xpose.msra.mxu0 0
        %1516 = vmatprep.subr.bf16.mxu0 0
        %1517 = vmatpush1.bf16.xpose.msra.mxu0 0
        %1518 = vmatprep.subr.bf16.mxu0 0
        %1519 = vmatpush1.bf16.xpose.msra.mxu0 0
        %1520 = vmatprep.subr.bf16.mxu0 0
        %1521 = vmatpush1.bf16.xpose.msra.mxu0 0
        %1522 = vmatprep.mubr.bf16.mxu0 0
        %1523 = vmatmul.mubr.bf16.gmra.mrb[0].mxu0 %v1154
        %v1524 = vpop.f32.mrb[0].mxu0
        %v1525 = vadd.f32 0.0, %v1524
        %v1526 = vpop.f32.mrb[0].mxu0
        %v1527 = vpop.f32.mrb[0].mxu0
        %v1528 = vadd.f32 0.0, %v1527
        %v1529 = vpop.f32.mrb[0].mxu0
        %1530 = vdwg.mxu0
        %1531 = vmatprep.subr.bf16.mxu0 0
        %1532 = vmatpush1.bf16.xpose.msra.mxu0 %v398
        %1533 = vmatprep.subr.bf16.mxu0 0
        %1534 = vmatpush1.bf16.xpose.msra.mxu0 0
        %1535 = vmatprep.subr.bf16.mxu0 0
        %1536 = vmatpush1.bf16.xpose.msra.mxu0 0
        %1537 = vmatprep.subr.bf16.mxu0 0
        %1538 = vmatpush1.bf16.xpose.msra.mxu0 0
        %1539 = vmatprep.subr.bf16.mxu0 0
        %1540 = vmatpush1.bf16.xpose.msra.mxu0 0
        %1541 = vmatprep.subr.bf16.mxu0 0
        %1542 = vmatpush1.bf16.xpose.msra.mxu0 0
        %1543 = vmatprep.subr.bf16.mxu0 0
        %1544 = vmatpush1.bf16.xpose.msra.mxu0 0
        %1545 = vmatprep.subr.bf16.mxu0 0
        %1546 = vmatpush1.bf16.xpose.msra.mxu0 0
        %1547 = vmatprep.subr.bf16.mxu0 0
        %1548 = vmatpush1.bf16.xpose.msra.mxu0 0
        %1549 = vmatprep.subr.bf16.mxu0 0
        %1550 = vmatpush1.bf16.xpose.msra.mxu0 0
        %1551 = vmatprep.subr.bf16.mxu0 0
        %1552 = vmatpush1.bf16.xpose.msra.mxu0 0
        %1553 = vmatprep.subr.bf16.mxu0 0
        %1554 = vmatpush1.bf16.xpose.msra.mxu0 0
        %1555 = vmatprep.subr.bf16.mxu0 0
        %1556 = vmatpush1.bf16.xpose.msra.mxu0 0
        %1557 = vmatprep.subr.bf16.mxu0 0
        %1558 = vmatpush1.bf16.xpose.msra.mxu0 0
        %1559 = vmatprep.subr.bf16.mxu0 0
        %1560 = vmatpush1.bf16.xpose.msra.mxu0 0
        %1561 = vmatprep.subr.bf16.mxu0 0
        %1562 = vmatpush1.bf16.xpose.msra.mxu0 0
        %1563 = vmatprep.mubr.bf16.mxu0 0
        %1564 = vmatmul.mubr.bf16.gmra.mrb[0].mxu0 %v1155
        %v1565 = vpop.f32.mrb[0].mxu0
        %v1566 = vadd.f32 0.0, %v1565
        %v1567 = vpop.f32.mrb[0].mxu0
        %v1568 = vpop.f32.mrb[0].mxu0
        %v1569 = vadd.f32 0.0, %v1568
        %v1570 = vpop.f32.mrb[0].mxu0
        %1571 = vdwg.mxu0
        %1572 = vmatprep.subr.bf16.mxu0 0
        %1573 = vmatpush1.bf16.xpose.msra.mxu0 %v399
        %1574 = vmatprep.subr.bf16.mxu0 0
        %1575 = vmatpush1.bf16.xpose.msra.mxu0 0
        %1576 = vmatprep.subr.bf16.mxu0 0
        %1577 = vmatpush1.bf16.xpose.msra.mxu0 0
        %1578 = vmatprep.subr.bf16.mxu0 0
        %1579 = vmatpush1.bf16.xpose.msra.mxu0 0
        %1580 = vmatprep.subr.bf16.mxu0 0
        %1581 = vmatpush1.bf16.xpose.msra.mxu0 0
        %1582 = vmatprep.subr.bf16.mxu0 0
        %1583 = vmatpush1.bf16.xpose.msra.mxu0 0
        %1584 = vmatprep.subr.bf16.mxu0 0
        %1585 = vmatpush1.bf16.xpose.msra.mxu0 0
        %1586 = vmatprep.subr.bf16.mxu0 0
        %1587 = vmatpush1.bf16.xpose.msra.mxu0 0
        %1588 = vmatprep.subr.bf16.mxu0 0
        %1589 = vmatpush1.bf16.xpose.msra.mxu0 0
        %1590 = vmatprep.subr.bf16.mxu0 0
        %1591 = vmatpush1.bf16.xpose.msra.mxu0 0
        %1592 = vmatprep.subr.bf16.mxu0 0
        %1593 = vmatpush1.bf16.xpose.msra.mxu0 0
        %1594 = vmatprep.subr.bf16.mxu0 0
        %1595 = vmatpush1.bf16.xpose.msra.mxu0 0
        %1596 = vmatprep.subr.bf16.mxu0 0
        %1597 = vmatpush1.bf16.xpose.msra.mxu0 0
        %1598 = vmatprep.subr.bf16.mxu0 0
        %1599 = vmatpush1.bf16.xpose.msra.mxu0 0
        %1600 = vmatprep.subr.bf16.mxu0 0
        %1601 = vmatpush1.bf16.xpose.msra.mxu0 0
        %1602 = vmatprep.subr.bf16.mxu0 0
        %1603 = vmatpush1.bf16.xpose.msra.mxu0 0
        %1604 = vmatprep.mubr.bf16.mxu0 0
        %1605 = vmatmul.mubr.bf16.gmra.mrb[0].mxu0 %v1156
        %v1606 = vpop.f32.mrb[0].mxu0
        %v1607 = vadd.f32 0.0, %v1606
        %v1608 = vpop.f32.mrb[0].mxu0
        %v1609 = vpop.f32.mrb[0].mxu0
        %v1610 = vadd.f32 0.0, %v1609
        %v1611 = vpop.f32.mrb[0].mxu0
        %1612 = vdwg.mxu0
        %1613 = vmatprep.subr.bf16.mxu0 0
        %1614 = vmatpush1.bf16.xpose.msra.mxu0 %v400
        %1615 = vmatprep.subr.bf16.mxu0 0
        %1616 = vmatpush1.bf16.xpose.msra.mxu0 0
        %1617 = vmatprep.subr.bf16.mxu0 0
        %1618 = vmatpush1.bf16.xpose.msra.mxu0 0
        %1619 = vmatprep.subr.bf16.mxu0 0
        %1620 = vmatpush1.bf16.xpose.msra.mxu0 0
        %1621 = vmatprep.subr.bf16.mxu0 0
        %1622 = vmatpush1.bf16.xpose.msra.mxu0 0
        %1623 = vmatprep.subr.bf16.mxu0 0
        %1624 = vmatpush1.bf16.xpose.msra.mxu0 0
        %1625 = vmatprep.subr.bf16.mxu0 0
        %1626 = vmatpush1.bf16.xpose.msra.mxu0 0
        %1627 = vmatprep.subr.bf16.mxu0 0
        %1628 = vmatpush1.bf16.xpose.msra.mxu0 0
        %1629 = vmatprep.subr.bf16.mxu0 0
        %1630 = vmatpush1.bf16.xpose.msra.mxu0 0
        %1631 = vmatprep.subr.bf16.mxu0 0
        %1632 = vmatpush1.bf16.xpose.msra.mxu0 0
        %1633 = vmatprep.subr.bf16.mxu0 0
        %1634 = vmatpush1.bf16.xpose.msra.mxu0 0
        %1635 = vmatprep.subr.bf16.mxu0 0
        %1636 = vmatpush1.bf16.xpose.msra.mxu0 0
        %1637 = vmatprep.subr.bf16.mxu0 0
        %1638 = vmatpush1.bf16.xpose.msra.mxu0 0
        %1639 = vmatprep.subr.bf16.mxu0 0
        %1640 = vmatpush1.bf16.xpose.msra.mxu0 0
        %1641 = vmatprep.subr.bf16.mxu0 0
        %1642 = vmatpush1.bf16.xpose.msra.mxu0 0
        %1643 = vmatprep.subr.bf16.mxu0 0
        %1644 = vmatpush1.bf16.xpose.msra.mxu0 0
        %1645 = vmatprep.mubr.bf16.mxu0 0
        %1646 = vmatmul.mubr.bf16.gmra.mrb[0].mxu0 %v1157
        %v1647 = vpop.f32.mrb[0].mxu0
        %v1648 = vadd.f32 0.0, %v1647
        %v1649 = vpop.f32.mrb[0].mxu0
        %v1650 = vpop.f32.mrb[0].mxu0
        %v1651 = vadd.f32 0.0, %v1650
        %v1652 = vpop.f32.mrb[0].mxu0
        %1653 = vdwg.mxu0
        %1654 = vmatprep.subr.bf16.mxu0 0
        %1655 = vmatpush1.bf16.xpose.msra.mxu0 %v401
        %1656 = vmatprep.subr.bf16.mxu0 0
        %1657 = vmatpush1.bf16.xpose.msra.mxu0 0
        %1658 = vmatprep.subr.bf16.mxu0 0
        %1659 = vmatpush1.bf16.xpose.msra.mxu0 0
        %1660 = vmatprep.subr.bf16.mxu0 0
        %1661 = vmatpush1.bf16.xpose.msra.mxu0 0
        %1662 = vmatprep.subr.bf16.mxu0 0
        %1663 = vmatpush1.bf16.xpose.msra.mxu0 0
        %1664 = vmatprep.subr.bf16.mxu0 0
        %1665 = vmatpush1.bf16.xpose.msra.mxu0 0
        %1666 = vmatprep.subr.bf16.mxu0 0
        %1667 = vmatpush1.bf16.xpose.msra.mxu0 0
        %1668 = vmatprep.subr.bf16.mxu0 0
        %1669 = vmatpush1.bf16.xpose.msra.mxu0 0
        %1670 = vmatprep.subr.bf16.mxu0 0
        %1671 = vmatpush1.bf16.xpose.msra.mxu0 0
        %1672 = vmatprep.subr.bf16.mxu0 0
        %1673 = vmatpush1.bf16.xpose.msra.mxu0 0
        %1674 = vmatprep.subr.bf16.mxu0 0
        %1675 = vmatpush1.bf16.xpose.msra.mxu0 0
        %1676 = vmatprep.subr.bf16.mxu0 0
        %1677 = vmatpush1.bf16.xpose.msra.mxu0 0
        %1678 = vmatprep.subr.bf16.mxu0 0
        %1679 = vmatpush1.bf16.xpose.msra.mxu0 0
        %1680 = vmatprep.subr.bf16.mxu0 0
        %1681 = vmatpush1.bf16.xpose.msra.mxu0 0
        %1682 = vmatprep.subr.bf16.mxu0 0
        %1683 = vmatpush1.bf16.xpose.msra.mxu0 0
        %1684 = vmatprep.subr.bf16.mxu0 0
        %1685 = vmatpush1.bf16.xpose.msra.mxu0 0
        %1686 = vmatprep.mubr.bf16.mxu0 0
        %1687 = vmatmul.mubr.bf16.gmra.mrb[0].mxu0 %v1158
        %v1688 = vpop.f32.mrb[0].mxu0
        %v1689 = vadd.f32 0.0, %v1688
        %v1690 = vpop.f32.mrb[0].mxu0
        %v1691 = vpop.f32.mrb[0].mxu0
        %v1692 = vadd.f32 0.0, %v1691
        %v1693 = vpop.f32.mrb[0].mxu0
        %1694 = vdwg.mxu0
        %1695 = vmatprep.subr.bf16.mxu0 0
        %1696 = vmatpush1.bf16.xpose.msra.mxu0 %v402
        %1697 = vmatprep.subr.bf16.mxu0 0
        %1698 = vmatpush1.bf16.xpose.msra.mxu0 0
        %1699 = vmatprep.subr.bf16.mxu0 0
        %1700 = vmatpush1.bf16.xpose.msra.mxu0 0
        %1701 = vmatprep.subr.bf16.mxu0 0
        %1702 = vmatpush1.bf16.xpose.msra.mxu0 0
        %1703 = vmatprep.subr.bf16.mxu0 0
        %1704 = vmatpush1.bf16.xpose.msra.mxu0 0
        %1705 = vmatprep.subr.bf16.mxu0 0
        %1706 = vmatpush1.bf16.xpose.msra.mxu0 0
        %1707 = vmatprep.subr.bf16.mxu0 0
        %1708 = vmatpush1.bf16.xpose.msra.mxu0 0
        %1709 = vmatprep.subr.bf16.mxu0 0
        %1710 = vmatpush1.bf16.xpose.msra.mxu0 0
        %1711 = vmatprep.subr.bf16.mxu0 0
        %1712 = vmatpush1.bf16.xpose.msra.mxu0 0
        %1713 = vmatprep.subr.bf16.mxu0 0
        %1714 = vmatpush1.bf16.xpose.msra.mxu0 0
        %1715 = vmatprep.subr.bf16.mxu0 0
        %1716 = vmatpush1.bf16.xpose.msra.mxu0 0
        %1717 = vmatprep.subr.bf16.mxu0 0
        %1718 = vmatpush1.bf16.xpose.msra.mxu0 0
        %1719 = vmatprep.subr.bf16.mxu0 0
        %1720 = vmatpush1.bf16.xpose.msra.mxu0 0
        %1721 = vmatprep.subr.bf16.mxu0 0
        %1722 = vmatpush1.bf16.xpose.msra.mxu0 0
        %1723 = vmatprep.subr.bf16.mxu0 0
        %1724 = vmatpush1.bf16.xpose.msra.mxu0 0
        %1725 = vmatprep.subr.bf16.mxu0 0
        %1726 = vmatpush1.bf16.xpose.msra.mxu0 0
        %1727 = vmatprep.mubr.bf16.mxu0 0
        %1728 = vmatmul.mubr.bf16.gmra.mrb[0].mxu0 %v1159
        %v1729 = vpop.f32.mrb[0].mxu0
        %v1730 = vadd.f32 0.0, %v1729
        %v1731 = vpop.f32.mrb[0].mxu0
        %v1732 = vpop.f32.mrb[0].mxu0
        %v1733 = vadd.f32 0.0, %v1732
        %v1734 = vpop.f32.mrb[0].mxu0
        %1735 = vdwg.mxu0
        %1736 = vmatprep.subr.bf16.mxu0 0
        %1737 = vmatpush1.bf16.xpose.msra.mxu0 %v403
        %1738 = vmatprep.subr.bf16.mxu0 0
        %1739 = vmatpush1.bf16.xpose.msra.mxu0 0
        %1740 = vmatprep.subr.bf16.mxu0 0
        %1741 = vmatpush1.bf16.xpose.msra.mxu0 0
        %1742 = vmatprep.subr.bf16.mxu0 0
        %1743 = vmatpush1.bf16.xpose.msra.mxu0 0
        %1744 = vmatprep.subr.bf16.mxu0 0
        %1745 = vmatpush1.bf16.xpose.msra.mxu0 0
        %1746 = vmatprep.subr.bf16.mxu0 0
        %1747 = vmatpush1.bf16.xpose.msra.mxu0 0
        %1748 = vmatprep.subr.bf16.mxu0 0
        %1749 = vmatpush1.bf16.xpose.msra.mxu0 0
        %1750 = vmatprep.subr.bf16.mxu0 0
        %1751 = vmatpush1.bf16.xpose.msra.mxu0 0
        %1752 = vmatprep.subr.bf16.mxu0 0
        %1753 = vmatpush1.bf16.xpose.msra.mxu0 0
        %1754 = vmatprep.subr.bf16.mxu0 0
        %1755 = vmatpush1.bf16.xpose.msra.mxu0 0
        %1756 = vmatprep.subr.bf16.mxu0 0
        %1757 = vmatpush1.bf16.xpose.msra.mxu0 0
        %1758 = vmatprep.subr.bf16.mxu0 0
        %1759 = vmatpush1.bf16.xpose.msra.mxu0 0
        %1760 = vmatprep.subr.bf16.mxu0 0
        %1761 = vmatpush1.bf16.xpose.msra.mxu0 0
        %1762 = vmatprep.subr.bf16.mxu0 0
        %1763 = vmatpush1.bf16.xpose.msra.mxu0 0
        %1764 = vmatprep.subr.bf16.mxu0 0
        %1765 = vmatpush1.bf16.xpose.msra.mxu0 0
        %1766 = vmatprep.subr.bf16.mxu0 0
        %1767 = vmatpush1.bf16.xpose.msra.mxu0 0
        %1768 = vmatprep.mubr.bf16.mxu0 0
        %1769 = vmatmul.mubr.bf16.gmra.mrb[0].mxu0 %v1160
        %v1770 = vpop.f32.mrb[0].mxu0
        %v1771 = vadd.f32 0.0, %v1770
        %v1772 = vpop.f32.mrb[0].mxu0
        %v1773 = vpop.f32.mrb[0].mxu0
        %v1774 = vadd.f32 0.0, %v1773
        %v1775 = vpop.f32.mrb[0].mxu0
        %1776 = vdwg.mxu0
        %1777 = vmatprep.subr.bf16.mxu0 0
        %1778 = vmatpush1.bf16.xpose.msra.mxu0 %v404
        %1779 = vmatprep.subr.bf16.mxu0 0
        %1780 = vmatpush1.bf16.xpose.msra.mxu0 0
        %1781 = vmatprep.subr.bf16.mxu0 0
        %1782 = vmatpush1.bf16.xpose.msra.mxu0 0
        %1783 = vmatprep.subr.bf16.mxu0 0
        %1784 = vmatpush1.bf16.xpose.msra.mxu0 0
        %1785 = vmatprep.subr.bf16.mxu0 0
        %1786 = vmatpush1.bf16.xpose.msra.mxu0 0
        %1787 = vmatprep.subr.bf16.mxu0 0
        %1788 = vmatpush1.bf16.xpose.msra.mxu0 0
        %1789 = vmatprep.subr.bf16.mxu0 0
        %1790 = vmatpush1.bf16.xpose.msra.mxu0 0
        %1791 = vmatprep.subr.bf16.mxu0 0
        %1792 = vmatpush1.bf16.xpose.msra.mxu0 0
        %1793 = vmatprep.subr.bf16.mxu0 0
        %1794 = vmatpush1.bf16.xpose.msra.mxu0 0
        %1795 = vmatprep.subr.bf16.mxu0 0
        %1796 = vmatpush1.bf16.xpose.msra.mxu0 0
        %1797 = vmatprep.subr.bf16.mxu0 0
        %1798 = vmatpush1.bf16.xpose.msra.mxu0 0
        %1799 = vmatprep.subr.bf16.mxu0 0
        %1800 = vmatpush1.bf16.xpose.msra.mxu0 0
        %1801 = vmatprep.subr.bf16.mxu0 0
        %1802 = vmatpush1.bf16.xpose.msra.mxu0 0
        %1803 = vmatprep.subr.bf16.mxu0 0
        %1804 = vmatpush1.bf16.xpose.msra.mxu0 0
        %1805 = vmatprep.subr.bf16.mxu0 0
        %1806 = vmatpush1.bf16.xpose.msra.mxu0 0
        %1807 = vmatprep.subr.bf16.mxu0 0
        %1808 = vmatpush1.bf16.xpose.msra.mxu0 0
        %1809 = vmatprep.mubr.bf16.mxu0 0
        %1810 = vmatmul.mubr.bf16.gmra.mrb[0].mxu0 %v1161
        %v1811 = vpop.f32.mrb[0].mxu0
        %v1812 = vadd.f32 0.0, %v1811
        %v1813 = vpop.f32.mrb[0].mxu0
        %v1814 = vpop.f32.mrb[0].mxu0
        %v1815 = vadd.f32 0.0, %v1814
        %v1816 = vpop.f32.mrb[0].mxu0
        %1817 = vdwg.mxu0
        %v1818 = vtanh.pop %v1197
        %v1819 = vtanh.pop %v1200
        %v1820 = vtanh.pop %v1238
        %v1821 = vtanh.pop %v1241
        %v1822 = vtanh.pop %v1279
        %v1823 = vtanh.pop %v1282
        %v1824 = vtanh.pop %v1320
        %v1825 = vtanh.pop %v1323
        %v1826 = vtanh.pop %v1361
        %v1827 = vtanh.pop %v1364
        %v1828 = vtanh.pop %v1402
        %v1829 = vtanh.pop %v1405
        %v1830 = vtanh.pop %v1443
        %v1831 = vtanh.pop %v1446
        %v1832 = vtanh.pop %v1484
        %v1833 = vtanh.pop %v1487
        %v1834 = vtanh.pop %v1525
        %v1835 = vtanh.pop %v1528
        %v1836 = vtanh.pop %v1566
        %v1837 = vtanh.pop %v1569
        %v1838 = vtanh.pop %v1607
        %v1839 = vtanh.pop %v1610
        %v1840 = vtanh.pop %v1648
        %v1841 = vtanh.pop %v1651
        %v1842 = vtanh.pop %v1689
        %v1843 = vtanh.pop %v1692
        %v1844 = vtanh.pop %v1730
        %v1845 = vtanh.pop %v1733
        %v1846 = vtanh.pop %v1771
        %v1847 = vtanh.pop %v1774
        %v1848 = vtanh.pop %v1812
        %v1849 = vtanh.pop %v1815
        %1850 = vmatprep.subr.bf16.mxu0 0
        %1851 = vmatpush1.bf16.xpose.msra.mxu0 %v1146
        %1852 = vmatprep.subr.bf16.mxu0 0
        %1853 = vmatpush1.bf16.xpose.msra.mxu0 0
        %1854 = vmatprep.subr.bf16.mxu0 0
        %1855 = vmatpush1.bf16.xpose.msra.mxu0 0
        %1856 = vmatprep.subr.bf16.mxu0 0
        %1857 = vmatpush1.bf16.xpose.msra.mxu0 0
        %1858 = vmatprep.subr.bf16.mxu0 0
        %1859 = vmatpush1.bf16.xpose.msra.mxu0 0
        %1860 = vmatprep.subr.bf16.mxu0 0
        %1861 = vmatpush1.bf16.xpose.msra.mxu0 0
        %1862 = vmatprep.subr.bf16.mxu0 0
        %1863 = vmatpush1.bf16.xpose.msra.mxu0 0
        %1864 = vmatprep.subr.bf16.mxu0 0
        %1865 = vmatpush1.bf16.xpose.msra.mxu0 0
        %1866 = vmatprep.subr.bf16.mxu0 0
        %1867 = vmatpush1.bf16.xpose.msra.mxu0 0
        %1868 = vmatprep.subr.bf16.mxu0 0
        %1869 = vmatpush1.bf16.xpose.msra.mxu0 0
        %1870 = vmatprep.subr.bf16.mxu0 0
        %1871 = vmatpush1.bf16.xpose.msra.mxu0 0
        %1872 = vmatprep.subr.bf16.mxu0 0
        %1873 = vmatpush1.bf16.xpose.msra.mxu0 0
        %1874 = vmatprep.subr.bf16.mxu0 0
        %1875 = vmatpush1.bf16.xpose.msra.mxu0 0
        %1876 = vmatprep.subr.bf16.mxu0 0
        %1877 = vmatpush1.bf16.xpose.msra.mxu0 0
        %1878 = vmatprep.subr.bf16.mxu0 0
        %1879 = vmatpush1.bf16.xpose.msra.mxu0 0
        %1880 = vmatprep.subr.bf16.mxu0 0
        %1881 = vmatpush1.bf16.xpose.msra.mxu0 0
        %1882 = vmatprep.mubr.bf16.mxu0 0
        %1883 = vmatmul.mubr.bf16.gmra.mrb[0].mxu0 %v389
        %v1884 = vpop.f32.mrb[0].mxu0
        %v1885 = vadd.f32 0.0, %v1884
        %v1886 = vpop.f32.mrb[0].mxu0
        %v1887 = vpop.f32.mrb[0].mxu0
        %v1888 = vpop.f32.mrb[0].mxu0
        %1889 = vdwg.mxu0
        %1890 = vmatprep.subr.bf16.mxu0 0
        %1891 = vmatpush1.bf16.xpose.msra.mxu0 %v1147
        %1892 = vmatprep.subr.bf16.mxu0 0
        %1893 = vmatpush1.bf16.xpose.msra.mxu0 0
        %1894 = vmatprep.subr.bf16.mxu0 0
        %1895 = vmatpush1.bf16.xpose.msra.mxu0 0
        %1896 = vmatprep.subr.bf16.mxu0 0
        %1897 = vmatpush1.bf16.xpose.msra.mxu0 0
        %1898 = vmatprep.subr.bf16.mxu0 0
        %1899 = vmatpush1.bf16.xpose.msra.mxu0 0
        %1900 = vmatprep.subr.bf16.mxu0 0
        %1901 = vmatpush1.bf16.xpose.msra.mxu0 0
        %1902 = vmatprep.subr.bf16.mxu0 0
        %1903 = vmatpush1.bf16.xpose.msra.mxu0 0
        %1904 = vmatprep.subr.bf16.mxu0 0
        %1905 = vmatpush1.bf16.xpose.msra.mxu0 0
        %1906 = vmatprep.subr.bf16.mxu0 0
        %1907 = vmatpush1.bf16.xpose.msra.mxu0 0
        %1908 = vmatprep.subr.bf16.mxu0 0
        %1909 = vmatpush1.bf16.xpose.msra.mxu0 0
        %1910 = vmatprep.subr.bf16.mxu0 0
        %1911 = vmatpush1.bf16.xpose.msra.mxu0 0
        %1912 = vmatprep.subr.bf16.mxu0 0
        %1913 = vmatpush1.bf16.xpose.msra.mxu0 0
        %1914 = vmatprep.subr.bf16.mxu0 0
        %1915 = vmatpush1.bf16.xpose.msra.mxu0 0
        %1916 = vmatprep.subr.bf16.mxu0 0
        %1917 = vmatpush1.bf16.xpose.msra.mxu0 0
        %1918 = vmatprep.subr.bf16.mxu0 0
        %1919 = vmatpush1.bf16.xpose.msra.mxu0 0
        %1920 = vmatprep.subr.bf16.mxu0 0
        %1921 = vmatpush1.bf16.xpose.msra.mxu0 0
        %1922 = vmatprep.mubr.bf16.mxu0 0
        %1923 = vmatmul.mubr.bf16.gmra.mrb[0].mxu0 %v390
        %v1924 = vpop.f32.mrb[0].mxu0
        %v1925 = vadd.f32 0.0, %v1924
        %v1926 = vpop.f32.mrb[0].mxu0
        %v1927 = vpop.f32.mrb[0].mxu0
        %v1928 = vpop.f32.mrb[0].mxu0
        %1929 = vdwg.mxu0
        %1930 = vmatprep.subr.bf16.mxu0 0
        %1931 = vmatpush1.bf16.xpose.msra.mxu0 %v1148
        %1932 = vmatprep.subr.bf16.mxu0 0
        %1933 = vmatpush1.bf16.xpose.msra.mxu0 0
        %1934 = vmatprep.subr.bf16.mxu0 0
        %1935 = vmatpush1.bf16.xpose.msra.mxu0 0
        %1936 = vmatprep.subr.bf16.mxu0 0
        %1937 = vmatpush1.bf16.xpose.msra.mxu0 0
        %1938 = vmatprep.subr.bf16.mxu0 0
        %1939 = vmatpush1.bf16.xpose.msra.mxu0 0
        %1940 = vmatprep.subr.bf16.mxu0 0
        %1941 = vmatpush1.bf16.xpose.msra.mxu0 0
        %1942 = vmatprep.subr.bf16.mxu0 0
        %1943 = vmatpush1.bf16.xpose.msra.mxu0 0
        %1944 = vmatprep.subr.bf16.mxu0 0
        %1945 = vmatpush1.bf16.xpose.msra.mxu0 0
        %1946 = vmatprep.subr.bf16.mxu0 0
        %1947 = vmatpush1.bf16.xpose.msra.mxu0 0
        %1948 = vmatprep.subr.bf16.mxu0 0
        %1949 = vmatpush1.bf16.xpose.msra.mxu0 0
        %1950 = vmatprep.subr.bf16.mxu0 0
        %1951 = vmatpush1.bf16.xpose.msra.mxu0 0
        %1952 = vmatprep.subr.bf16.mxu0 0
        %1953 = vmatpush1.bf16.xpose.msra.mxu0 0
        %1954 = vmatprep.subr.bf16.mxu0 0
        %1955 = vmatpush1.bf16.xpose.msra.mxu0 0
        %1956 = vmatprep.subr.bf16.mxu0 0
        %1957 = vmatpush1.bf16.xpose.msra.mxu0 0
        %1958 = vmatprep.subr.bf16.mxu0 0
        %1959 = vmatpush1.bf16.xpose.msra.mxu0 0
        %1960 = vmatprep.subr.bf16.mxu0 0
        %1961 = vmatpush1.bf16.xpose.msra.mxu0 0
        %1962 = vmatprep.mubr.bf16.mxu0 0
        %1963 = vmatmul.mubr.bf16.gmra.mrb[0].mxu0 %v391
        %v1964 = vpop.f32.mrb[0].mxu0
        %v1965 = vadd.f32 0.0, %v1964
        %v1966 = vpop.f32.mrb[0].mxu0
        %v1967 = vpop.f32.mrb[0].mxu0
        %v1968 = vpop.f32.mrb[0].mxu0
        %1969 = vdwg.mxu0
        %1970 = vmatprep.subr.bf16.mxu0 0
        %1971 = vmatpush1.bf16.xpose.msra.mxu0 %v1149
        %1972 = vmatprep.subr.bf16.mxu0 0
        %1973 = vmatpush1.bf16.xpose.msra.mxu0 0
        %1974 = vmatprep.subr.bf16.mxu0 0
        %1975 = vmatpush1.bf16.xpose.msra.mxu0 0
        %1976 = vmatprep.subr.bf16.mxu0 0
        %1977 = vmatpush1.bf16.xpose.msra.mxu0 0
        %1978 = vmatprep.subr.bf16.mxu0 0
        %1979 = vmatpush1.bf16.xpose.msra.mxu0 0
        %1980 = vmatprep.subr.bf16.mxu0 0
        %1981 = vmatpush1.bf16.xpose.msra.mxu0 0
        %1982 = vmatprep.subr.bf16.mxu0 0
        %1983 = vmatpush1.bf16.xpose.msra.mxu0 0
        %1984 = vmatprep.subr.bf16.mxu0 0
        %1985 = vmatpush1.bf16.xpose.msra.mxu0 0
        %1986 = vmatprep.subr.bf16.mxu0 0
        %1987 = vmatpush1.bf16.xpose.msra.mxu0 0
        %1988 = vmatprep.subr.bf16.mxu0 0
        %1989 = vmatpush1.bf16.xpose.msra.mxu0 0
        %1990 = vmatprep.subr.bf16.mxu0 0
        %1991 = vmatpush1.bf16.xpose.msra.mxu0 0
        %1992 = vmatprep.subr.bf16.mxu0 0
        %1993 = vmatpush1.bf16.xpose.msra.mxu0 0
        %1994 = vmatprep.subr.bf16.mxu0 0
        %1995 = vmatpush1.bf16.xpose.msra.mxu0 0
        %1996 = vmatprep.subr.bf16.mxu0 0
        %1997 = vmatpush1.bf16.xpose.msra.mxu0 0
        %1998 = vmatprep.subr.bf16.mxu0 0
        %1999 = vmatpush1.bf16.xpose.msra.mxu0 0
        %2000 = vmatprep.subr.bf16.mxu0 0
        %2001 = vmatpush1.bf16.xpose.msra.mxu0 0
        %2002 = vmatprep.mubr.bf16.mxu0 0
        %2003 = vmatmul.mubr.bf16.gmra.mrb[0].mxu0 %v392
        %v2004 = vpop.f32.mrb[0].mxu0
        %v2005 = vadd.f32 0.0, %v2004
        %v2006 = vpop.f32.mrb[0].mxu0
        %v2007 = vpop.f32.mrb[0].mxu0
        %v2008 = vpop.f32.mrb[0].mxu0
        %2009 = vdwg.mxu0
        %2010 = vmatprep.subr.bf16.mxu0 0
        %2011 = vmatpush1.bf16.xpose.msra.mxu0 %v1150
        %2012 = vmatprep.subr.bf16.mxu0 0
        %2013 = vmatpush1.bf16.xpose.msra.mxu0 0
        %2014 = vmatprep.subr.bf16.mxu0 0
        %2015 = vmatpush1.bf16.xpose.msra.mxu0 0
        %2016 = vmatprep.subr.bf16.mxu0 0
        %2017 = vmatpush1.bf16.xpose.msra.mxu0 0
        %2018 = vmatprep.subr.bf16.mxu0 0
        %2019 = vmatpush1.bf16.xpose.msra.mxu0 0
        %2020 = vmatprep.subr.bf16.mxu0 0
        %2021 = vmatpush1.bf16.xpose.msra.mxu0 0
        %2022 = vmatprep.subr.bf16.mxu0 0
        %2023 = vmatpush1.bf16.xpose.msra.mxu0 0
        %2024 = vmatprep.subr.bf16.mxu0 0
        %2025 = vmatpush1.bf16.xpose.msra.mxu0 0
        %2026 = vmatprep.subr.bf16.mxu0 0
        %2027 = vmatpush1.bf16.xpose.msra.mxu0 0
        %2028 = vmatprep.subr.bf16.mxu0 0
        %2029 = vmatpush1.bf16.xpose.msra.mxu0 0
        %2030 = vmatprep.subr.bf16.mxu0 0
        %2031 = vmatpush1.bf16.xpose.msra.mxu0 0
        %2032 = vmatprep.subr.bf16.mxu0 0
        %2033 = vmatpush1.bf16.xpose.msra.mxu0 0
        %2034 = vmatprep.subr.bf16.mxu0 0
        %2035 = vmatpush1.bf16.xpose.msra.mxu0 0
        %2036 = vmatprep.subr.bf16.mxu0 0
        %2037 = vmatpush1.bf16.xpose.msra.mxu0 0
        %2038 = vmatprep.subr.bf16.mxu0 0
        %2039 = vmatpush1.bf16.xpose.msra.mxu0 0
        %2040 = vmatprep.subr.bf16.mxu0 0
        %2041 = vmatpush1.bf16.xpose.msra.mxu0 0
        %2042 = vmatprep.mubr.bf16.mxu0 0
        %2043 = vmatmul.mubr.bf16.gmra.mrb[0].mxu0 %v393
        %v2044 = vpop.f32.mrb[0].mxu0
        %v2045 = vadd.f32 0.0, %v2044
        %v2046 = vpop.f32.mrb[0].mxu0
        %v2047 = vpop.f32.mrb[0].mxu0
        %v2048 = vpop.f32.mrb[0].mxu0
        %2049 = vdwg.mxu0
        %2050 = vmatprep.subr.bf16.mxu0 0
        %2051 = vmatpush1.bf16.xpose.msra.mxu0 %v1151
        %2052 = vmatprep.subr.bf16.mxu0 0
        %2053 = vmatpush1.bf16.xpose.msra.mxu0 0
        %2054 = vmatprep.subr.bf16.mxu0 0
        %2055 = vmatpush1.bf16.xpose.msra.mxu0 0
        %2056 = vmatprep.subr.bf16.mxu0 0
        %2057 = vmatpush1.bf16.xpose.msra.mxu0 0
        %2058 = vmatprep.subr.bf16.mxu0 0
        %2059 = vmatpush1.bf16.xpose.msra.mxu0 0
        %2060 = vmatprep.subr.bf16.mxu0 0
        %2061 = vmatpush1.bf16.xpose.msra.mxu0 0
        %2062 = vmatprep.subr.bf16.mxu0 0
        %2063 = vmatpush1.bf16.xpose.msra.mxu0 0
        %2064 = vmatprep.subr.bf16.mxu0 0
        %2065 = vmatpush1.bf16.xpose.msra.mxu0 0
        %2066 = vmatprep.subr.bf16.mxu0 0
        %2067 = vmatpush1.bf16.xpose.msra.mxu0 0
        %2068 = vmatprep.subr.bf16.mxu0 0
        %2069 = vmatpush1.bf16.xpose.msra.mxu0 0
        %2070 = vmatprep.subr.bf16.mxu0 0
        %2071 = vmatpush1.bf16.xpose.msra.mxu0 0
        %2072 = vmatprep.subr.bf16.mxu0 0
        %2073 = vmatpush1.bf16.xpose.msra.mxu0 0
        %2074 = vmatprep.subr.bf16.mxu0 0
        %2075 = vmatpush1.bf16.xpose.msra.mxu0 0
        %2076 = vmatprep.subr.bf16.mxu0 0
        %2077 = vmatpush1.bf16.xpose.msra.mxu0 0
        %2078 = vmatprep.subr.bf16.mxu0 0
        %2079 = vmatpush1.bf16.xpose.msra.mxu0 0
        %2080 = vmatprep.subr.bf16.mxu0 0
        %2081 = vmatpush1.bf16.xpose.msra.mxu0 0
        %2082 = vmatprep.mubr.bf16.mxu0 0
        %2083 = vmatmul.mubr.bf16.gmra.mrb[0].mxu0 %v394
        %v2084 = vpop.f32.mrb[0].mxu0
        %v2085 = vadd.f32 0.0, %v2084
        %v2086 = vpop.f32.mrb[0].mxu0
        %v2087 = vpop.f32.mrb[0].mxu0
        %v2088 = vpop.f32.mrb[0].mxu0
        %2089 = vdwg.mxu0
        %2090 = vmatprep.subr.bf16.mxu0 0
        %2091 = vmatpush1.bf16.xpose.msra.mxu0 %v1152
        %2092 = vmatprep.subr.bf16.mxu0 0
        %2093 = vmatpush1.bf16.xpose.msra.mxu0 0
        %2094 = vmatprep.subr.bf16.mxu0 0
        %2095 = vmatpush1.bf16.xpose.msra.mxu0 0
        %2096 = vmatprep.subr.bf16.mxu0 0
        %2097 = vmatpush1.bf16.xpose.msra.mxu0 0
        %2098 = vmatprep.subr.bf16.mxu0 0
        %2099 = vmatpush1.bf16.xpose.msra.mxu0 0
        %2100 = vmatprep.subr.bf16.mxu0 0
        %2101 = vmatpush1.bf16.xpose.msra.mxu0 0
        %2102 = vmatprep.subr.bf16.mxu0 0
        %2103 = vmatpush1.bf16.xpose.msra.mxu0 0
        %2104 = vmatprep.subr.bf16.mxu0 0
        %2105 = vmatpush1.bf16.xpose.msra.mxu0 0
        %2106 = vmatprep.subr.bf16.mxu0 0
        %2107 = vmatpush1.bf16.xpose.msra.mxu0 0
        %2108 = vmatprep.subr.bf16.mxu0 0
        %2109 = vmatpush1.bf16.xpose.msra.mxu0 0
        %2110 = vmatprep.subr.bf16.mxu0 0
        %2111 = vmatpush1.bf16.xpose.msra.mxu0 0
        %2112 = vmatprep.subr.bf16.mxu0 0
        %2113 = vmatpush1.bf16.xpose.msra.mxu0 0
        %2114 = vmatprep.subr.bf16.mxu0 0
        %2115 = vmatpush1.bf16.xpose.msra.mxu0 0
        %2116 = vmatprep.subr.bf16.mxu0 0
        %2117 = vmatpush1.bf16.xpose.msra.mxu0 0
        %2118 = vmatprep.subr.bf16.mxu0 0
        %2119 = vmatpush1.bf16.xpose.msra.mxu0 0
        %2120 = vmatprep.subr.bf16.mxu0 0
        %2121 = vmatpush1.bf16.xpose.msra.mxu0 0
        %2122 = vmatprep.mubr.bf16.mxu0 0
        %2123 = vmatmul.mubr.bf16.gmra.mrb[0].mxu0 %v395
        %v2124 = vpop.f32.mrb[0].mxu0
        %v2125 = vadd.f32 0.0, %v2124
        %v2126 = vpop.f32.mrb[0].mxu0
        %v2127 = vpop.f32.mrb[0].mxu0
        %v2128 = vpop.f32.mrb[0].mxu0
        %2129 = vdwg.mxu0
        %2130 = vmatprep.subr.bf16.mxu0 0
        %2131 = vmatpush1.bf16.xpose.msra.mxu0 %v1153
        %2132 = vmatprep.subr.bf16.mxu0 0
        %2133 = vmatpush1.bf16.xpose.msra.mxu0 0
        %2134 = vmatprep.subr.bf16.mxu0 0
        %2135 = vmatpush1.bf16.xpose.msra.mxu0 0
        %2136 = vmatprep.subr.bf16.mxu0 0
        %2137 = vmatpush1.bf16.xpose.msra.mxu0 0
        %2138 = vmatprep.subr.bf16.mxu0 0
        %2139 = vmatpush1.bf16.xpose.msra.mxu0 0
        %2140 = vmatprep.subr.bf16.mxu0 0
        %2141 = vmatpush1.bf16.xpose.msra.mxu0 0
        %2142 = vmatprep.subr.bf16.mxu0 0
        %2143 = vmatpush1.bf16.xpose.msra.mxu0 0
        %2144 = vmatprep.subr.bf16.mxu0 0
        %2145 = vmatpush1.bf16.xpose.msra.mxu0 0
        %2146 = vmatprep.subr.bf16.mxu0 0
        %2147 = vmatpush1.bf16.xpose.msra.mxu0 0
        %2148 = vmatprep.subr.bf16.mxu0 0
        %2149 = vmatpush1.bf16.xpose.msra.mxu0 0
        %2150 = vmatprep.subr.bf16.mxu0 0
        %2151 = vmatpush1.bf16.xpose.msra.mxu0 0
        %2152 = vmatprep.subr.bf16.mxu0 0
        %2153 = vmatpush1.bf16.xpose.msra.mxu0 0
        %2154 = vmatprep.subr.bf16.mxu0 0
        %2155 = vmatpush1.bf16.xpose.msra.mxu0 0
        %2156 = vmatprep.subr.bf16.mxu0 0
        %2157 = vmatpush1.bf16.xpose.msra.mxu0 0
        %2158 = vmatprep.subr.bf16.mxu0 0
        %2159 = vmatpush1.bf16.xpose.msra.mxu0 0
        %2160 = vmatprep.subr.bf16.mxu0 0
        %2161 = vmatpush1.bf16.xpose.msra.mxu0 0
        %2162 = vmatprep.mubr.bf16.mxu0 0
        %2163 = vmatmul.mubr.bf16.gmra.mrb[0].mxu0 %v396
        %v2164 = vpop.f32.mrb[0].mxu0
        %v2165 = vadd.f32 0.0, %v2164
        %v2166 = vpop.f32.mrb[0].mxu0
        %v2167 = vpop.f32.mrb[0].mxu0
        %v2168 = vpop.f32.mrb[0].mxu0
        %2169 = vdwg.mxu0
        %2170 = vmatprep.subr.bf16.mxu0 0
        %2171 = vmatpush1.bf16.xpose.msra.mxu0 %v1154
        %2172 = vmatprep.subr.bf16.mxu0 0
        %2173 = vmatpush1.bf16.xpose.msra.mxu0 0
        %2174 = vmatprep.subr.bf16.mxu0 0
        %2175 = vmatpush1.bf16.xpose.msra.mxu0 0
        %2176 = vmatprep.subr.bf16.mxu0 0
        %2177 = vmatpush1.bf16.xpose.msra.mxu0 0
        %2178 = vmatprep.subr.bf16.mxu0 0
        %2179 = vmatpush1.bf16.xpose.msra.mxu0 0
        %2180 = vmatprep.subr.bf16.mxu0 0
        %2181 = vmatpush1.bf16.xpose.msra.mxu0 0
        %2182 = vmatprep.subr.bf16.mxu0 0
        %2183 = vmatpush1.bf16.xpose.msra.mxu0 0
        %2184 = vmatprep.subr.bf16.mxu0 0
        %2185 = vmatpush1.bf16.xpose.msra.mxu0 0
        %2186 = vmatprep.subr.bf16.mxu0 0
        %2187 = vmatpush1.bf16.xpose.msra.mxu0 0
        %2188 = vmatprep.subr.bf16.mxu0 0
        %2189 = vmatpush1.bf16.xpose.msra.mxu0 0
        %2190 = vmatprep.subr.bf16.mxu0 0
        %2191 = vmatpush1.bf16.xpose.msra.mxu0 0
        %2192 = vmatprep.subr.bf16.mxu0 0
        %2193 = vmatpush1.bf16.xpose.msra.mxu0 0
        %2194 = vmatprep.subr.bf16.mxu0 0
        %2195 = vmatpush1.bf16.xpose.msra.mxu0 0
        %2196 = vmatprep.subr.bf16.mxu0 0
        %2197 = vmatpush1.bf16.xpose.msra.mxu0 0
        %2198 = vmatprep.subr.bf16.mxu0 0
        %2199 = vmatpush1.bf16.xpose.msra.mxu0 0
        %2200 = vmatprep.subr.bf16.mxu0 0
        %2201 = vmatpush1.bf16.xpose.msra.mxu0 0
        %2202 = vmatprep.mubr.bf16.mxu0 0
        %2203 = vmatmul.mubr.bf16.gmra.mrb[0].mxu0 %v397
        %v2204 = vpop.f32.mrb[0].mxu0
        %v2205 = vadd.f32 0.0, %v2204
        %v2206 = vpop.f32.mrb[0].mxu0
        %v2207 = vpop.f32.mrb[0].mxu0
        %v2208 = vpop.f32.mrb[0].mxu0
        %2209 = vdwg.mxu0
        %2210 = vmatprep.subr.bf16.mxu0 0
        %2211 = vmatpush1.bf16.xpose.msra.mxu0 %v1155
        %2212 = vmatprep.subr.bf16.mxu0 0
        %2213 = vmatpush1.bf16.xpose.msra.mxu0 0
        %2214 = vmatprep.subr.bf16.mxu0 0
        %2215 = vmatpush1.bf16.xpose.msra.mxu0 0
        %2216 = vmatprep.subr.bf16.mxu0 0
        %2217 = vmatpush1.bf16.xpose.msra.mxu0 0
        %2218 = vmatprep.subr.bf16.mxu0 0
        %2219 = vmatpush1.bf16.xpose.msra.mxu0 0
        %2220 = vmatprep.subr.bf16.mxu0 0
        %2221 = vmatpush1.bf16.xpose.msra.mxu0 0
        %2222 = vmatprep.subr.bf16.mxu0 0
        %2223 = vmatpush1.bf16.xpose.msra.mxu0 0
        %2224 = vmatprep.subr.bf16.mxu0 0
        %2225 = vmatpush1.bf16.xpose.msra.mxu0 0
        %2226 = vmatprep.subr.bf16.mxu0 0
        %2227 = vmatpush1.bf16.xpose.msra.mxu0 0
        %2228 = vmatprep.subr.bf16.mxu0 0
        %2229 = vmatpush1.bf16.xpose.msra.mxu0 0
        %2230 = vmatprep.subr.bf16.mxu0 0
        %2231 = vmatpush1.bf16.xpose.msra.mxu0 0
        %2232 = vmatprep.subr.bf16.mxu0 0
        %2233 = vmatpush1.bf16.xpose.msra.mxu0 0
        %2234 = vmatprep.subr.bf16.mxu0 0
        %2235 = vmatpush1.bf16.xpose.msra.mxu0 0
        %2236 = vmatprep.subr.bf16.mxu0 0
        %2237 = vmatpush1.bf16.xpose.msra.mxu0 0
        %2238 = vmatprep.subr.bf16.mxu0 0
        %2239 = vmatpush1.bf16.xpose.msra.mxu0 0
        %2240 = vmatprep.subr.bf16.mxu0 0
        %2241 = vmatpush1.bf16.xpose.msra.mxu0 0
        %2242 = vmatprep.mubr.bf16.mxu0 0
        %2243 = vmatmul.mubr.bf16.gmra.mrb[0].mxu0 %v398
        %v2244 = vpop.f32.mrb[0].mxu0
        %v2245 = vadd.f32 0.0, %v2244
        %v2246 = vpop.f32.mrb[0].mxu0
        %v2247 = vpop.f32.mrb[0].mxu0
        %v2248 = vpop.f32.mrb[0].mxu0
        %2249 = vdwg.mxu0
        %2250 = vmatprep.subr.bf16.mxu0 0
        %2251 = vmatpush1.bf16.xpose.msra.mxu0 %v1156
        %2252 = vmatprep.subr.bf16.mxu0 0
        %2253 = vmatpush1.bf16.xpose.msra.mxu0 0
        %2254 = vmatprep.subr.bf16.mxu0 0
        %2255 = vmatpush1.bf16.xpose.msra.mxu0 0
        %2256 = vmatprep.subr.bf16.mxu0 0
        %2257 = vmatpush1.bf16.xpose.msra.mxu0 0
        %2258 = vmatprep.subr.bf16.mxu0 0
        %2259 = vmatpush1.bf16.xpose.msra.mxu0 0
        %2260 = vmatprep.subr.bf16.mxu0 0
        %2261 = vmatpush1.bf16.xpose.msra.mxu0 0
        %2262 = vmatprep.subr.bf16.mxu0 0
        %2263 = vmatpush1.bf16.xpose.msra.mxu0 0
        %2264 = vmatprep.subr.bf16.mxu0 0
        %2265 = vmatpush1.bf16.xpose.msra.mxu0 0
        %2266 = vmatprep.subr.bf16.mxu0 0
        %2267 = vmatpush1.bf16.xpose.msra.mxu0 0
        %2268 = vmatprep.subr.bf16.mxu0 0
        %2269 = vmatpush1.bf16.xpose.msra.mxu0 0
        %2270 = vmatprep.subr.bf16.mxu0 0
        %2271 = vmatpush1.bf16.xpose.msra.mxu0 0
        %2272 = vmatprep.subr.bf16.mxu0 0
        %2273 = vmatpush1.bf16.xpose.msra.mxu0 0
        %2274 = vmatprep.subr.bf16.mxu0 0
        %2275 = vmatpush1.bf16.xpose.msra.mxu0 0
        %2276 = vmatprep.subr.bf16.mxu0 0
        %2277 = vmatpush1.bf16.xpose.msra.mxu0 0
        %2278 = vmatprep.subr.bf16.mxu0 0
        %2279 = vmatpush1.bf16.xpose.msra.mxu0 0
        %2280 = vmatprep.subr.bf16.mxu0 0
        %2281 = vmatpush1.bf16.xpose.msra.mxu0 0
        %2282 = vmatprep.mubr.bf16.mxu0 0
        %2283 = vmatmul.mubr.bf16.gmra.mrb[0].mxu0 %v399
        %v2284 = vpop.f32.mrb[0].mxu0
        %v2285 = vadd.f32 0.0, %v2284
        %v2286 = vpop.f32.mrb[0].mxu0
        %v2287 = vpop.f32.mrb[0].mxu0
        %v2288 = vpop.f32.mrb[0].mxu0
        %2289 = vdwg.mxu0
        %2290 = vmatprep.subr.bf16.mxu0 0
        %2291 = vmatpush1.bf16.xpose.msra.mxu0 %v1157
        %2292 = vmatprep.subr.bf16.mxu0 0
        %2293 = vmatpush1.bf16.xpose.msra.mxu0 0
        %2294 = vmatprep.subr.bf16.mxu0 0
        %2295 = vmatpush1.bf16.xpose.msra.mxu0 0
        %2296 = vmatprep.subr.bf16.mxu0 0
        %2297 = vmatpush1.bf16.xpose.msra.mxu0 0
        %2298 = vmatprep.subr.bf16.mxu0 0
        %2299 = vmatpush1.bf16.xpose.msra.mxu0 0
        %2300 = vmatprep.subr.bf16.mxu0 0
        %2301 = vmatpush1.bf16.xpose.msra.mxu0 0
        %2302 = vmatprep.subr.bf16.mxu0 0
        %2303 = vmatpush1.bf16.xpose.msra.mxu0 0
        %2304 = vmatprep.subr.bf16.mxu0 0
        %2305 = vmatpush1.bf16.xpose.msra.mxu0 0
        %2306 = vmatprep.subr.bf16.mxu0 0
        %2307 = vmatpush1.bf16.xpose.msra.mxu0 0
        %2308 = vmatprep.subr.bf16.mxu0 0
        %2309 = vmatpush1.bf16.xpose.msra.mxu0 0
        %2310 = vmatprep.subr.bf16.mxu0 0
        %2311 = vmatpush1.bf16.xpose.msra.mxu0 0
        %2312 = vmatprep.subr.bf16.mxu0 0
        %2313 = vmatpush1.bf16.xpose.msra.mxu0 0
        %2314 = vmatprep.subr.bf16.mxu0 0
        %2315 = vmatpush1.bf16.xpose.msra.mxu0 0
        %2316 = vmatprep.subr.bf16.mxu0 0
        %2317 = vmatpush1.bf16.xpose.msra.mxu0 0
        %2318 = vmatprep.subr.bf16.mxu0 0
        %2319 = vmatpush1.bf16.xpose.msra.mxu0 0
        %2320 = vmatprep.subr.bf16.mxu0 0
        %2321 = vmatpush1.bf16.xpose.msra.mxu0 0
        %2322 = vmatprep.mubr.bf16.mxu0 0
        %2323 = vmatmul.mubr.bf16.gmra.mrb[0].mxu0 %v400
        %v2324 = vpop.f32.mrb[0].mxu0
        %v2325 = vadd.f32 0.0, %v2324
        %v2326 = vpop.f32.mrb[0].mxu0
        %v2327 = vpop.f32.mrb[0].mxu0
        %v2328 = vpop.f32.mrb[0].mxu0
        %2329 = vdwg.mxu0
        %2330 = vmatprep.subr.bf16.mxu0 0
        %2331 = vmatpush1.bf16.xpose.msra.mxu0 %v1158
        %2332 = vmatprep.subr.bf16.mxu0 0
        %2333 = vmatpush1.bf16.xpose.msra.mxu0 0
        %2334 = vmatprep.subr.bf16.mxu0 0
        %2335 = vmatpush1.bf16.xpose.msra.mxu0 0
        %2336 = vmatprep.subr.bf16.mxu0 0
        %2337 = vmatpush1.bf16.xpose.msra.mxu0 0
        %2338 = vmatprep.subr.bf16.mxu0 0
        %2339 = vmatpush1.bf16.xpose.msra.mxu0 0
        %2340 = vmatprep.subr.bf16.mxu0 0
        %2341 = vmatpush1.bf16.xpose.msra.mxu0 0
        %2342 = vmatprep.subr.bf16.mxu0 0
        %2343 = vmatpush1.bf16.xpose.msra.mxu0 0
        %2344 = vmatprep.subr.bf16.mxu0 0
        %2345 = vmatpush1.bf16.xpose.msra.mxu0 0
        %2346 = vmatprep.subr.bf16.mxu0 0
        %2347 = vmatpush1.bf16.xpose.msra.mxu0 0
        %2348 = vmatprep.subr.bf16.mxu0 0
        %2349 = vmatpush1.bf16.xpose.msra.mxu0 0
        %2350 = vmatprep.subr.bf16.mxu0 0
        %2351 = vmatpush1.bf16.xpose.msra.mxu0 0
        %2352 = vmatprep.subr.bf16.mxu0 0
        %2353 = vmatpush1.bf16.xpose.msra.mxu0 0
        %2354 = vmatprep.subr.bf16.mxu0 0
        %2355 = vmatpush1.bf16.xpose.msra.mxu0 0
        %2356 = vmatprep.subr.bf16.mxu0 0
        %2357 = vmatpush1.bf16.xpose.msra.mxu0 0
        %2358 = vmatprep.subr.bf16.mxu0 0
        %2359 = vmatpush1.bf16.xpose.msra.mxu0 0
        %2360 = vmatprep.subr.bf16.mxu0 0
        %2361 = vmatpush1.bf16.xpose.msra.mxu0 0
        %2362 = vmatprep.mubr.bf16.mxu0 0
        %2363 = vmatmul.mubr.bf16.gmra.mrb[0].mxu0 %v401
        %v2364 = vpop.f32.mrb[0].mxu0
        %v2365 = vadd.f32 0.0, %v2364
        %v2366 = vpop.f32.mrb[0].mxu0
        %v2367 = vpop.f32.mrb[0].mxu0
        %v2368 = vpop.f32.mrb[0].mxu0
        %2369 = vdwg.mxu0
        %2370 = vmatprep.subr.bf16.mxu0 0
        %2371 = vmatpush1.bf16.xpose.msra.mxu0 %v1159
        %2372 = vmatprep.subr.bf16.mxu0 0
        %2373 = vmatpush1.bf16.xpose.msra.mxu0 0
        %2374 = vmatprep.subr.bf16.mxu0 0
        %2375 = vmatpush1.bf16.xpose.msra.mxu0 0
        %2376 = vmatprep.subr.bf16.mxu0 0
        %2377 = vmatpush1.bf16.xpose.msra.mxu0 0
        %2378 = vmatprep.subr.bf16.mxu0 0
        %2379 = vmatpush1.bf16.xpose.msra.mxu0 0
        %2380 = vmatprep.subr.bf16.mxu0 0
        %2381 = vmatpush1.bf16.xpose.msra.mxu0 0
        %2382 = vmatprep.subr.bf16.mxu0 0
        %2383 = vmatpush1.bf16.xpose.msra.mxu0 0
        %2384 = vmatprep.subr.bf16.mxu0 0
        %2385 = vmatpush1.bf16.xpose.msra.mxu0 0
        %2386 = vmatprep.subr.bf16.mxu0 0
        %2387 = vmatpush1.bf16.xpose.msra.mxu0 0
        %2388 = vmatprep.subr.bf16.mxu0 0
        %2389 = vmatpush1.bf16.xpose.msra.mxu0 0
        %2390 = vmatprep.subr.bf16.mxu0 0
        %2391 = vmatpush1.bf16.xpose.msra.mxu0 0
        %2392 = vmatprep.subr.bf16.mxu0 0
        %2393 = vmatpush1.bf16.xpose.msra.mxu0 0
        %2394 = vmatprep.subr.bf16.mxu0 0
        %2395 = vmatpush1.bf16.xpose.msra.mxu0 0
        %2396 = vmatprep.subr.bf16.mxu0 0
        %2397 = vmatpush1.bf16.xpose.msra.mxu0 0
        %2398 = vmatprep.subr.bf16.mxu0 0
        %2399 = vmatpush1.bf16.xpose.msra.mxu0 0
        %2400 = vmatprep.subr.bf16.mxu0 0
        %2401 = vmatpush1.bf16.xpose.msra.mxu0 0
        %2402 = vmatprep.mubr.bf16.mxu0 0
        %2403 = vmatmul.mubr.bf16.gmra.mrb[0].mxu0 %v402
        %v2404 = vpop.f32.mrb[0].mxu0
        %v2405 = vadd.f32 0.0, %v2404
        %v2406 = vpop.f32.mrb[0].mxu0
        %v2407 = vpop.f32.mrb[0].mxu0
        %v2408 = vpop.f32.mrb[0].mxu0
        %2409 = vdwg.mxu0
        %2410 = vmatprep.subr.bf16.mxu0 0
        %2411 = vmatpush1.bf16.xpose.msra.mxu0 %v1160
        %2412 = vmatprep.subr.bf16.mxu0 0
        %2413 = vmatpush1.bf16.xpose.msra.mxu0 0
        %2414 = vmatprep.subr.bf16.mxu0 0
        %2415 = vmatpush1.bf16.xpose.msra.mxu0 0
        %2416 = vmatprep.subr.bf16.mxu0 0
        %2417 = vmatpush1.bf16.xpose.msra.mxu0 0
        %2418 = vmatprep.subr.bf16.mxu0 0
        %2419 = vmatpush1.bf16.xpose.msra.mxu0 0
        %2420 = vmatprep.subr.bf16.mxu0 0
        %2421 = vmatpush1.bf16.xpose.msra.mxu0 0
        %2422 = vmatprep.subr.bf16.mxu0 0
        %2423 = vmatpush1.bf16.xpose.msra.mxu0 0
        %2424 = vmatprep.subr.bf16.mxu0 0
        %2425 = vmatpush1.bf16.xpose.msra.mxu0 0
        %2426 = vmatprep.subr.bf16.mxu0 0
        %2427 = vmatpush1.bf16.xpose.msra.mxu0 0
        %2428 = vmatprep.subr.bf16.mxu0 0
        %2429 = vmatpush1.bf16.xpose.msra.mxu0 0
        %2430 = vmatprep.subr.bf16.mxu0 0
        %2431 = vmatpush1.bf16.xpose.msra.mxu0 0
        %2432 = vmatprep.subr.bf16.mxu0 0
        %2433 = vmatpush1.bf16.xpose.msra.mxu0 0
        %2434 = vmatprep.subr.bf16.mxu0 0
        %2435 = vmatpush1.bf16.xpose.msra.mxu0 0
        %2436 = vmatprep.subr.bf16.mxu0 0
        %2437 = vmatpush1.bf16.xpose.msra.mxu0 0
        %2438 = vmatprep.subr.bf16.mxu0 0
        %2439 = vmatpush1.bf16.xpose.msra.mxu0 0
        %2440 = vmatprep.subr.bf16.mxu0 0
        %2441 = vmatpush1.bf16.xpose.msra.mxu0 0
        %2442 = vmatprep.mubr.bf16.mxu0 0
        %2443 = vmatmul.mubr.bf16.gmra.mrb[0].mxu0 %v403
        %v2444 = vpop.f32.mrb[0].mxu0
        %v2445 = vadd.f32 0.0, %v2444
        %v2446 = vpop.f32.mrb[0].mxu0
        %v2447 = vpop.f32.mrb[0].mxu0
        %v2448 = vpop.f32.mrb[0].mxu0
        %2449 = vdwg.mxu0
        %2450 = vmatprep.subr.bf16.mxu0 0
        %2451 = vmatpush1.bf16.xpose.msra.mxu0 %v1161
        %2452 = vmatprep.subr.bf16.mxu0 0
        %2453 = vmatpush1.bf16.xpose.msra.mxu0 0
        %2454 = vmatprep.subr.bf16.mxu0 0
        %2455 = vmatpush1.bf16.xpose.msra.mxu0 0
        %2456 = vmatprep.subr.bf16.mxu0 0
        %2457 = vmatpush1.bf16.xpose.msra.mxu0 0
        %2458 = vmatprep.subr.bf16.mxu0 0
        %2459 = vmatpush1.bf16.xpose.msra.mxu0 0
        %2460 = vmatprep.subr.bf16.mxu0 0
        %2461 = vmatpush1.bf16.xpose.msra.mxu0 0
        %2462 = vmatprep.subr.bf16.mxu0 0
        %2463 = vmatpush1.bf16.xpose.msra.mxu0 0
        %2464 = vmatprep.subr.bf16.mxu0 0
        %2465 = vmatpush1.bf16.xpose.msra.mxu0 0
        %2466 = vmatprep.subr.bf16.mxu0 0
        %2467 = vmatpush1.bf16.xpose.msra.mxu0 0
        %2468 = vmatprep.subr.bf16.mxu0 0
        %2469 = vmatpush1.bf16.xpose.msra.mxu0 0
        %2470 = vmatprep.subr.bf16.mxu0 0
        %2471 = vmatpush1.bf16.xpose.msra.mxu0 0
        %2472 = vmatprep.subr.bf16.mxu0 0
        %2473 = vmatpush1.bf16.xpose.msra.mxu0 0
        %2474 = vmatprep.subr.bf16.mxu0 0
        %2475 = vmatpush1.bf16.xpose.msra.mxu0 0
        %2476 = vmatprep.subr.bf16.mxu0 0
        %2477 = vmatpush1.bf16.xpose.msra.mxu0 0
        %2478 = vmatprep.subr.bf16.mxu0 0
        %2479 = vmatpush1.bf16.xpose.msra.mxu0 0
        %2480 = vmatprep.subr.bf16.mxu0 0
        %2481 = vmatpush1.bf16.xpose.msra.mxu0 0
        %2482 = vmatprep.mubr.bf16.mxu0 0
        %2483 = vmatmul.mubr.bf16.gmra.mrb[0].mxu0 %v404
        %v2484 = vpop.f32.mrb[0].mxu0
        %v2485 = vadd.f32 0.0, %v2484
        %v2486 = vpop.f32.mrb[0].mxu0
        %v2487 = vpop.f32.mrb[0].mxu0
        %v2488 = vpop.f32.mrb[0].mxu0
        %2489 = vdwg.mxu0
        %v2490 = vtanh.pop %v1885
        %v2491 = vtanh.pop %v1925
        %v2492 = vtanh.pop %v1965
        %v2493 = vtanh.pop %v2005
        %v2494 = vtanh.pop %v2045
        %v2495 = vtanh.pop %v2085
        %v2496 = vtanh.pop %v2125
        %v2497 = vtanh.pop %v2165
        %v2498 = vtanh.pop %v2205
        %v2499 = vtanh.pop %v2245
        %v2500 = vtanh.pop %v2285
        %v2501 = vtanh.pop %v2325
        %v2502 = vtanh.pop %v2365
        %v2503 = vtanh.pop %v2405
        %v2504 = vtanh.pop %v2445
        %v2505 = vtanh.pop %v2485
        %v2506 = vpack.c.bf16 %v1819, %v1818
        %v2507 = vpack.c.bf16 %v1821, %v1820
        %v2508 = vpack.c.bf16 %v1823, %v1822
        %v2509 = vpack.c.bf16 %v1825, %v1824
        %v2510 = vpack.c.bf16 %v1827, %v1826
        %v2511 = vpack.c.bf16 %v1829, %v1828
        %v2512 = vpack.c.bf16 %v1831, %v1830
        %v2513 = vpack.c.bf16 %v1833, %v1832
        %v2514 = vpack.c.bf16 %v1835, %v1834
        %v2515 = vpack.c.bf16 %v1837, %v1836
        %v2516 = vpack.c.bf16 %v1839, %v1838
        %v2517 = vpack.c.bf16 %v1841, %v1840
        %v2518 = vpack.c.bf16 %v1843, %v1842
        %v2519 = vpack.c.bf16 %v1845, %v1844
        %v2520 = vpack.c.bf16 %v1847, %v1846
        %v2521 = vpack.c.bf16 %v1849, %v1848
        %v2522 = vpack.c.bf16 %v2490, %v2490
        %v2523 = vpack.c.bf16 %v2491, %v2491
        %v2524 = vpack.c.bf16 %v2492, %v2492
        %v2525 = vpack.c.bf16 %v2493, %v2493
        %v2526 = vpack.c.bf16 %v2494, %v2494
        %v2527 = vpack.c.bf16 %v2495, %v2495
        %v2528 = vpack.c.bf16 %v2496, %v2496
        %v2529 = vpack.c.bf16 %v2497, %v2497
        %v2530 = vpack.c.bf16 %v2498, %v2498
        %v2531 = vpack.c.bf16 %v2499, %v2499
        %v2532 = vpack.c.bf16 %v2500, %v2500
        %v2533 = vpack.c.bf16 %v2501, %v2501
        %v2534 = vpack.c.bf16 %v2502, %v2502
        %v2535 = vpack.c.bf16 %v2503, %v2503
        %v2536 = vpack.c.bf16 %v2504, %v2504
        %v2537 = vpack.c.bf16 %v2505, %v2505
        %v2538 = vpack.c.bf16 %v1023, %v1020
        %v2539 = vpack.c.bf16 %v1031, %v1028
        %v2540 = vpack.c.bf16 %v1039, %v1036
        %v2541 = vpack.c.bf16 %v1047, %v1044
        %v2542 = vpack.c.bf16 %v1055, %v1052
        %v2543 = vpack.c.bf16 %v1063, %v1060
        %v2544 = vpack.c.bf16 %v1071, %v1068
        %v2545 = vpack.c.bf16 %v1079, %v1076
        %v2546 = vpack.c.bf16 %v1087, %v1084
        %v2547 = vpack.c.bf16 %v1095, %v1092
        %v2548 = vpack.c.bf16 %v1103, %v1100
        %v2549 = vpack.c.bf16 %v1111, %v1108
        %v2550 = vpack.c.bf16 %v1119, %v1116
        %v2551 = vpack.c.bf16 %v1127, %v1124
        %v2552 = vpack.c.bf16 %v1135, %v1132
        %v2553 = vpack.c.bf16 %v1143, %v1140
        %vm2554 = vcmask 130048
        %v2556 = vsel %vm2554, %v2522, 0
        %2558 = vmatprep.subr.bf16.mxu0 0
        %2559 = vmatpush1.bf16.msra.mxu0 %v2538
        %2560 = vmatprep.subr.bf16.mxu0 0
        %2561 = vmatpush1.bf16.msra.mxu0 0
        %2562 = vmatprep.subr.bf16.mxu0 0
        %2563 = vmatpush1.bf16.msra.mxu0 0
        %2564 = vmatprep.subr.bf16.mxu0 0
        %2565 = vmatpush1.bf16.msra.mxu0 0
        %2566 = vmatprep.subr.bf16.mxu0 0
        %2567 = vmatpush1.bf16.msra.mxu0 0
        %2568 = vmatprep.subr.bf16.mxu0 0
        %2569 = vmatpush1.bf16.msra.mxu0 0
        %2570 = vmatprep.subr.bf16.mxu0 0
        %2571 = vmatpush1.bf16.msra.mxu0 0
        %2572 = vmatprep.subr.bf16.mxu0 0
        %2573 = vmatpush1.bf16.msra.mxu0 0
        %2574 = vmatprep.subr.bf16.mxu0 0
        %2575 = vmatpush1.bf16.msra.mxu0 0
        %2576 = vmatprep.subr.bf16.mxu0 0
        %2577 = vmatpush1.bf16.msra.mxu0 0
        %2578 = vmatprep.subr.bf16.mxu0 0
        %2579 = vmatpush1.bf16.msra.mxu0 0
        %2580 = vmatprep.subr.bf16.mxu0 0
        %2581 = vmatpush1.bf16.msra.mxu0 0
        %2582 = vmatprep.subr.bf16.mxu0 0
        %2583 = vmatpush1.bf16.msra.mxu0 0
        %2584 = vmatprep.subr.bf16.mxu0 0
        %2585 = vmatpush1.bf16.msra.mxu0 0
        %2586 = vmatprep.subr.bf16.mxu0 0
        %2587 = vmatpush1.bf16.msra.mxu0 0
        %2588 = vmatprep.subr.bf16.mxu0 0
        %2589 = vmatpush1.bf16.msra.mxu0 0
        %2590 = vmatprep.mubr.bf16.mxu0 0
        %2591 = vmatmul.mubr.bf16.gmra.mrb[0].mxu0 %v2556
        %v2592 = vpop.f32.mrb[0].mxu0
        %v2593 = vadd.f32 0.0, %v2592
        %v2594 = vpop.f32.mrb[0].mxu0
        %v2595 = vpop.f32.mrb[0].mxu0
        %v2596 = vpop.f32.mrb[0].mxu0
        %2597 = vdwg.mxu0
        %v2599 = vsel %vm2554, %v2523, 0
        %2601 = vmatprep.subr.bf16.mxu0 0
        %2602 = vmatpush1.bf16.msra.mxu0 %v2539
        %2603 = vmatprep.subr.bf16.mxu0 0
        %2604 = vmatpush1.bf16.msra.mxu0 0
        %2605 = vmatprep.subr.bf16.mxu0 0
        %2606 = vmatpush1.bf16.msra.mxu0 0
        %2607 = vmatprep.subr.bf16.mxu0 0
        %2608 = vmatpush1.bf16.msra.mxu0 0
        %2609 = vmatprep.subr.bf16.mxu0 0
        %2610 = vmatpush1.bf16.msra.mxu0 0
        %2611 = vmatprep.subr.bf16.mxu0 0
        %2612 = vmatpush1.bf16.msra.mxu0 0
        %2613 = vmatprep.subr.bf16.mxu0 0
        %2614 = vmatpush1.bf16.msra.mxu0 0
        %2615 = vmatprep.subr.bf16.mxu0 0
        %2616 = vmatpush1.bf16.msra.mxu0 0
        %2617 = vmatprep.subr.bf16.mxu0 0
        %2618 = vmatpush1.bf16.msra.mxu0 0
        %2619 = vmatprep.subr.bf16.mxu0 0
        %2620 = vmatpush1.bf16.msra.mxu0 0
        %2621 = vmatprep.subr.bf16.mxu0 0
        %2622 = vmatpush1.bf16.msra.mxu0 0
        %2623 = vmatprep.subr.bf16.mxu0 0
        %2624 = vmatpush1.bf16.msra.mxu0 0
        %2625 = vmatprep.subr.bf16.mxu0 0
        %2626 = vmatpush1.bf16.msra.mxu0 0
        %2627 = vmatprep.subr.bf16.mxu0 0
        %2628 = vmatpush1.bf16.msra.mxu0 0
        %2629 = vmatprep.subr.bf16.mxu0 0
        %2630 = vmatpush1.bf16.msra.mxu0 0
        %2631 = vmatprep.subr.bf16.mxu0 0
        %2632 = vmatpush1.bf16.msra.mxu0 0
        %2633 = vmatprep.mubr.bf16.mxu0 0
        %2634 = vmatmul.mubr.bf16.gmra.mrb[0].mxu0 %v2599
        %v2635 = vpop.f32.mrb[0].mxu0
        %v2636 = vadd.f32 0.0, %v2635
        %v2637 = vpop.f32.mrb[0].mxu0
        %v2638 = vpop.f32.mrb[0].mxu0
        %v2639 = vpop.f32.mrb[0].mxu0
        %2640 = vdwg.mxu0
        %v2642 = vsel %vm2554, %v2524, 0
        %2644 = vmatprep.subr.bf16.mxu0 0
        %2645 = vmatpush1.bf16.msra.mxu0 %v2540
        %2646 = vmatprep.subr.bf16.mxu0 0
        %2647 = vmatpush1.bf16.msra.mxu0 0
        %2648 = vmatprep.subr.bf16.mxu0 0
        %2649 = vmatpush1.bf16.msra.mxu0 0
        %2650 = vmatprep.subr.bf16.mxu0 0
        %2651 = vmatpush1.bf16.msra.mxu0 0
        %2652 = vmatprep.subr.bf16.mxu0 0
        %2653 = vmatpush1.bf16.msra.mxu0 0
        %2654 = vmatprep.subr.bf16.mxu0 0
        %2655 = vmatpush1.bf16.msra.mxu0 0
        %2656 = vmatprep.subr.bf16.mxu0 0
        %2657 = vmatpush1.bf16.msra.mxu0 0
        %2658 = vmatprep.subr.bf16.mxu0 0
        %2659 = vmatpush1.bf16.msra.mxu0 0
        %2660 = vmatprep.subr.bf16.mxu0 0
        %2661 = vmatpush1.bf16.msra.mxu0 0
        %2662 = vmatprep.subr.bf16.mxu0 0
        %2663 = vmatpush1.bf16.msra.mxu0 0
        %2664 = vmatprep.subr.bf16.mxu0 0
        %2665 = vmatpush1.bf16.msra.mxu0 0
        %2666 = vmatprep.subr.bf16.mxu0 0
        %2667 = vmatpush1.bf16.msra.mxu0 0
        %2668 = vmatprep.subr.bf16.mxu0 0
        %2669 = vmatpush1.bf16.msra.mxu0 0
        %2670 = vmatprep.subr.bf16.mxu0 0
        %2671 = vmatpush1.bf16.msra.mxu0 0
        %2672 = vmatprep.subr.bf16.mxu0 0
        %2673 = vmatpush1.bf16.msra.mxu0 0
        %2674 = vmatprep.subr.bf16.mxu0 0
        %2675 = vmatpush1.bf16.msra.mxu0 0
        %2676 = vmatprep.mubr.bf16.mxu0 0
        %2677 = vmatmul.mubr.bf16.gmra.mrb[0].mxu0 %v2642
        %v2678 = vpop.f32.mrb[0].mxu0
        %v2679 = vadd.f32 0.0, %v2678
        %v2680 = vpop.f32.mrb[0].mxu0
        %v2681 = vpop.f32.mrb[0].mxu0
        %v2682 = vpop.f32.mrb[0].mxu0
        %2683 = vdwg.mxu0
        %v2685 = vsel %vm2554, %v2525, 0
        %2687 = vmatprep.subr.bf16.mxu0 0
        %2688 = vmatpush1.bf16.msra.mxu0 %v2541
        %2689 = vmatprep.subr.bf16.mxu0 0
        %2690 = vmatpush1.bf16.msra.mxu0 0
        %2691 = vmatprep.subr.bf16.mxu0 0
        %2692 = vmatpush1.bf16.msra.mxu0 0
        %2693 = vmatprep.subr.bf16.mxu0 0
        %2694 = vmatpush1.bf16.msra.mxu0 0
        %2695 = vmatprep.subr.bf16.mxu0 0
        %2696 = vmatpush1.bf16.msra.mxu0 0
        %2697 = vmatprep.subr.bf16.mxu0 0
        %2698 = vmatpush1.bf16.msra.mxu0 0
        %2699 = vmatprep.subr.bf16.mxu0 0
        %2700 = vmatpush1.bf16.msra.mxu0 0
        %2701 = vmatprep.subr.bf16.mxu0 0
        %2702 = vmatpush1.bf16.msra.mxu0 0
        %2703 = vmatprep.subr.bf16.mxu0 0
        %2704 = vmatpush1.bf16.msra.mxu0 0
        %2705 = vmatprep.subr.bf16.mxu0 0
        %2706 = vmatpush1.bf16.msra.mxu0 0
        %2707 = vmatprep.subr.bf16.mxu0 0
        %2708 = vmatpush1.bf16.msra.mxu0 0
        %2709 = vmatprep.subr.bf16.mxu0 0
        %2710 = vmatpush1.bf16.msra.mxu0 0
        %2711 = vmatprep.subr.bf16.mxu0 0
        %2712 = vmatpush1.bf16.msra.mxu0 0
        %2713 = vmatprep.subr.bf16.mxu0 0
        %2714 = vmatpush1.bf16.msra.mxu0 0
        %2715 = vmatprep.subr.bf16.mxu0 0
        %2716 = vmatpush1.bf16.msra.mxu0 0
        %2717 = vmatprep.subr.bf16.mxu0 0
        %2718 = vmatpush1.bf16.msra.mxu0 0
        %2719 = vmatprep.mubr.bf16.mxu0 0
        %2720 = vmatmul.mubr.bf16.gmra.mrb[0].mxu0 %v2685
        %v2721 = vpop.f32.mrb[0].mxu0
        %v2722 = vadd.f32 0.0, %v2721
        %v2723 = vpop.f32.mrb[0].mxu0
        %v2724 = vpop.f32.mrb[0].mxu0
        %v2725 = vpop.f32.mrb[0].mxu0
        %2726 = vdwg.mxu0
        %v2728 = vsel %vm2554, %v2526, 0
        %2730 = vmatprep.subr.bf16.mxu0 0
        %2731 = vmatpush1.bf16.msra.mxu0 %v2542
        %2732 = vmatprep.subr.bf16.mxu0 0
        %2733 = vmatpush1.bf16.msra.mxu0 0
        %2734 = vmatprep.subr.bf16.mxu0 0
        %2735 = vmatpush1.bf16.msra.mxu0 0
        %2736 = vmatprep.subr.bf16.mxu0 0
        %2737 = vmatpush1.bf16.msra.mxu0 0
        %2738 = vmatprep.subr.bf16.mxu0 0
        %2739 = vmatpush1.bf16.msra.mxu0 0
        %2740 = vmatprep.subr.bf16.mxu0 0
        %2741 = vmatpush1.bf16.msra.mxu0 0
        %2742 = vmatprep.subr.bf16.mxu0 0
        %2743 = vmatpush1.bf16.msra.mxu0 0
        %2744 = vmatprep.subr.bf16.mxu0 0
        %2745 = vmatpush1.bf16.msra.mxu0 0
        %2746 = vmatprep.subr.bf16.mxu0 0
        %2747 = vmatpush1.bf16.msra.mxu0 0
        %2748 = vmatprep.subr.bf16.mxu0 0
        %2749 = vmatpush1.bf16.msra.mxu0 0
        %2750 = vmatprep.subr.bf16.mxu0 0
        %2751 = vmatpush1.bf16.msra.mxu0 0
        %2752 = vmatprep.subr.bf16.mxu0 0
        %2753 = vmatpush1.bf16.msra.mxu0 0
        %2754 = vmatprep.subr.bf16.mxu0 0
        %2755 = vmatpush1.bf16.msra.mxu0 0
        %2756 = vmatprep.subr.bf16.mxu0 0
        %2757 = vmatpush1.bf16.msra.mxu0 0
        %2758 = vmatprep.subr.bf16.mxu0 0
        %2759 = vmatpush1.bf16.msra.mxu0 0
        %2760 = vmatprep.subr.bf16.mxu0 0
        %2761 = vmatpush1.bf16.msra.mxu0 0
        %2762 = vmatprep.mubr.bf16.mxu0 0
        %2763 = vmatmul.mubr.bf16.gmra.mrb[0].mxu0 %v2728
        %v2764 = vpop.f32.mrb[0].mxu0
        %v2765 = vadd.f32 0.0, %v2764
        %v2766 = vpop.f32.mrb[0].mxu0
        %v2767 = vpop.f32.mrb[0].mxu0
        %v2768 = vpop.f32.mrb[0].mxu0
        %2769 = vdwg.mxu0
        %v2771 = vsel %vm2554, %v2527, 0
        %2773 = vmatprep.subr.bf16.mxu0 0
        %2774 = vmatpush1.bf16.msra.mxu0 %v2543
        %2775 = vmatprep.subr.bf16.mxu0 0
        %2776 = vmatpush1.bf16.msra.mxu0 0
        %2777 = vmatprep.subr.bf16.mxu0 0
        %2778 = vmatpush1.bf16.msra.mxu0 0
        %2779 = vmatprep.subr.bf16.mxu0 0
        %2780 = vmatpush1.bf16.msra.mxu0 0
        %2781 = vmatprep.subr.bf16.mxu0 0
        %2782 = vmatpush1.bf16.msra.mxu0 0
        %2783 = vmatprep.subr.bf16.mxu0 0
        %2784 = vmatpush1.bf16.msra.mxu0 0
        %2785 = vmatprep.subr.bf16.mxu0 0
        %2786 = vmatpush1.bf16.msra.mxu0 0
        %2787 = vmatprep.subr.bf16.mxu0 0
        %2788 = vmatpush1.bf16.msra.mxu0 0
        %2789 = vmatprep.subr.bf16.mxu0 0
        %2790 = vmatpush1.bf16.msra.mxu0 0
        %2791 = vmatprep.subr.bf16.mxu0 0
        %2792 = vmatpush1.bf16.msra.mxu0 0
        %2793 = vmatprep.subr.bf16.mxu0 0
        %2794 = vmatpush1.bf16.msra.mxu0 0
        %2795 = vmatprep.subr.bf16.mxu0 0
        %2796 = vmatpush1.bf16.msra.mxu0 0
        %2797 = vmatprep.subr.bf16.mxu0 0
        %2798 = vmatpush1.bf16.msra.mxu0 0
        %2799 = vmatprep.subr.bf16.mxu0 0
        %2800 = vmatpush1.bf16.msra.mxu0 0
        %2801 = vmatprep.subr.bf16.mxu0 0
        %2802 = vmatpush1.bf16.msra.mxu0 0
        %2803 = vmatprep.subr.bf16.mxu0 0
        %2804 = vmatpush1.bf16.msra.mxu0 0
        %2805 = vmatprep.mubr.bf16.mxu0 0
        %2806 = vmatmul.mubr.bf16.gmra.mrb[0].mxu0 %v2771
        %v2807 = vpop.f32.mrb[0].mxu0
        %v2808 = vadd.f32 0.0, %v2807
        %v2809 = vpop.f32.mrb[0].mxu0
        %v2810 = vpop.f32.mrb[0].mxu0
        %v2811 = vpop.f32.mrb[0].mxu0
        %2812 = vdwg.mxu0
        %v2814 = vsel %vm2554, %v2528, 0
        %2816 = vmatprep.subr.bf16.mxu0 0
        %2817 = vmatpush1.bf16.msra.mxu0 %v2544
        %2818 = vmatprep.subr.bf16.mxu0 0
        %2819 = vmatpush1.bf16.msra.mxu0 0
        %2820 = vmatprep.subr.bf16.mxu0 0
        %2821 = vmatpush1.bf16.msra.mxu0 0
        %2822 = vmatprep.subr.bf16.mxu0 0
        %2823 = vmatpush1.bf16.msra.mxu0 0
        %2824 = vmatprep.subr.bf16.mxu0 0
        %2825 = vmatpush1.bf16.msra.mxu0 0
        %2826 = vmatprep.subr.bf16.mxu0 0
        %2827 = vmatpush1.bf16.msra.mxu0 0
        %2828 = vmatprep.subr.bf16.mxu0 0
        %2829 = vmatpush1.bf16.msra.mxu0 0
        %2830 = vmatprep.subr.bf16.mxu0 0
        %2831 = vmatpush1.bf16.msra.mxu0 0
        %2832 = vmatprep.subr.bf16.mxu0 0
        %2833 = vmatpush1.bf16.msra.mxu0 0
        %2834 = vmatprep.subr.bf16.mxu0 0
        %2835 = vmatpush1.bf16.msra.mxu0 0
        %2836 = vmatprep.subr.bf16.mxu0 0
        %2837 = vmatpush1.bf16.msra.mxu0 0
        %2838 = vmatprep.subr.bf16.mxu0 0
        %2839 = vmatpush1.bf16.msra.mxu0 0
        %2840 = vmatprep.subr.bf16.mxu0 0
        %2841 = vmatpush1.bf16.msra.mxu0 0
        %2842 = vmatprep.subr.bf16.mxu0 0
        %2843 = vmatpush1.bf16.msra.mxu0 0
        %2844 = vmatprep.subr.bf16.mxu0 0
        %2845 = vmatpush1.bf16.msra.mxu0 0
        %2846 = vmatprep.subr.bf16.mxu0 0
        %2847 = vmatpush1.bf16.msra.mxu0 0
        %2848 = vmatprep.mubr.bf16.mxu0 0
        %2849 = vmatmul.mubr.bf16.gmra.mrb[0].mxu0 %v2814
        %v2850 = vpop.f32.mrb[0].mxu0
        %v2851 = vadd.f32 0.0, %v2850
        %v2852 = vpop.f32.mrb[0].mxu0
        %v2853 = vpop.f32.mrb[0].mxu0
        %v2854 = vpop.f32.mrb[0].mxu0
        %2855 = vdwg.mxu0
        %v2857 = vsel %vm2554, %v2529, 0
        %2859 = vmatprep.subr.bf16.mxu0 0
        %2860 = vmatpush1.bf16.msra.mxu0 %v2545
        %2861 = vmatprep.subr.bf16.mxu0 0
        %2862 = vmatpush1.bf16.msra.mxu0 0
        %2863 = vmatprep.subr.bf16.mxu0 0
        %2864 = vmatpush1.bf16.msra.mxu0 0
        %2865 = vmatprep.subr.bf16.mxu0 0
        %2866 = vmatpush1.bf16.msra.mxu0 0
        %2867 = vmatprep.subr.bf16.mxu0 0
        %2868 = vmatpush1.bf16.msra.mxu0 0
        %2869 = vmatprep.subr.bf16.mxu0 0
        %2870 = vmatpush1.bf16.msra.mxu0 0
        %2871 = vmatprep.subr.bf16.mxu0 0
        %2872 = vmatpush1.bf16.msra.mxu0 0
        %2873 = vmatprep.subr.bf16.mxu0 0
        %2874 = vmatpush1.bf16.msra.mxu0 0
        %2875 = vmatprep.subr.bf16.mxu0 0
        %2876 = vmatpush1.bf16.msra.mxu0 0
        %2877 = vmatprep.subr.bf16.mxu0 0
        %2878 = vmatpush1.bf16.msra.mxu0 0
        %2879 = vmatprep.subr.bf16.mxu0 0
        %2880 = vmatpush1.bf16.msra.mxu0 0
        %2881 = vmatprep.subr.bf16.mxu0 0
        %2882 = vmatpush1.bf16.msra.mxu0 0
        %2883 = vmatprep.subr.bf16.mxu0 0
        %2884 = vmatpush1.bf16.msra.mxu0 0
        %2885 = vmatprep.subr.bf16.mxu0 0
        %2886 = vmatpush1.bf16.msra.mxu0 0
        %2887 = vmatprep.subr.bf16.mxu0 0
        %2888 = vmatpush1.bf16.msra.mxu0 0
        %2889 = vmatprep.subr.bf16.mxu0 0
        %2890 = vmatpush1.bf16.msra.mxu0 0
        %2891 = vmatprep.mubr.bf16.mxu0 0
        %2892 = vmatmul.mubr.bf16.gmra.mrb[0].mxu0 %v2857
        %v2893 = vpop.f32.mrb[0].mxu0
        %v2894 = vadd.f32 0.0, %v2893
        %v2895 = vpop.f32.mrb[0].mxu0
        %v2896 = vpop.f32.mrb[0].mxu0
        %v2897 = vpop.f32.mrb[0].mxu0
        %2898 = vdwg.mxu0
        %v2900 = vsel %vm2554, %v2530, 0
        %2902 = vmatprep.subr.bf16.mxu0 0
        %2903 = vmatpush1.bf16.msra.mxu0 %v2546
        %2904 = vmatprep.subr.bf16.mxu0 0
        %2905 = vmatpush1.bf16.msra.mxu0 0
        %2906 = vmatprep.subr.bf16.mxu0 0
        %2907 = vmatpush1.bf16.msra.mxu0 0
        %2908 = vmatprep.subr.bf16.mxu0 0
        %2909 = vmatpush1.bf16.msra.mxu0 0
        %2910 = vmatprep.subr.bf16.mxu0 0
        %2911 = vmatpush1.bf16.msra.mxu0 0
        %2912 = vmatprep.subr.bf16.mxu0 0
        %2913 = vmatpush1.bf16.msra.mxu0 0
        %2914 = vmatprep.subr.bf16.mxu0 0
        %2915 = vmatpush1.bf16.msra.mxu0 0
        %2916 = vmatprep.subr.bf16.mxu0 0
        %2917 = vmatpush1.bf16.msra.mxu0 0
        %2918 = vmatprep.subr.bf16.mxu0 0
        %2919 = vmatpush1.bf16.msra.mxu0 0
        %2920 = vmatprep.subr.bf16.mxu0 0
        %2921 = vmatpush1.bf16.msra.mxu0 0
        %2922 = vmatprep.subr.bf16.mxu0 0
        %2923 = vmatpush1.bf16.msra.mxu0 0
        %2924 = vmatprep.subr.bf16.mxu0 0
        %2925 = vmatpush1.bf16.msra.mxu0 0
        %2926 = vmatprep.subr.bf16.mxu0 0
        %2927 = vmatpush1.bf16.msra.mxu0 0
        %2928 = vmatprep.subr.bf16.mxu0 0
        %2929 = vmatpush1.bf16.msra.mxu0 0
        %2930 = vmatprep.subr.bf16.mxu0 0
        %2931 = vmatpush1.bf16.msra.mxu0 0
        %2932 = vmatprep.subr.bf16.mxu0 0
        %2933 = vmatpush1.bf16.msra.mxu0 0
        %2934 = vmatprep.mubr.bf16.mxu0 0
        %2935 = vmatmul.mubr.bf16.gmra.mrb[0].mxu0 %v2900
        %v2936 = vpop.f32.mrb[0].mxu0
        %v2937 = vadd.f32 0.0, %v2936
        %v2938 = vpop.f32.mrb[0].mxu0
        %v2939 = vpop.f32.mrb[0].mxu0
        %v2940 = vpop.f32.mrb[0].mxu0
        %2941 = vdwg.mxu0
        %v2943 = vsel %vm2554, %v2531, 0
        %2945 = vmatprep.subr.bf16.mxu0 0
        %2946 = vmatpush1.bf16.msra.mxu0 %v2547
        %2947 = vmatprep.subr.bf16.mxu0 0
        %2948 = vmatpush1.bf16.msra.mxu0 0
        %2949 = vmatprep.subr.bf16.mxu0 0
        %2950 = vmatpush1.bf16.msra.mxu0 0
        %2951 = vmatprep.subr.bf16.mxu0 0
        %2952 = vmatpush1.bf16.msra.mxu0 0
        %2953 = vmatprep.subr.bf16.mxu0 0
        %2954 = vmatpush1.bf16.msra.mxu0 0
        %2955 = vmatprep.subr.bf16.mxu0 0
        %2956 = vmatpush1.bf16.msra.mxu0 0
        %2957 = vmatprep.subr.bf16.mxu0 0
        %2958 = vmatpush1.bf16.msra.mxu0 0
        %2959 = vmatprep.subr.bf16.mxu0 0
        %2960 = vmatpush1.bf16.msra.mxu0 0
        %2961 = vmatprep.subr.bf16.mxu0 0
        %2962 = vmatpush1.bf16.msra.mxu0 0
        %2963 = vmatprep.subr.bf16.mxu0 0
        %2964 = vmatpush1.bf16.msra.mxu0 0
        %2965 = vmatprep.subr.bf16.mxu0 0
        %2966 = vmatpush1.bf16.msra.mxu0 0
        %2967 = vmatprep.subr.bf16.mxu0 0
        %2968 = vmatpush1.bf16.msra.mxu0 0
        %2969 = vmatprep.subr.bf16.mxu0 0
        %2970 = vmatpush1.bf16.msra.mxu0 0
        %2971 = vmatprep.subr.bf16.mxu0 0
        %2972 = vmatpush1.bf16.msra.mxu0 0
        %2973 = vmatprep.subr.bf16.mxu0 0
        %2974 = vmatpush1.bf16.msra.mxu0 0
        %2975 = vmatprep.subr.bf16.mxu0 0
        %2976 = vmatpush1.bf16.msra.mxu0 0
        %2977 = vmatprep.mubr.bf16.mxu0 0
        %2978 = vmatmul.mubr.bf16.gmra.mrb[0].mxu0 %v2943
        %v2979 = vpop.f32.mrb[0].mxu0
        %v2980 = vadd.f32 0.0, %v2979
        %v2981 = vpop.f32.mrb[0].mxu0
        %v2982 = vpop.f32.mrb[0].mxu0
        %v2983 = vpop.f32.mrb[0].mxu0
        %2984 = vdwg.mxu0
        %v2986 = vsel %vm2554, %v2532, 0
        %2988 = vmatprep.subr.bf16.mxu0 0
        %2989 = vmatpush1.bf16.msra.mxu0 %v2548
        %2990 = vmatprep.subr.bf16.mxu0 0
        %2991 = vmatpush1.bf16.msra.mxu0 0
        %2992 = vmatprep.subr.bf16.mxu0 0
        %2993 = vmatpush1.bf16.msra.mxu0 0
        %2994 = vmatprep.subr.bf16.mxu0 0
        %2995 = vmatpush1.bf16.msra.mxu0 0
        %2996 = vmatprep.subr.bf16.mxu0 0
        %2997 = vmatpush1.bf16.msra.mxu0 0
        %2998 = vmatprep.subr.bf16.mxu0 0
        %2999 = vmatpush1.bf16.msra.mxu0 0
        %3000 = vmatprep.subr.bf16.mxu0 0
        %3001 = vmatpush1.bf16.msra.mxu0 0
        %3002 = vmatprep.subr.bf16.mxu0 0
        %3003 = vmatpush1.bf16.msra.mxu0 0
        %3004 = vmatprep.subr.bf16.mxu0 0
        %3005 = vmatpush1.bf16.msra.mxu0 0
        %3006 = vmatprep.subr.bf16.mxu0 0
        %3007 = vmatpush1.bf16.msra.mxu0 0
        %3008 = vmatprep.subr.bf16.mxu0 0
        %3009 = vmatpush1.bf16.msra.mxu0 0
        %3010 = vmatprep.subr.bf16.mxu0 0
        %3011 = vmatpush1.bf16.msra.mxu0 0
        %3012 = vmatprep.subr.bf16.mxu0 0
        %3013 = vmatpush1.bf16.msra.mxu0 0
        %3014 = vmatprep.subr.bf16.mxu0 0
        %3015 = vmatpush1.bf16.msra.mxu0 0
        %3016 = vmatprep.subr.bf16.mxu0 0
        %3017 = vmatpush1.bf16.msra.mxu0 0
        %3018 = vmatprep.subr.bf16.mxu0 0
        %3019 = vmatpush1.bf16.msra.mxu0 0
        %3020 = vmatprep.mubr.bf16.mxu0 0
        %3021 = vmatmul.mubr.bf16.gmra.mrb[0].mxu0 %v2986
        %v3022 = vpop.f32.mrb[0].mxu0
        %v3023 = vadd.f32 0.0, %v3022
        %v3024 = vpop.f32.mrb[0].mxu0
        %v3025 = vpop.f32.mrb[0].mxu0
        %v3026 = vpop.f32.mrb[0].mxu0
        %3027 = vdwg.mxu0
        %v3029 = vsel %vm2554, %v2533, 0
        %3031 = vmatprep.subr.bf16.mxu0 0
        %3032 = vmatpush1.bf16.msra.mxu0 %v2549
        %3033 = vmatprep.subr.bf16.mxu0 0
        %3034 = vmatpush1.bf16.msra.mxu0 0
        %3035 = vmatprep.subr.bf16.mxu0 0
        %3036 = vmatpush1.bf16.msra.mxu0 0
        %3037 = vmatprep.subr.bf16.mxu0 0
        %3038 = vmatpush1.bf16.msra.mxu0 0
        %3039 = vmatprep.subr.bf16.mxu0 0
        %3040 = vmatpush1.bf16.msra.mxu0 0
        %3041 = vmatprep.subr.bf16.mxu0 0
        %3042 = vmatpush1.bf16.msra.mxu0 0
        %3043 = vmatprep.subr.bf16.mxu0 0
        %3044 = vmatpush1.bf16.msra.mxu0 0
        %3045 = vmatprep.subr.bf16.mxu0 0
        %3046 = vmatpush1.bf16.msra.mxu0 0
        %3047 = vmatprep.subr.bf16.mxu0 0
        %3048 = vmatpush1.bf16.msra.mxu0 0
        %3049 = vmatprep.subr.bf16.mxu0 0
        %3050 = vmatpush1.bf16.msra.mxu0 0
        %3051 = vmatprep.subr.bf16.mxu0 0
        %3052 = vmatpush1.bf16.msra.mxu0 0
        %3053 = vmatprep.subr.bf16.mxu0 0
        %3054 = vmatpush1.bf16.msra.mxu0 0
        %3055 = vmatprep.subr.bf16.mxu0 0
        %3056 = vmatpush1.bf16.msra.mxu0 0
        %3057 = vmatprep.subr.bf16.mxu0 0
        %3058 = vmatpush1.bf16.msra.mxu0 0
        %3059 = vmatprep.subr.bf16.mxu0 0
        %3060 = vmatpush1.bf16.msra.mxu0 0
        %3061 = vmatprep.subr.bf16.mxu0 0
        %3062 = vmatpush1.bf16.msra.mxu0 0
        %3063 = vmatprep.mubr.bf16.mxu0 0
        %3064 = vmatmul.mubr.bf16.gmra.mrb[0].mxu0 %v3029
        %v3065 = vpop.f32.mrb[0].mxu0
        %v3066 = vadd.f32 0.0, %v3065
        %v3067 = vpop.f32.mrb[0].mxu0
        %v3068 = vpop.f32.mrb[0].mxu0
        %v3069 = vpop.f32.mrb[0].mxu0
        %3070 = vdwg.mxu0
        %v3072 = vsel %vm2554, %v2534, 0
        %3074 = vmatprep.subr.bf16.mxu0 0
        %3075 = vmatpush1.bf16.msra.mxu0 %v2550
        %3076 = vmatprep.subr.bf16.mxu0 0
        %3077 = vmatpush1.bf16.msra.mxu0 0
        %3078 = vmatprep.subr.bf16.mxu0 0
        %3079 = vmatpush1.bf16.msra.mxu0 0
        %3080 = vmatprep.subr.bf16.mxu0 0
        %3081 = vmatpush1.bf16.msra.mxu0 0
        %3082 = vmatprep.subr.bf16.mxu0 0
        %3083 = vmatpush1.bf16.msra.mxu0 0
        %3084 = vmatprep.subr.bf16.mxu0 0
        %3085 = vmatpush1.bf16.msra.mxu0 0
        %3086 = vmatprep.subr.bf16.mxu0 0
        %3087 = vmatpush1.bf16.msra.mxu0 0
        %3088 = vmatprep.subr.bf16.mxu0 0
        %3089 = vmatpush1.bf16.msra.mxu0 0
        %3090 = vmatprep.subr.bf16.mxu0 0
        %3091 = vmatpush1.bf16.msra.mxu0 0
        %3092 = vmatprep.subr.bf16.mxu0 0
        %3093 = vmatpush1.bf16.msra.mxu0 0
        %3094 = vmatprep.subr.bf16.mxu0 0
        %3095 = vmatpush1.bf16.msra.mxu0 0
        %3096 = vmatprep.subr.bf16.mxu0 0
        %3097 = vmatpush1.bf16.msra.mxu0 0
        %3098 = vmatprep.subr.bf16.mxu0 0
        %3099 = vmatpush1.bf16.msra.mxu0 0
        %3100 = vmatprep.subr.bf16.mxu0 0
        %3101 = vmatpush1.bf16.msra.mxu0 0
        %3102 = vmatprep.subr.bf16.mxu0 0
        %3103 = vmatpush1.bf16.msra.mxu0 0
        %3104 = vmatprep.subr.bf16.mxu0 0
        %3105 = vmatpush1.bf16.msra.mxu0 0
        %3106 = vmatprep.mubr.bf16.mxu0 0
        %3107 = vmatmul.mubr.bf16.gmra.mrb[0].mxu0 %v3072
        %v3108 = vpop.f32.mrb[0].mxu0
        %v3109 = vadd.f32 0.0, %v3108
        %v3110 = vpop.f32.mrb[0].mxu0
        %v3111 = vpop.f32.mrb[0].mxu0
        %v3112 = vpop.f32.mrb[0].mxu0
        %3113 = vdwg.mxu0
        %v3115 = vsel %vm2554, %v2535, 0
        %3117 = vmatprep.subr.bf16.mxu0 0
        %3118 = vmatpush1.bf16.msra.mxu0 %v2551
        %3119 = vmatprep.subr.bf16.mxu0 0
        %3120 = vmatpush1.bf16.msra.mxu0 0
        %3121 = vmatprep.subr.bf16.mxu0 0
        %3122 = vmatpush1.bf16.msra.mxu0 0
        %3123 = vmatprep.subr.bf16.mxu0 0
        %3124 = vmatpush1.bf16.msra.mxu0 0
        %3125 = vmatprep.subr.bf16.mxu0 0
        %3126 = vmatpush1.bf16.msra.mxu0 0
        %3127 = vmatprep.subr.bf16.mxu0 0
        %3128 = vmatpush1.bf16.msra.mxu0 0
        %3129 = vmatprep.subr.bf16.mxu0 0
        %3130 = vmatpush1.bf16.msra.mxu0 0
        %3131 = vmatprep.subr.bf16.mxu0 0
        %3132 = vmatpush1.bf16.msra.mxu0 0
        %3133 = vmatprep.subr.bf16.mxu0 0
        %3134 = vmatpush1.bf16.msra.mxu0 0
        %3135 = vmatprep.subr.bf16.mxu0 0
        %3136 = vmatpush1.bf16.msra.mxu0 0
        %3137 = vmatprep.subr.bf16.mxu0 0
        %3138 = vmatpush1.bf16.msra.mxu0 0
        %3139 = vmatprep.subr.bf16.mxu0 0
        %3140 = vmatpush1.bf16.msra.mxu0 0
        %3141 = vmatprep.subr.bf16.mxu0 0
        %3142 = vmatpush1.bf16.msra.mxu0 0
        %3143 = vmatprep.subr.bf16.mxu0 0
        %3144 = vmatpush1.bf16.msra.mxu0 0
        %3145 = vmatprep.subr.bf16.mxu0 0
        %3146 = vmatpush1.bf16.msra.mxu0 0
        %3147 = vmatprep.subr.bf16.mxu0 0
        %3148 = vmatpush1.bf16.msra.mxu0 0
        %3149 = vmatprep.mubr.bf16.mxu0 0
        %3150 = vmatmul.mubr.bf16.gmra.mrb[0].mxu0 %v3115
        %v3151 = vpop.f32.mrb[0].mxu0
        %v3152 = vadd.f32 0.0, %v3151
        %v3153 = vpop.f32.mrb[0].mxu0
        %v3154 = vpop.f32.mrb[0].mxu0
        %v3155 = vpop.f32.mrb[0].mxu0
        %3156 = vdwg.mxu0
        %v3158 = vsel %vm2554, %v2536, 0
        %3160 = vmatprep.subr.bf16.mxu0 0
        %3161 = vmatpush1.bf16.msra.mxu0 %v2552
        %3162 = vmatprep.subr.bf16.mxu0 0
        %3163 = vmatpush1.bf16.msra.mxu0 0
        %3164 = vmatprep.subr.bf16.mxu0 0
        %3165 = vmatpush1.bf16.msra.mxu0 0
        %3166 = vmatprep.subr.bf16.mxu0 0
        %3167 = vmatpush1.bf16.msra.mxu0 0
        %3168 = vmatprep.subr.bf16.mxu0 0
        %3169 = vmatpush1.bf16.msra.mxu0 0
        %3170 = vmatprep.subr.bf16.mxu0 0
        %3171 = vmatpush1.bf16.msra.mxu0 0
        %3172 = vmatprep.subr.bf16.mxu0 0
        %3173 = vmatpush1.bf16.msra.mxu0 0
        %3174 = vmatprep.subr.bf16.mxu0 0
        %3175 = vmatpush1.bf16.msra.mxu0 0
        %3176 = vmatprep.subr.bf16.mxu0 0
        %3177 = vmatpush1.bf16.msra.mxu0 0
        %3178 = vmatprep.subr.bf16.mxu0 0
        %3179 = vmatpush1.bf16.msra.mxu0 0
        %3180 = vmatprep.subr.bf16.mxu0 0
        %3181 = vmatpush1.bf16.msra.mxu0 0
        %3182 = vmatprep.subr.bf16.mxu0 0
        %3183 = vmatpush1.bf16.msra.mxu0 0
        %3184 = vmatprep.subr.bf16.mxu0 0
        %3185 = vmatpush1.bf16.msra.mxu0 0
        %3186 = vmatprep.subr.bf16.mxu0 0
        %3187 = vmatpush1.bf16.msra.mxu0 0
        %3188 = vmatprep.subr.bf16.mxu0 0
        %3189 = vmatpush1.bf16.msra.mxu0 0
        %3190 = vmatprep.subr.bf16.mxu0 0
        %3191 = vmatpush1.bf16.msra.mxu0 0
        %3192 = vmatprep.mubr.bf16.mxu0 0
        %3193 = vmatmul.mubr.bf16.gmra.mrb[0].mxu0 %v3158
        %v3194 = vpop.f32.mrb[0].mxu0
        %v3195 = vadd.f32 0.0, %v3194
        %v3196 = vpop.f32.mrb[0].mxu0
        %v3197 = vpop.f32.mrb[0].mxu0
        %v3198 = vpop.f32.mrb[0].mxu0
        %3199 = vdwg.mxu0
        %v3201 = vsel %vm2554, %v2537, 0
        %3203 = vmatprep.subr.bf16.mxu0 0
        %3204 = vmatpush1.bf16.msra.mxu0 %v2553
        %3205 = vmatprep.subr.bf16.mxu0 0
        %3206 = vmatpush1.bf16.msra.mxu0 0
        %3207 = vmatprep.subr.bf16.mxu0 0
        %3208 = vmatpush1.bf16.msra.mxu0 0
        %3209 = vmatprep.subr.bf16.mxu0 0
        %3210 = vmatpush1.bf16.msra.mxu0 0
        %3211 = vmatprep.subr.bf16.mxu0 0
        %3212 = vmatpush1.bf16.msra.mxu0 0
        %3213 = vmatprep.subr.bf16.mxu0 0
        %3214 = vmatpush1.bf16.msra.mxu0 0
        %3215 = vmatprep.subr.bf16.mxu0 0
        %3216 = vmatpush1.bf16.msra.mxu0 0
        %3217 = vmatprep.subr.bf16.mxu0 0
        %3218 = vmatpush1.bf16.msra.mxu0 0
        %3219 = vmatprep.subr.bf16.mxu0 0
        %3220 = vmatpush1.bf16.msra.mxu0 0
        %3221 = vmatprep.subr.bf16.mxu0 0
        %3222 = vmatpush1.bf16.msra.mxu0 0
        %3223 = vmatprep.subr.bf16.mxu0 0
        %3224 = vmatpush1.bf16.msra.mxu0 0
        %3225 = vmatprep.subr.bf16.mxu0 0
        %3226 = vmatpush1.bf16.msra.mxu0 0
        %3227 = vmatprep.subr.bf16.mxu0 0
        %3228 = vmatpush1.bf16.msra.mxu0 0
        %3229 = vmatprep.subr.bf16.mxu0 0
        %3230 = vmatpush1.bf16.msra.mxu0 0
        %3231 = vmatprep.subr.bf16.mxu0 0
        %3232 = vmatpush1.bf16.msra.mxu0 0
        %3233 = vmatprep.subr.bf16.mxu0 0
        %3234 = vmatpush1.bf16.msra.mxu0 0
        %3235 = vmatprep.mubr.bf16.mxu0 0
        %3236 = vmatmul.mubr.bf16.gmra.mrb[0].mxu0 %v3201
        %v3237 = vpop.f32.mrb[0].mxu0
        %v3238 = vadd.f32 0.0, %v3237
        %v3239 = vpop.f32.mrb[0].mxu0
        %v3240 = vpop.f32.mrb[0].mxu0
        %v3241 = vpop.f32.mrb[0].mxu0
        %3242 = vdwg.mxu0
        %v3243 = vadd.f32 %v893, %v2593
        %v3244 = vadd.f32 %v896, %v2636
        %v3245 = vadd.f32 %v901, %v2679
        %v3246 = vadd.f32 %v904, %v2722
        %v3247 = vadd.f32 %v909, %v2765
        %v3248 = vadd.f32 %v912, %v2808
        %v3249 = vadd.f32 %v917, %v2851
        %v3250 = vadd.f32 %v920, %v2894
        %v3251 = vadd.f32 %v925, %v2937
        %v3252 = vadd.f32 %v928, %v2980
        %v3253 = vadd.f32 %v933, %v3023
        %v3254 = vadd.f32 %v936, %v3066
        %v3255 = vadd.f32 %v941, %v3109
        %v3256 = vadd.f32 %v944, %v3152
        %v3257 = vadd.f32 %v949, %v3195
        %v3258 = vadd.f32 %v952, %v3238
        %v3259 = vtanh.pop %v3243
        %v3260 = vtanh.pop %v3244
        %v3261 = vtanh.pop %v3245
        %v3262 = vtanh.pop %v3246
        %v3263 = vtanh.pop %v3247
        %v3264 = vtanh.pop %v3248
        %v3265 = vtanh.pop %v3249
        %v3266 = vtanh.pop %v3250
        %v3267 = vtanh.pop %v3251
        %v3268 = vtanh.pop %v3252
        %v3269 = vtanh.pop %v3253
        %v3270 = vtanh.pop %v3254
        %v3271 = vtanh.pop %v3255
        %v3272 = vtanh.pop %v3256
        %v3273 = vtanh.pop %v3257
        %v3274 = vtanh.pop %v3258
        %v3275 = vpack.c.bf16 %v893, %v893
        %v3276 = vpack.c.bf16 %v896, %v896
        %v3277 = vpack.c.bf16 %v901, %v901
        %v3278 = vpack.c.bf16 %v904, %v904
        %v3279 = vpack.c.bf16 %v909, %v909
        %v3280 = vpack.c.bf16 %v912, %v912
        %v3281 = vpack.c.bf16 %v917, %v917
        %v3282 = vpack.c.bf16 %v920, %v920
        %v3283 = vpack.c.bf16 %v925, %v925
        %v3284 = vpack.c.bf16 %v928, %v928
        %v3285 = vpack.c.bf16 %v933, %v933
        %v3286 = vpack.c.bf16 %v936, %v936
        %v3287 = vpack.c.bf16 %v941, %v941
        %v3288 = vpack.c.bf16 %v944, %v944
        %v3289 = vpack.c.bf16 %v949, %v949
        %v3290 = vpack.c.bf16 %v952, %v952
        %vm3291 = vcmask 64512
        %v3293 = vsel %vm3291, %v2506, 0
        %vm3295 = vcmask 1043456
        %v3297 = vsel %vm3295, %v3275, 0
        %3299 = vmatprep.subr.bf16.mxu0 0
        %3300 = vmatpush1.bf16.msra.mxu0 %v3297
        %3301 = vmatprep.subr.bf16.mxu0 0
        %3302 = vmatpush1.bf16.msra.mxu0 0
        %3303 = vmatprep.subr.bf16.mxu0 0
        %3304 = vmatpush1.bf16.msra.mxu0 0
        %3305 = vmatprep.subr.bf16.mxu0 0
        %3306 = vmatpush1.bf16.msra.mxu0 0
        %3307 = vmatprep.subr.bf16.mxu0 0
        %3308 = vmatpush1.bf16.msra.mxu0 0
        %3309 = vmatprep.subr.bf16.mxu0 0
        %3310 = vmatpush1.bf16.msra.mxu0 0
        %3311 = vmatprep.subr.bf16.mxu0 0
        %3312 = vmatpush1.bf16.msra.mxu0 0
        %3313 = vmatprep.subr.bf16.mxu0 0
        %3314 = vmatpush1.bf16.msra.mxu0 0
        %3315 = vmatprep.subr.bf16.mxu0 0
        %3316 = vmatpush1.bf16.msra.mxu0 0
        %3317 = vmatprep.subr.bf16.mxu0 0
        %3318 = vmatpush1.bf16.msra.mxu0 0
        %3319 = vmatprep.subr.bf16.mxu0 0
        %3320 = vmatpush1.bf16.msra.mxu0 0
        %3321 = vmatprep.subr.bf16.mxu0 0
        %3322 = vmatpush1.bf16.msra.mxu0 0
        %3323 = vmatprep.subr.bf16.mxu0 0
        %3324 = vmatpush1.bf16.msra.mxu0 0
        %3325 = vmatprep.subr.bf16.mxu0 0
        %3326 = vmatpush1.bf16.msra.mxu0 0
        %3327 = vmatprep.subr.bf16.mxu0 0
        %3328 = vmatpush1.bf16.msra.mxu0 0
        %3329 = vmatprep.subr.bf16.mxu0 0
        %3330 = vmatpush1.bf16.msra.mxu0 0
        %3331 = vmatprep.mubr.bf16.mxu0 0
        %3332 = vmatmul.mubr.bf16.gmra.mrb[0].mxu0 %v3293
        %v3333 = vpop.f32.mrb[0].mxu0
        %v3334 = vadd.f32 0.0, %v3333
        %v3335 = vpop.f32.mrb[0].mxu0
        %v3336 = vpop.f32.mrb[0].mxu0
        %v3337 = vadd.f32 0.0, %v3336
        %v3338 = vpop.f32.mrb[0].mxu0
        %3339 = vdwg.mxu0
        %v3341 = vsel %vm3291, %v2507, 0
        %v3344 = vsel %vm3295, %v3276, 0
        %3346 = vmatprep.subr.bf16.mxu0 0
        %3347 = vmatpush1.bf16.msra.mxu0 %v3344
        %3348 = vmatprep.subr.bf16.mxu0 0
        %3349 = vmatpush1.bf16.msra.mxu0 0
        %3350 = vmatprep.subr.bf16.mxu0 0
        %3351 = vmatpush1.bf16.msra.mxu0 0
        %3352 = vmatprep.subr.bf16.mxu0 0
        %3353 = vmatpush1.bf16.msra.mxu0 0
        %3354 = vmatprep.subr.bf16.mxu0 0
        %3355 = vmatpush1.bf16.msra.mxu0 0
        %3356 = vmatprep.subr.bf16.mxu0 0
        %3357 = vmatpush1.bf16.msra.mxu0 0
        %3358 = vmatprep.subr.bf16.mxu0 0
        %3359 = vmatpush1.bf16.msra.mxu0 0
        %3360 = vmatprep.subr.bf16.mxu0 0
        %3361 = vmatpush1.bf16.msra.mxu0 0
        %3362 = vmatprep.subr.bf16.mxu0 0
        %3363 = vmatpush1.bf16.msra.mxu0 0
        %3364 = vmatprep.subr.bf16.mxu0 0
        %3365 = vmatpush1.bf16.msra.mxu0 0
        %3366 = vmatprep.subr.bf16.mxu0 0
        %3367 = vmatpush1.bf16.msra.mxu0 0
        %3368 = vmatprep.subr.bf16.mxu0 0
        %3369 = vmatpush1.bf16.msra.mxu0 0
        %3370 = vmatprep.subr.bf16.mxu0 0
        %3371 = vmatpush1.bf16.msra.mxu0 0
        %3372 = vmatprep.subr.bf16.mxu0 0
        %3373 = vmatpush1.bf16.msra.mxu0 0
        %3374 = vmatprep.subr.bf16.mxu0 0
        %3375 = vmatpush1.bf16.msra.mxu0 0
        %3376 = vmatprep.subr.bf16.mxu0 0
        %3377 = vmatpush1.bf16.msra.mxu0 0
        %3378 = vmatprep.mubr.bf16.mxu0 0
        %3379 = vmatmul.mubr.bf16.gmra.mrb[0].mxu0 %v3341
        %v3380 = vpop.f32.mrb[0].mxu0
        %v3381 = vadd.f32 0.0, %v3380
        %v3382 = vpop.f32.mrb[0].mxu0
        %v3383 = vpop.f32.mrb[0].mxu0
        %v3384 = vadd.f32 0.0, %v3383
        %v3385 = vpop.f32.mrb[0].mxu0
        %3386 = vdwg.mxu0
        %v3388 = vsel %vm3291, %v2508, 0
        %v3391 = vsel %vm3295, %v3277, 0
        %3393 = vmatprep.subr.bf16.mxu0 0
        %3394 = vmatpush1.bf16.msra.mxu0 %v3391
        %3395 = vmatprep.subr.bf16.mxu0 0
        %3396 = vmatpush1.bf16.msra.mxu0 0
        %3397 = vmatprep.subr.bf16.mxu0 0
        %3398 = vmatpush1.bf16.msra.mxu0 0
        %3399 = vmatprep.subr.bf16.mxu0 0
        %3400 = vmatpush1.bf16.msra.mxu0 0
        %3401 = vmatprep.subr.bf16.mxu0 0
        %3402 = vmatpush1.bf16.msra.mxu0 0
        %3403 = vmatprep.subr.bf16.mxu0 0
        %3404 = vmatpush1.bf16.msra.mxu0 0
        %3405 = vmatprep.subr.bf16.mxu0 0
        %3406 = vmatpush1.bf16.msra.mxu0 0
        %3407 = vmatprep.subr.bf16.mxu0 0
        %3408 = vmatpush1.bf16.msra.mxu0 0
        %3409 = vmatprep.subr.bf16.mxu0 0
        %3410 = vmatpush1.bf16.msra.mxu0 0
        %3411 = vmatprep.subr.bf16.mxu0 0
        %3412 = vmatpush1.bf16.msra.mxu0 0
        %3413 = vmatprep.subr.bf16.mxu0 0
        %3414 = vmatpush1.bf16.msra.mxu0 0
        %3415 = vmatprep.subr.bf16.mxu0 0
        %3416 = vmatpush1.bf16.msra.mxu0 0
        %3417 = vmatprep.subr.bf16.mxu0 0
        %3418 = vmatpush1.bf16.msra.mxu0 0
        %3419 = vmatprep.subr.bf16.mxu0 0
        %3420 = vmatpush1.bf16.msra.mxu0 0
        %3421 = vmatprep.subr.bf16.mxu0 0
        %3422 = vmatpush1.bf16.msra.mxu0 0
        %3423 = vmatprep.subr.bf16.mxu0 0
        %3424 = vmatpush1.bf16.msra.mxu0 0
        %3425 = vmatprep.mubr.bf16.mxu0 0
        %3426 = vmatmul.mubr.bf16.gmra.mrb[0].mxu0 %v3388
        %v3427 = vpop.f32.mrb[0].mxu0
        %v3428 = vadd.f32 0.0, %v3427
        %v3429 = vpop.f32.mrb[0].mxu0
        %v3430 = vpop.f32.mrb[0].mxu0
        %v3431 = vadd.f32 0.0, %v3430
        %v3432 = vpop.f32.mrb[0].mxu0
        %3433 = vdwg.mxu0
        %v3435 = vsel %vm3291, %v2509, 0
        %v3438 = vsel %vm3295, %v3278, 0
        %3440 = vmatprep.subr.bf16.mxu0 0
        %3441 = vmatpush1.bf16.msra.mxu0 %v3438
        %3442 = vmatprep.subr.bf16.mxu0 0
        %3443 = vmatpush1.bf16.msra.mxu0 0
        %3444 = vmatprep.subr.bf16.mxu0 0
        %3445 = vmatpush1.bf16.msra.mxu0 0
        %3446 = vmatprep.subr.bf16.mxu0 0
        %3447 = vmatpush1.bf16.msra.mxu0 0
        %3448 = vmatprep.subr.bf16.mxu0 0
        %3449 = vmatpush1.bf16.msra.mxu0 0
        %3450 = vmatprep.subr.bf16.mxu0 0
        %3451 = vmatpush1.bf16.msra.mxu0 0
        %3452 = vmatprep.subr.bf16.mxu0 0
        %3453 = vmatpush1.bf16.msra.mxu0 0
        %3454 = vmatprep.subr.bf16.mxu0 0
        %3455 = vmatpush1.bf16.msra.mxu0 0
        %3456 = vmatprep.subr.bf16.mxu0 0
        %3457 = vmatpush1.bf16.msra.mxu0 0
        %3458 = vmatprep.subr.bf16.mxu0 0
        %3459 = vmatpush1.bf16.msra.mxu0 0
        %3460 = vmatprep.subr.bf16.mxu0 0
        %3461 = vmatpush1.bf16.msra.mxu0 0
        %3462 = vmatprep.subr.bf16.mxu0 0
        %3463 = vmatpush1.bf16.msra.mxu0 0
        %3464 = vmatprep.subr.bf16.mxu0 0
        %3465 = vmatpush1.bf16.msra.mxu0 0
        %3466 = vmatprep.subr.bf16.mxu0 0
        %3467 = vmatpush1.bf16.msra.mxu0 0
        %3468 = vmatprep.subr.bf16.mxu0 0
        %3469 = vmatpush1.bf16.msra.mxu0 0
        %3470 = vmatprep.subr.bf16.mxu0 0
        %3471 = vmatpush1.bf16.msra.mxu0 0
        %3472 = vmatprep.mubr.bf16.mxu0 0
        %3473 = vmatmul.mubr.bf16.gmra.mrb[0].mxu0 %v3435
        %v3474 = vpop.f32.mrb[0].mxu0
        %v3475 = vadd.f32 0.0, %v3474
        %v3476 = vpop.f32.mrb[0].mxu0
        %v3477 = vpop.f32.mrb[0].mxu0
        %v3478 = vadd.f32 0.0, %v3477
        %v3479 = vpop.f32.mrb[0].mxu0
        %3480 = vdwg.mxu0
        %v3482 = vsel %vm3291, %v2510, 0
        %v3485 = vsel %vm3295, %v3279, 0
        %3487 = vmatprep.subr.bf16.mxu0 0
        %3488 = vmatpush1.bf16.msra.mxu0 %v3485
        %3489 = vmatprep.subr.bf16.mxu0 0
        %3490 = vmatpush1.bf16.msra.mxu0 0
        %3491 = vmatprep.subr.bf16.mxu0 0
        %3492 = vmatpush1.bf16.msra.mxu0 0
        %3493 = vmatprep.subr.bf16.mxu0 0
        %3494 = vmatpush1.bf16.msra.mxu0 0
        %3495 = vmatprep.subr.bf16.mxu0 0
        %3496 = vmatpush1.bf16.msra.mxu0 0
        %3497 = vmatprep.subr.bf16.mxu0 0
        %3498 = vmatpush1.bf16.msra.mxu0 0
        %3499 = vmatprep.subr.bf16.mxu0 0
        %3500 = vmatpush1.bf16.msra.mxu0 0
        %3501 = vmatprep.subr.bf16.mxu0 0
        %3502 = vmatpush1.bf16.msra.mxu0 0
        %3503 = vmatprep.subr.bf16.mxu0 0
        %3504 = vmatpush1.bf16.msra.mxu0 0
        %3505 = vmatprep.subr.bf16.mxu0 0
        %3506 = vmatpush1.bf16.msra.mxu0 0
        %3507 = vmatprep.subr.bf16.mxu0 0
        %3508 = vmatpush1.bf16.msra.mxu0 0
        %3509 = vmatprep.subr.bf16.mxu0 0
        %3510 = vmatpush1.bf16.msra.mxu0 0
        %3511 = vmatprep.subr.bf16.mxu0 0
        %3512 = vmatpush1.bf16.msra.mxu0 0
        %3513 = vmatprep.subr.bf16.mxu0 0
        %3514 = vmatpush1.bf16.msra.mxu0 0
        %3515 = vmatprep.subr.bf16.mxu0 0
        %3516 = vmatpush1.bf16.msra.mxu0 0
        %3517 = vmatprep.subr.bf16.mxu0 0
        %3518 = vmatpush1.bf16.msra.mxu0 0
        %3519 = vmatprep.mubr.bf16.mxu0 0
        %3520 = vmatmul.mubr.bf16.gmra.mrb[0].mxu0 %v3482
        %v3521 = vpop.f32.mrb[0].mxu0
        %v3522 = vadd.f32 0.0, %v3521
        %v3523 = vpop.f32.mrb[0].mxu0
        %v3524 = vpop.f32.mrb[0].mxu0
        %v3525 = vadd.f32 0.0, %v3524
        %v3526 = vpop.f32.mrb[0].mxu0
        %3527 = vdwg.mxu0
        %v3529 = vsel %vm3291, %v2511, 0
        %v3532 = vsel %vm3295, %v3280, 0
        %3534 = vmatprep.subr.bf16.mxu0 0
        %3535 = vmatpush1.bf16.msra.mxu0 %v3532
        %3536 = vmatprep.subr.bf16.mxu0 0
        %3537 = vmatpush1.bf16.msra.mxu0 0
        %3538 = vmatprep.subr.bf16.mxu0 0
        %3539 = vmatpush1.bf16.msra.mxu0 0
        %3540 = vmatprep.subr.bf16.mxu0 0
        %3541 = vmatpush1.bf16.msra.mxu0 0
        %3542 = vmatprep.subr.bf16.mxu0 0
        %3543 = vmatpush1.bf16.msra.mxu0 0
        %3544 = vmatprep.subr.bf16.mxu0 0
        %3545 = vmatpush1.bf16.msra.mxu0 0
        %3546 = vmatprep.subr.bf16.mxu0 0
        %3547 = vmatpush1.bf16.msra.mxu0 0
        %3548 = vmatprep.subr.bf16.mxu0 0
        %3549 = vmatpush1.bf16.msra.mxu0 0
        %3550 = vmatprep.subr.bf16.mxu0 0
        %3551 = vmatpush1.bf16.msra.mxu0 0
        %3552 = vmatprep.subr.bf16.mxu0 0
        %3553 = vmatpush1.bf16.msra.mxu0 0
        %3554 = vmatprep.subr.bf16.mxu0 0
        %3555 = vmatpush1.bf16.msra.mxu0 0
        %3556 = vmatprep.subr.bf16.mxu0 0
        %3557 = vmatpush1.bf16.msra.mxu0 0
        %3558 = vmatprep.subr.bf16.mxu0 0
        %3559 = vmatpush1.bf16.msra.mxu0 0
        %3560 = vmatprep.subr.bf16.mxu0 0
        %3561 = vmatpush1.bf16.msra.mxu0 0
        %3562 = vmatprep.subr.bf16.mxu0 0
        %3563 = vmatpush1.bf16.msra.mxu0 0
        %3564 = vmatprep.subr.bf16.mxu0 0
        %3565 = vmatpush1.bf16.msra.mxu0 0
        %3566 = vmatprep.mubr.bf16.mxu0 0
        %3567 = vmatmul.mubr.bf16.gmra.mrb[0].mxu0 %v3529
        %v3568 = vpop.f32.mrb[0].mxu0
        %v3569 = vadd.f32 0.0, %v3568
        %v3570 = vpop.f32.mrb[0].mxu0
        %v3571 = vpop.f32.mrb[0].mxu0
        %v3572 = vadd.f32 0.0, %v3571
        %v3573 = vpop.f32.mrb[0].mxu0
        %3574 = vdwg.mxu0
        %v3576 = vsel %vm3291, %v2512, 0
        %v3579 = vsel %vm3295, %v3281, 0
        %3581 = vmatprep.subr.bf16.mxu0 0
        %3582 = vmatpush1.bf16.msra.mxu0 %v3579
        %3583 = vmatprep.subr.bf16.mxu0 0
        %3584 = vmatpush1.bf16.msra.mxu0 0
        %3585 = vmatprep.subr.bf16.mxu0 0
        %3586 = vmatpush1.bf16.msra.mxu0 0
        %3587 = vmatprep.subr.bf16.mxu0 0
        %3588 = vmatpush1.bf16.msra.mxu0 0
        %3589 = vmatprep.subr.bf16.mxu0 0
        %3590 = vmatpush1.bf16.msra.mxu0 0
        %3591 = vmatprep.subr.bf16.mxu0 0
        %3592 = vmatpush1.bf16.msra.mxu0 0
        %3593 = vmatprep.subr.bf16.mxu0 0
        %3594 = vmatpush1.bf16.msra.mxu0 0
        %3595 = vmatprep.subr.bf16.mxu0 0
        %3596 = vmatpush1.bf16.msra.mxu0 0
        %3597 = vmatprep.subr.bf16.mxu0 0
        %3598 = vmatpush1.bf16.msra.mxu0 0
        %3599 = vmatprep.subr.bf16.mxu0 0
        %3600 = vmatpush1.bf16.msra.mxu0 0
        %3601 = vmatprep.subr.bf16.mxu0 0
        %3602 = vmatpush1.bf16.msra.mxu0 0
        %3603 = vmatprep.subr.bf16.mxu0 0
        %3604 = vmatpush1.bf16.msra.mxu0 0
        %3605 = vmatprep.subr.bf16.mxu0 0
        %3606 = vmatpush1.bf16.msra.mxu0 0
        %3607 = vmatprep.subr.bf16.mxu0 0
        %3608 = vmatpush1.bf16.msra.mxu0 0
        %3609 = vmatprep.subr.bf16.mxu0 0
        %3610 = vmatpush1.bf16.msra.mxu0 0
        %3611 = vmatprep.subr.bf16.mxu0 0
        %3612 = vmatpush1.bf16.msra.mxu0 0
        %3613 = vmatprep.mubr.bf16.mxu0 0
        %3614 = vmatmul.mubr.bf16.gmra.mrb[0].mxu0 %v3576
        %v3615 = vpop.f32.mrb[0].mxu0
        %v3616 = vadd.f32 0.0, %v3615
        %v3617 = vpop.f32.mrb[0].mxu0
        %v3618 = vpop.f32.mrb[0].mxu0
        %v3619 = vadd.f32 0.0, %v3618
        %v3620 = vpop.f32.mrb[0].mxu0
        %3621 = vdwg.mxu0
        %v3623 = vsel %vm3291, %v2513, 0
        %v3626 = vsel %vm3295, %v3282, 0
        %3628 = vmatprep.subr.bf16.mxu0 0
        %3629 = vmatpush1.bf16.msra.mxu0 %v3626
        %3630 = vmatprep.subr.bf16.mxu0 0
        %3631 = vmatpush1.bf16.msra.mxu0 0
        %3632 = vmatprep.subr.bf16.mxu0 0
        %3633 = vmatpush1.bf16.msra.mxu0 0
        %3634 = vmatprep.subr.bf16.mxu0 0
        %3635 = vmatpush1.bf16.msra.mxu0 0
        %3636 = vmatprep.subr.bf16.mxu0 0
        %3637 = vmatpush1.bf16.msra.mxu0 0
        %3638 = vmatprep.subr.bf16.mxu0 0
        %3639 = vmatpush1.bf16.msra.mxu0 0
        %3640 = vmatprep.subr.bf16.mxu0 0
        %3641 = vmatpush1.bf16.msra.mxu0 0
        %3642 = vmatprep.subr.bf16.mxu0 0
        %3643 = vmatpush1.bf16.msra.mxu0 0
        %3644 = vmatprep.subr.bf16.mxu0 0
        %3645 = vmatpush1.bf16.msra.mxu0 0
        %3646 = vmatprep.subr.bf16.mxu0 0
        %3647 = vmatpush1.bf16.msra.mxu0 0
        %3648 = vmatprep.subr.bf16.mxu0 0
        %3649 = vmatpush1.bf16.msra.mxu0 0
        %3650 = vmatprep.subr.bf16.mxu0 0
        %3651 = vmatpush1.bf16.msra.mxu0 0
        %3652 = vmatprep.subr.bf16.mxu0 0
        %3653 = vmatpush1.bf16.msra.mxu0 0
        %3654 = vmatprep.subr.bf16.mxu0 0
        %3655 = vmatpush1.bf16.msra.mxu0 0
        %3656 = vmatprep.subr.bf16.mxu0 0
        %3657 = vmatpush1.bf16.msra.mxu0 0
        %3658 = vmatprep.subr.bf16.mxu0 0
        %3659 = vmatpush1.bf16.msra.mxu0 0
        %3660 = vmatprep.mubr.bf16.mxu0 0
        %3661 = vmatmul.mubr.bf16.gmra.mrb[0].mxu0 %v3623
        %v3662 = vpop.f32.mrb[0].mxu0
        %v3663 = vadd.f32 0.0, %v3662
        %v3664 = vpop.f32.mrb[0].mxu0
        %v3665 = vpop.f32.mrb[0].mxu0
        %v3666 = vadd.f32 0.0, %v3665
        %v3667 = vpop.f32.mrb[0].mxu0
        %3668 = vdwg.mxu0
        %v3670 = vsel %vm3291, %v2514, 0
        %v3673 = vsel %vm3295, %v3283, 0
        %3675 = vmatprep.subr.bf16.mxu0 0
        %3676 = vmatpush1.bf16.msra.mxu0 %v3673
        %3677 = vmatprep.subr.bf16.mxu0 0
        %3678 = vmatpush1.bf16.msra.mxu0 0
        %3679 = vmatprep.subr.bf16.mxu0 0
        %3680 = vmatpush1.bf16.msra.mxu0 0
        %3681 = vmatprep.subr.bf16.mxu0 0
        %3682 = vmatpush1.bf16.msra.mxu0 0
        %3683 = vmatprep.subr.bf16.mxu0 0
        %3684 = vmatpush1.bf16.msra.mxu0 0
        %3685 = vmatprep.subr.bf16.mxu0 0
        %3686 = vmatpush1.bf16.msra.mxu0 0
        %3687 = vmatprep.subr.bf16.mxu0 0
        %3688 = vmatpush1.bf16.msra.mxu0 0
        %3689 = vmatprep.subr.bf16.mxu0 0
        %3690 = vmatpush1.bf16.msra.mxu0 0
        %3691 = vmatprep.subr.bf16.mxu0 0
        %3692 = vmatpush1.bf16.msra.mxu0 0
        %3693 = vmatprep.subr.bf16.mxu0 0
        %3694 = vmatpush1.bf16.msra.mxu0 0
        %3695 = vmatprep.subr.bf16.mxu0 0
        %3696 = vmatpush1.bf16.msra.mxu0 0
        %3697 = vmatprep.subr.bf16.mxu0 0
        %3698 = vmatpush1.bf16.msra.mxu0 0
        %3699 = vmatprep.subr.bf16.mxu0 0
        %3700 = vmatpush1.bf16.msra.mxu0 0
        %3701 = vmatprep.subr.bf16.mxu0 0
        %3702 = vmatpush1.bf16.msra.mxu0 0
        %3703 = vmatprep.subr.bf16.mxu0 0
        %3704 = vmatpush1.bf16.msra.mxu0 0
        %3705 = vmatprep.subr.bf16.mxu0 0
        %3706 = vmatpush1.bf16.msra.mxu0 0
        %3707 = vmatprep.mubr.bf16.mxu0 0
        %3708 = vmatmul.mubr.bf16.gmra.mrb[0].mxu0 %v3670
        %v3709 = vpop.f32.mrb[0].mxu0
        %v3710 = vadd.f32 0.0, %v3709
        %v3711 = vpop.f32.mrb[0].mxu0
        %v3712 = vpop.f32.mrb[0].mxu0
        %v3713 = vadd.f32 0.0, %v3712
        %v3714 = vpop.f32.mrb[0].mxu0
        %3715 = vdwg.mxu0
        %v3717 = vsel %vm3291, %v2515, 0
        %v3720 = vsel %vm3295, %v3284, 0
        %3722 = vmatprep.subr.bf16.mxu0 0
        %3723 = vmatpush1.bf16.msra.mxu0 %v3720
        %3724 = vmatprep.subr.bf16.mxu0 0
        %3725 = vmatpush1.bf16.msra.mxu0 0
        %3726 = vmatprep.subr.bf16.mxu0 0
        %3727 = vmatpush1.bf16.msra.mxu0 0
        %3728 = vmatprep.subr.bf16.mxu0 0
        %3729 = vmatpush1.bf16.msra.mxu0 0
        %3730 = vmatprep.subr.bf16.mxu0 0
        %3731 = vmatpush1.bf16.msra.mxu0 0
        %3732 = vmatprep.subr.bf16.mxu0 0
        %3733 = vmatpush1.bf16.msra.mxu0 0
        %3734 = vmatprep.subr.bf16.mxu0 0
        %3735 = vmatpush1.bf16.msra.mxu0 0
        %3736 = vmatprep.subr.bf16.mxu0 0
        %3737 = vmatpush1.bf16.msra.mxu0 0
        %3738 = vmatprep.subr.bf16.mxu0 0
        %3739 = vmatpush1.bf16.msra.mxu0 0
        %3740 = vmatprep.subr.bf16.mxu0 0
        %3741 = vmatpush1.bf16.msra.mxu0 0
        %3742 = vmatprep.subr.bf16.mxu0 0
        %3743 = vmatpush1.bf16.msra.mxu0 0
        %3744 = vmatprep.subr.bf16.mxu0 0
        %3745 = vmatpush1.bf16.msra.mxu0 0
        %3746 = vmatprep.subr.bf16.mxu0 0
        %3747 = vmatpush1.bf16.msra.mxu0 0
        %3748 = vmatprep.subr.bf16.mxu0 0
        %3749 = vmatpush1.bf16.msra.mxu0 0
        %3750 = vmatprep.subr.bf16.mxu0 0
        %3751 = vmatpush1.bf16.msra.mxu0 0
        %3752 = vmatprep.subr.bf16.mxu0 0
        %3753 = vmatpush1.bf16.msra.mxu0 0
        %3754 = vmatprep.mubr.bf16.mxu0 0
        %3755 = vmatmul.mubr.bf16.gmra.mrb[0].mxu0 %v3717
        %v3756 = vpop.f32.mrb[0].mxu0
        %v3757 = vadd.f32 0.0, %v3756
        %v3758 = vpop.f32.mrb[0].mxu0
        %v3759 = vpop.f32.mrb[0].mxu0
        %v3760 = vadd.f32 0.0, %v3759
        %v3761 = vpop.f32.mrb[0].mxu0
        %3762 = vdwg.mxu0
        %v3764 = vsel %vm3291, %v2516, 0
        %v3767 = vsel %vm3295, %v3285, 0
        %3769 = vmatprep.subr.bf16.mxu0 0
        %3770 = vmatpush1.bf16.msra.mxu0 %v3767
        %3771 = vmatprep.subr.bf16.mxu0 0
        %3772 = vmatpush1.bf16.msra.mxu0 0
        %3773 = vmatprep.subr.bf16.mxu0 0
        %3774 = vmatpush1.bf16.msra.mxu0 0
        %3775 = vmatprep.subr.bf16.mxu0 0
        %3776 = vmatpush1.bf16.msra.mxu0 0
        %3777 = vmatprep.subr.bf16.mxu0 0
        %3778 = vmatpush1.bf16.msra.mxu0 0
        %3779 = vmatprep.subr.bf16.mxu0 0
        %3780 = vmatpush1.bf16.msra.mxu0 0
        %3781 = vmatprep.subr.bf16.mxu0 0
        %3782 = vmatpush1.bf16.msra.mxu0 0
        %3783 = vmatprep.subr.bf16.mxu0 0
        %3784 = vmatpush1.bf16.msra.mxu0 0
        %3785 = vmatprep.subr.bf16.mxu0 0
        %3786 = vmatpush1.bf16.msra.mxu0 0
        %3787 = vmatprep.subr.bf16.mxu0 0
        %3788 = vmatpush1.bf16.msra.mxu0 0
        %3789 = vmatprep.subr.bf16.mxu0 0
        %3790 = vmatpush1.bf16.msra.mxu0 0
        %3791 = vmatprep.subr.bf16.mxu0 0
        %3792 = vmatpush1.bf16.msra.mxu0 0
        %3793 = vmatprep.subr.bf16.mxu0 0
        %3794 = vmatpush1.bf16.msra.mxu0 0
        %3795 = vmatprep.subr.bf16.mxu0 0
        %3796 = vmatpush1.bf16.msra.mxu0 0
        %3797 = vmatprep.subr.bf16.mxu0 0
        %3798 = vmatpush1.bf16.msra.mxu0 0
        %3799 = vmatprep.subr.bf16.mxu0 0
        %3800 = vmatpush1.bf16.msra.mxu0 0
        %3801 = vmatprep.mubr.bf16.mxu0 0
        %3802 = vmatmul.mubr.bf16.gmra.mrb[0].mxu0 %v3764
        %v3803 = vpop.f32.mrb[0].mxu0
        %v3804 = vadd.f32 0.0, %v3803
        %v3805 = vpop.f32.mrb[0].mxu0
        %v3806 = vpop.f32.mrb[0].mxu0
        %v3807 = vadd.f32 0.0, %v3806
        %v3808 = vpop.f32.mrb[0].mxu0
        %3809 = vdwg.mxu0
        %v3811 = vsel %vm3291, %v2517, 0
        %v3814 = vsel %vm3295, %v3286, 0
        %3816 = vmatprep.subr.bf16.mxu0 0
        %3817 = vmatpush1.bf16.msra.mxu0 %v3814
        %3818 = vmatprep.subr.bf16.mxu0 0
        %3819 = vmatpush1.bf16.msra.mxu0 0
        %3820 = vmatprep.subr.bf16.mxu0 0
        %3821 = vmatpush1.bf16.msra.mxu0 0
        %3822 = vmatprep.subr.bf16.mxu0 0
        %3823 = vmatpush1.bf16.msra.mxu0 0
        %3824 = vmatprep.subr.bf16.mxu0 0
        %3825 = vmatpush1.bf16.msra.mxu0 0
        %3826 = vmatprep.subr.bf16.mxu0 0
        %3827 = vmatpush1.bf16.msra.mxu0 0
        %3828 = vmatprep.subr.bf16.mxu0 0
        %3829 = vmatpush1.bf16.msra.mxu0 0
        %3830 = vmatprep.subr.bf16.mxu0 0
        %3831 = vmatpush1.bf16.msra.mxu0 0
        %3832 = vmatprep.subr.bf16.mxu0 0
        %3833 = vmatpush1.bf16.msra.mxu0 0
        %3834 = vmatprep.subr.bf16.mxu0 0
        %3835 = vmatpush1.bf16.msra.mxu0 0
        %3836 = vmatprep.subr.bf16.mxu0 0
        %3837 = vmatpush1.bf16.msra.mxu0 0
        %3838 = vmatprep.subr.bf16.mxu0 0
        %3839 = vmatpush1.bf16.msra.mxu0 0
        %3840 = vmatprep.subr.bf16.mxu0 0
        %3841 = vmatpush1.bf16.msra.mxu0 0
        %3842 = vmatprep.subr.bf16.mxu0 0
        %3843 = vmatpush1.bf16.msra.mxu0 0
        %3844 = vmatprep.subr.bf16.mxu0 0
        %3845 = vmatpush1.bf16.msra.mxu0 0
        %3846 = vmatprep.subr.bf16.mxu0 0
        %3847 = vmatpush1.bf16.msra.mxu0 0
        %3848 = vmatprep.mubr.bf16.mxu0 0
        %3849 = vmatmul.mubr.bf16.gmra.mrb[0].mxu0 %v3811
        %v3850 = vpop.f32.mrb[0].mxu0
        %v3851 = vadd.f32 0.0, %v3850
        %v3852 = vpop.f32.mrb[0].mxu0
        %v3853 = vpop.f32.mrb[0].mxu0
        %v3854 = vadd.f32 0.0, %v3853
        %v3855 = vpop.f32.mrb[0].mxu0
        %3856 = vdwg.mxu0
        %v3858 = vsel %vm3291, %v2518, 0
        %v3861 = vsel %vm3295, %v3287, 0
        %3863 = vmatprep.subr.bf16.mxu0 0
        %3864 = vmatpush1.bf16.msra.mxu0 %v3861
        %3865 = vmatprep.subr.bf16.mxu0 0
        %3866 = vmatpush1.bf16.msra.mxu0 0
        %3867 = vmatprep.subr.bf16.mxu0 0
        %3868 = vmatpush1.bf16.msra.mxu0 0
        %3869 = vmatprep.subr.bf16.mxu0 0
        %3870 = vmatpush1.bf16.msra.mxu0 0
        %3871 = vmatprep.subr.bf16.mxu0 0
        %3872 = vmatpush1.bf16.msra.mxu0 0
        %3873 = vmatprep.subr.bf16.mxu0 0
        %3874 = vmatpush1.bf16.msra.mxu0 0
        %3875 = vmatprep.subr.bf16.mxu0 0
        %3876 = vmatpush1.bf16.msra.mxu0 0
        %3877 = vmatprep.subr.bf16.mxu0 0
        %3878 = vmatpush1.bf16.msra.mxu0 0
        %3879 = vmatprep.subr.bf16.mxu0 0
        %3880 = vmatpush1.bf16.msra.mxu0 0
        %3881 = vmatprep.subr.bf16.mxu0 0
        %3882 = vmatpush1.bf16.msra.mxu0 0
        %3883 = vmatprep.subr.bf16.mxu0 0
        %3884 = vmatpush1.bf16.msra.mxu0 0
        %3885 = vmatprep.subr.bf16.mxu0 0
        %3886 = vmatpush1.bf16.msra.mxu0 0
        %3887 = vmatprep.subr.bf16.mxu0 0
        %3888 = vmatpush1.bf16.msra.mxu0 0
        %3889 = vmatprep.subr.bf16.mxu0 0
        %3890 = vmatpush1.bf16.msra.mxu0 0
        %3891 = vmatprep.subr.bf16.mxu0 0
        %3892 = vmatpush1.bf16.msra.mxu0 0
        %3893 = vmatprep.subr.bf16.mxu0 0
        %3894 = vmatpush1.bf16.msra.mxu0 0
        %3895 = vmatprep.mubr.bf16.mxu0 0
        %3896 = vmatmul.mubr.bf16.gmra.mrb[0].mxu0 %v3858
        %v3897 = vpop.f32.mrb[0].mxu0
        %v3898 = vadd.f32 0.0, %v3897
        %v3899 = vpop.f32.mrb[0].mxu0
        %v3900 = vpop.f32.mrb[0].mxu0
        %v3901 = vadd.f32 0.0, %v3900
        %v3902 = vpop.f32.mrb[0].mxu0
        %3903 = vdwg.mxu0
        %v3905 = vsel %vm3291, %v2519, 0
        %v3908 = vsel %vm3295, %v3288, 0
        %3910 = vmatprep.subr.bf16.mxu0 0
        %3911 = vmatpush1.bf16.msra.mxu0 %v3908
        %3912 = vmatprep.subr.bf16.mxu0 0
        %3913 = vmatpush1.bf16.msra.mxu0 0
        %3914 = vmatprep.subr.bf16.mxu0 0
        %3915 = vmatpush1.bf16.msra.mxu0 0
        %3916 = vmatprep.subr.bf16.mxu0 0
        %3917 = vmatpush1.bf16.msra.mxu0 0
        %3918 = vmatprep.subr.bf16.mxu0 0
        %3919 = vmatpush1.bf16.msra.mxu0 0
        %3920 = vmatprep.subr.bf16.mxu0 0
        %3921 = vmatpush1.bf16.msra.mxu0 0
        %3922 = vmatprep.subr.bf16.mxu0 0
        %3923 = vmatpush1.bf16.msra.mxu0 0
        %3924 = vmatprep.subr.bf16.mxu0 0
        %3925 = vmatpush1.bf16.msra.mxu0 0
        %3926 = vmatprep.subr.bf16.mxu0 0
        %3927 = vmatpush1.bf16.msra.mxu0 0
        %3928 = vmatprep.subr.bf16.mxu0 0
        %3929 = vmatpush1.bf16.msra.mxu0 0
        %3930 = vmatprep.subr.bf16.mxu0 0
        %3931 = vmatpush1.bf16.msra.mxu0 0
        %3932 = vmatprep.subr.bf16.mxu0 0
        %3933 = vmatpush1.bf16.msra.mxu0 0
        %3934 = vmatprep.subr.bf16.mxu0 0
        %3935 = vmatpush1.bf16.msra.mxu0 0
        %3936 = vmatprep.subr.bf16.mxu0 0
        %3937 = vmatpush1.bf16.msra.mxu0 0
        %3938 = vmatprep.subr.bf16.mxu0 0
        %3939 = vmatpush1.bf16.msra.mxu0 0
        %3940 = vmatprep.subr.bf16.mxu0 0
        %3941 = vmatpush1.bf16.msra.mxu0 0
        %3942 = vmatprep.mubr.bf16.mxu0 0
        %3943 = vmatmul.mubr.bf16.gmra.mrb[0].mxu0 %v3905
        %v3944 = vpop.f32.mrb[0].mxu0
        %v3945 = vadd.f32 0.0, %v3944
        %v3946 = vpop.f32.mrb[0].mxu0
        %v3947 = vpop.f32.mrb[0].mxu0
        %v3948 = vadd.f32 0.0, %v3947
        %v3949 = vpop.f32.mrb[0].mxu0
        %3950 = vdwg.mxu0
        %v3952 = vsel %vm3291, %v2520, 0
        %v3955 = vsel %vm3295, %v3289, 0
        %3957 = vmatprep.subr.bf16.mxu0 0
        %3958 = vmatpush1.bf16.msra.mxu0 %v3955
        %3959 = vmatprep.subr.bf16.mxu0 0
        %3960 = vmatpush1.bf16.msra.mxu0 0
        %3961 = vmatprep.subr.bf16.mxu0 0
        %3962 = vmatpush1.bf16.msra.mxu0 0
        %3963 = vmatprep.subr.bf16.mxu0 0
        %3964 = vmatpush1.bf16.msra.mxu0 0
        %3965 = vmatprep.subr.bf16.mxu0 0
        %3966 = vmatpush1.bf16.msra.mxu0 0
        %3967 = vmatprep.subr.bf16.mxu0 0
        %3968 = vmatpush1.bf16.msra.mxu0 0
        %3969 = vmatprep.subr.bf16.mxu0 0
        %3970 = vmatpush1.bf16.msra.mxu0 0
        %3971 = vmatprep.subr.bf16.mxu0 0
        %3972 = vmatpush1.bf16.msra.mxu0 0
        %3973 = vmatprep.subr.bf16.mxu0 0
        %3974 = vmatpush1.bf16.msra.mxu0 0
        %3975 = vmatprep.subr.bf16.mxu0 0
        %3976 = vmatpush1.bf16.msra.mxu0 0
        %3977 = vmatprep.subr.bf16.mxu0 0
        %3978 = vmatpush1.bf16.msra.mxu0 0
        %3979 = vmatprep.subr.bf16.mxu0 0
        %3980 = vmatpush1.bf16.msra.mxu0 0
        %3981 = vmatprep.subr.bf16.mxu0 0
        %3982 = vmatpush1.bf16.msra.mxu0 0
        %3983 = vmatprep.subr.bf16.mxu0 0
        %3984 = vmatpush1.bf16.msra.mxu0 0
        %3985 = vmatprep.subr.bf16.mxu0 0
        %3986 = vmatpush1.bf16.msra.mxu0 0
        %3987 = vmatprep.subr.bf16.mxu0 0
        %3988 = vmatpush1.bf16.msra.mxu0 0
        %3989 = vmatprep.mubr.bf16.mxu0 0
        %3990 = vmatmul.mubr.bf16.gmra.mrb[0].mxu0 %v3952
        %v3991 = vpop.f32.mrb[0].mxu0
        %v3992 = vadd.f32 0.0, %v3991
        %v3993 = vpop.f32.mrb[0].mxu0
        %v3994 = vpop.f32.mrb[0].mxu0
        %v3995 = vadd.f32 0.0, %v3994
        %v3996 = vpop.f32.mrb[0].mxu0
        %3997 = vdwg.mxu0
        %v3999 = vsel %vm3291, %v2521, 0
        %v4002 = vsel %vm3295, %v3290, 0
        %4004 = vmatprep.subr.bf16.mxu0 0
        %4005 = vmatpush1.bf16.msra.mxu0 %v4002
        %4006 = vmatprep.subr.bf16.mxu0 0
        %4007 = vmatpush1.bf16.msra.mxu0 0
        %4008 = vmatprep.subr.bf16.mxu0 0
        %4009 = vmatpush1.bf16.msra.mxu0 0
        %4010 = vmatprep.subr.bf16.mxu0 0
        %4011 = vmatpush1.bf16.msra.mxu0 0
        %4012 = vmatprep.subr.bf16.mxu0 0
        %4013 = vmatpush1.bf16.msra.mxu0 0
        %4014 = vmatprep.subr.bf16.mxu0 0
        %4015 = vmatpush1.bf16.msra.mxu0 0
        %4016 = vmatprep.subr.bf16.mxu0 0
        %4017 = vmatpush1.bf16.msra.mxu0 0
        %4018 = vmatprep.subr.bf16.mxu0 0
        %4019 = vmatpush1.bf16.msra.mxu0 0
        %4020 = vmatprep.subr.bf16.mxu0 0
        %4021 = vmatpush1.bf16.msra.mxu0 0
        %4022 = vmatprep.subr.bf16.mxu0 0
        %4023 = vmatpush1.bf16.msra.mxu0 0
        %4024 = vmatprep.subr.bf16.mxu0 0
        %4025 = vmatpush1.bf16.msra.mxu0 0
        %4026 = vmatprep.subr.bf16.mxu0 0
        %4027 = vmatpush1.bf16.msra.mxu0 0
        %4028 = vmatprep.subr.bf16.mxu0 0
        %4029 = vmatpush1.bf16.msra.mxu0 0
        %4030 = vmatprep.subr.bf16.mxu0 0
        %4031 = vmatpush1.bf16.msra.mxu0 0
        %4032 = vmatprep.subr.bf16.mxu0 0
        %4033 = vmatpush1.bf16.msra.mxu0 0
        %4034 = vmatprep.subr.bf16.mxu0 0
        %4035 = vmatpush1.bf16.msra.mxu0 0
        %4036 = vmatprep.mubr.bf16.mxu0 0
        %4037 = vmatmul.mubr.bf16.gmra.mrb[0].mxu0 %v3999
        %v4038 = vpop.f32.mrb[0].mxu0
        %v4039 = vadd.f32 0.0, %v4038
        %v4040 = vpop.f32.mrb[0].mxu0
        %v4041 = vpop.f32.mrb[0].mxu0
        %v4042 = vadd.f32 0.0, %v4041
        %v4043 = vpop.f32.mrb[0].mxu0
        %4044 = vdwg.mxu0
        %v4045 = vadd.f32 %v1020, %v3334
        %v4046 = vadd.f32 %v1023, %v3337
        %v4047 = vadd.f32 %v1028, %v3381
        %v4048 = vadd.f32 %v1031, %v3384
        %v4049 = vadd.f32 %v1036, %v3428
        %v4050 = vadd.f32 %v1039, %v3431
        %v4051 = vadd.f32 %v1044, %v3475
        %v4052 = vadd.f32 %v1047, %v3478
        %v4053 = vadd.f32 %v1052, %v3522
        %v4054 = vadd.f32 %v1055, %v3525
        %v4055 = vadd.f32 %v1060, %v3569
        %v4056 = vadd.f32 %v1063, %v3572
        %v4057 = vadd.f32 %v1068, %v3616
        %v4058 = vadd.f32 %v1071, %v3619
        %v4059 = vadd.f32 %v1076, %v3663
        %v4060 = vadd.f32 %v1079, %v3666
        %v4061 = vadd.f32 %v1084, %v3710
        %v4062 = vadd.f32 %v1087, %v3713
        %v4063 = vadd.f32 %v1092, %v3757
        %v4064 = vadd.f32 %v1095, %v3760
        %v4065 = vadd.f32 %v1100, %v3804
        %v4066 = vadd.f32 %v1103, %v3807
        %v4067 = vadd.f32 %v1108, %v3851
        %v4068 = vadd.f32 %v1111, %v3854
        %v4069 = vadd.f32 %v1116, %v3898
        %v4070 = vadd.f32 %v1119, %v3901
        %v4071 = vadd.f32 %v1124, %v3945
        %v4072 = vadd.f32 %v1127, %v3948
        %v4073 = vadd.f32 %v1132, %v3992
        %v4074 = vadd.f32 %v1135, %v3995
        %v4075 = vadd.f32 %v1140, %v4039
        %v4076 = vadd.f32 %v1143, %v4042
        %v4077 = vtanh.pop %v4045
        %v4078 = vtanh.pop %v4046
        %v4079 = vtanh.pop %v4047
        %v4080 = vtanh.pop %v4048
        %v4081 = vtanh.pop %v4049
        %v4082 = vtanh.pop %v4050
        %v4083 = vtanh.pop %v4051
        %v4084 = vtanh.pop %v4052
        %v4085 = vtanh.pop %v4053
        %v4086 = vtanh.pop %v4054
        %v4087 = vtanh.pop %v4055
        %v4088 = vtanh.pop %v4056
        %v4089 = vtanh.pop %v4057
        %v4090 = vtanh.pop %v4058
        %v4091 = vtanh.pop %v4059
        %v4092 = vtanh.pop %v4060
        %v4093 = vtanh.pop %v4061
        %v4094 = vtanh.pop %v4062
        %v4095 = vtanh.pop %v4063
        %v4096 = vtanh.pop %v4064
        %v4097 = vtanh.pop %v4065
        %v4098 = vtanh.pop %v4066
        %v4099 = vtanh.pop %v4067
        %v4100 = vtanh.pop %v4068
        %v4101 = vtanh.pop %v4069
        %v4102 = vtanh.pop %v4070
        %v4103 = vtanh.pop %v4071
        %v4104 = vtanh.pop %v4072
        %v4105 = vtanh.pop %v4073
        %v4106 = vtanh.pop %v4074
        %v4107 = vtanh.pop %v4075
        %v4108 = vtanh.pop %v4076
        %v4110 = vlaneseq
        %v4111 = vshrl.u32 %v4110, 7
        %v4112 = vsub.s32 0, %v4111
        %v4113 = vrot.slane %v473, %v4112
        %v4115 = vmul.f32 %v3259, %v4113
        %v4116 = vmul.f32 %v3260, %v4113
        %v4117 = vmul.f32 %v3261, %v4113
        %v4118 = vmul.f32 %v3262, %v4113
        %v4119 = vmul.f32 %v3263, %v4113
        %v4120 = vmul.f32 %v3264, %v4113
        %v4121 = vmul.f32 %v3265, %v4113
        %v4122 = vmul.f32 %v3266, %v4113
        %v4123 = vmul.f32 %v3267, %v4113
        %v4124 = vmul.f32 %v3268, %v4113
        %v4125 = vmul.f32 %v3269, %v4113
        %v4126 = vmul.f32 %v3270, %v4113
        %v4127 = vmul.f32 %v3271, %v4113
        %v4128 = vmul.f32 %v3272, %v4113
        %v4129 = vmul.f32 %v3273, %v4113
        %v4130 = vmul.f32 %v3274, %v4113
        %vm4131 = vcmask 654336
        %v4132 = vsel %vm4131, %v4115, 0.0
        %4133 = vadd.xlane.f32.xlu0 %v4132
        %v4134 = vpop.xlane.xlu0 %4133
        %v4135 = vsel %vm4131, %v4116, 0.0
        %4136 = vadd.xlane.f32.xlu0 %v4135
        %v4137 = vpop.xlane.xlu0 %4136
        %v4138 = vsel %vm4131, %v4117, 0.0
        %4139 = vadd.xlane.f32.xlu0 %v4138
        %v4140 = vpop.xlane.xlu0 %4139
        %v4141 = vsel %vm4131, %v4118, 0.0
        %4142 = vadd.xlane.f32.xlu0 %v4141
        %v4143 = vpop.xlane.xlu0 %4142
        %v4144 = vsel %vm4131, %v4119, 0.0
        %4145 = vadd.xlane.f32.xlu0 %v4144
        %v4146 = vpop.xlane.xlu0 %4145
        %v4147 = vsel %vm4131, %v4120, 0.0
        %4148 = vadd.xlane.f32.xlu0 %v4147
        %v4149 = vpop.xlane.xlu0 %4148
        %v4150 = vsel %vm4131, %v4121, 0.0
        %4151 = vadd.xlane.f32.xlu0 %v4150
        %v4152 = vpop.xlane.xlu0 %4151
        %v4153 = vsel %vm4131, %v4122, 0.0
        %4154 = vadd.xlane.f32.xlu0 %v4153
        %v4155 = vpop.xlane.xlu0 %4154
        %v4156 = vsel %vm4131, %v4123, 0.0
        %4157 = vadd.xlane.f32.xlu0 %v4156
        %v4158 = vpop.xlane.xlu0 %4157
        %v4159 = vsel %vm4131, %v4124, 0.0
        %4160 = vadd.xlane.f32.xlu0 %v4159
        %v4161 = vpop.xlane.xlu0 %4160
        %v4162 = vsel %vm4131, %v4125, 0.0
        %4163 = vadd.xlane.f32.xlu0 %v4162
        %v4164 = vpop.xlane.xlu0 %4163
        %v4165 = vsel %vm4131, %v4126, 0.0
        %4166 = vadd.xlane.f32.xlu0 %v4165
        %v4167 = vpop.xlane.xlu0 %4166
        %v4168 = vsel %vm4131, %v4127, 0.0
        %4169 = vadd.xlane.f32.xlu0 %v4168
        %v4170 = vpop.xlane.xlu0 %4169
        %v4171 = vsel %vm4131, %v4128, 0.0
        %4172 = vadd.xlane.f32.xlu0 %v4171
        %v4173 = vpop.xlane.xlu0 %4172
        %v4174 = vsel %vm4131, %v4129, 0.0
        %4175 = vadd.xlane.f32.xlu0 %v4174
        %v4176 = vpop.xlane.xlu0 %4175
        %v4177 = vsel %vm4131, %v4130, 0.0
        %4178 = vadd.xlane.f32.xlu0 %v4177
        %v4179 = vpop.xlane.xlu0 %4178
        %v4181 = vlaneseq
        %v4182 = vshrl.u32 %v4181, 7
        %v4183 = vsub.s32 0, %v4182
        %v4184 = vrot.slane %v474, %v4183
        %v4186 = vmul.f32 %v4077, %v4184
        %v4187 = vmul.f32 %v4078, %v4184
        %v4188 = vmul.f32 %v4079, %v4184
        %v4189 = vmul.f32 %v4080, %v4184
        %v4190 = vmul.f32 %v4081, %v4184
        %v4191 = vmul.f32 %v4082, %v4184
        %v4192 = vmul.f32 %v4083, %v4184
        %v4193 = vmul.f32 %v4084, %v4184
        %v4194 = vmul.f32 %v4085, %v4184
        %v4195 = vmul.f32 %v4086, %v4184
        %v4196 = vmul.f32 %v4087, %v4184
        %v4197 = vmul.f32 %v4088, %v4184
        %v4198 = vmul.f32 %v4089, %v4184
        %v4199 = vmul.f32 %v4090, %v4184
        %v4200 = vmul.f32 %v4091, %v4184
        %v4201 = vmul.f32 %v4092, %v4184
        %v4202 = vmul.f32 %v4093, %v4184
        %v4203 = vmul.f32 %v4094, %v4184
        %v4204 = vmul.f32 %v4095, %v4184
        %v4205 = vmul.f32 %v4096, %v4184
        %v4206 = vmul.f32 %v4097, %v4184
        %v4207 = vmul.f32 %v4098, %v4184
        %v4208 = vmul.f32 %v4099, %v4184
        %v4209 = vmul.f32 %v4100, %v4184
        %v4210 = vmul.f32 %v4101, %v4184
        %v4211 = vmul.f32 %v4102, %v4184
        %v4212 = vmul.f32 %v4103, %v4184
        %v4213 = vmul.f32 %v4104, %v4184
        %v4214 = vmul.f32 %v4105, %v4184
        %v4215 = vmul.f32 %v4106, %v4184
        %v4216 = vmul.f32 %v4107, %v4184
        %v4217 = vmul.f32 %v4108, %v4184
        %v4218 = vsel %vm4131, %v4186, 0.0
        %4219 = vadd.xlane.f32.xlu0 %v4218
        %v4220 = vpop.xlane.xlu0 %4219
        %v4221 = vsel %vm4131, %v4187, 0.0
        %4222 = vadd.xlane.f32.xlu0 %v4221
        %v4223 = vpop.xlane.xlu0 %4222
        %v4224 = vsel %vm4131, %v4188, 0.0
        %4225 = vadd.xlane.f32.xlu0 %v4224
        %v4226 = vpop.xlane.xlu0 %4225
        %v4227 = vsel %vm4131, %v4189, 0.0
        %4228 = vadd.xlane.f32.xlu0 %v4227
        %v4229 = vpop.xlane.xlu0 %4228
        %v4230 = vsel %vm4131, %v4190, 0.0
        %4231 = vadd.xlane.f32.xlu0 %v4230
        %v4232 = vpop.xlane.xlu0 %4231
        %v4233 = vsel %vm4131, %v4191, 0.0
        %4234 = vadd.xlane.f32.xlu0 %v4233
        %v4235 = vpop.xlane.xlu0 %4234
        %v4236 = vsel %vm4131, %v4192, 0.0
        %4237 = vadd.xlane.f32.xlu0 %v4236
        %v4238 = vpop.xlane.xlu0 %4237
        %v4239 = vsel %vm4131, %v4193, 0.0
        %4240 = vadd.xlane.f32.xlu0 %v4239
        %v4241 = vpop.xlane.xlu0 %4240
        %v4242 = vsel %vm4131, %v4194, 0.0
        %4243 = vadd.xlane.f32.xlu0 %v4242
        %v4244 = vpop.xlane.xlu0 %4243
        %v4245 = vsel %vm4131, %v4195, 0.0
        %4246 = vadd.xlane.f32.xlu0 %v4245
        %v4247 = vpop.xlane.xlu0 %4246
        %v4248 = vsel %vm4131, %v4196, 0.0
        %4249 = vadd.xlane.f32.xlu0 %v4248
        %v4250 = vpop.xlane.xlu0 %4249
        %v4251 = vsel %vm4131, %v4197, 0.0
        %4252 = vadd.xlane.f32.xlu0 %v4251
        %v4253 = vpop.xlane.xlu0 %4252
        %v4254 = vsel %vm4131, %v4198, 0.0
        %4255 = vadd.xlane.f32.xlu0 %v4254
        %v4256 = vpop.xlane.xlu0 %4255
        %v4257 = vsel %vm4131, %v4199, 0.0
        %4258 = vadd.xlane.f32.xlu0 %v4257
        %v4259 = vpop.xlane.xlu0 %4258
        %v4260 = vsel %vm4131, %v4200, 0.0
        %4261 = vadd.xlane.f32.xlu0 %v4260
        %v4262 = vpop.xlane.xlu0 %4261
        %v4263 = vsel %vm4131, %v4201, 0.0
        %4264 = vadd.xlane.f32.xlu0 %v4263
        %v4265 = vpop.xlane.xlu0 %4264
        %v4266 = vsel %vm4131, %v4202, 0.0
        %4267 = vadd.xlane.f32.xlu0 %v4266
        %v4268 = vpop.xlane.xlu0 %4267
        %v4269 = vsel %vm4131, %v4203, 0.0
        %4270 = vadd.xlane.f32.xlu0 %v4269
        %v4271 = vpop.xlane.xlu0 %4270
        %v4272 = vsel %vm4131, %v4204, 0.0
        %4273 = vadd.xlane.f32.xlu0 %v4272
        %v4274 = vpop.xlane.xlu0 %4273
        %v4275 = vsel %vm4131, %v4205, 0.0
        %4276 = vadd.xlane.f32.xlu0 %v4275
        %v4277 = vpop.xlane.xlu0 %4276
        %v4278 = vsel %vm4131, %v4206, 0.0
        %4279 = vadd.xlane.f32.xlu0 %v4278
        %v4280 = vpop.xlane.xlu0 %4279
        %v4281 = vsel %vm4131, %v4207, 0.0
        %4282 = vadd.xlane.f32.xlu0 %v4281
        %v4283 = vpop.xlane.xlu0 %4282
        %v4284 = vsel %vm4131, %v4208, 0.0
        %4285 = vadd.xlane.f32.xlu0 %v4284
        %v4286 = vpop.xlane.xlu0 %4285
        %v4287 = vsel %vm4131, %v4209, 0.0
        %4288 = vadd.xlane.f32.xlu0 %v4287
        %v4289 = vpop.xlane.xlu0 %4288
        %v4290 = vsel %vm4131, %v4210, 0.0
        %4291 = vadd.xlane.f32.xlu0 %v4290
        %v4292 = vpop.xlane.xlu0 %4291
        %v4293 = vsel %vm4131, %v4211, 0.0
        %4294 = vadd.xlane.f32.xlu0 %v4293
        %v4295 = vpop.xlane.xlu0 %4294
        %v4296 = vsel %vm4131, %v4212, 0.0
        %4297 = vadd.xlane.f32.xlu0 %v4296
        %v4298 = vpop.xlane.xlu0 %4297
        %v4299 = vsel %vm4131, %v4213, 0.0
        %4300 = vadd.xlane.f32.xlu0 %v4299
        %v4301 = vpop.xlane.xlu0 %4300
        %v4302 = vsel %vm4131, %v4214, 0.0
        %4303 = vadd.xlane.f32.xlu0 %v4302
        %v4304 = vpop.xlane.xlu0 %4303
        %v4305 = vsel %vm4131, %v4215, 0.0
        %4306 = vadd.xlane.f32.xlu0 %v4305
        %v4307 = vpop.xlane.xlu0 %4306
        %v4308 = vsel %vm4131, %v4216, 0.0
        %4309 = vadd.xlane.f32.xlu0 %v4308
        %v4310 = vpop.xlane.xlu0 %4309
        %v4311 = vsel %vm4131, %v4217, 0.0
        %4312 = vadd.xlane.f32.xlu0 %v4311
        %v4313 = vpop.xlane.xlu0 %4312
        %v4314 = vrot.slane %v4134, 4
        %v4315 = vmax.f32 %v4134, %v4314
        %v4316 = vrot.slane %v4315, 2
        %v4317 = vmax.f32 %v4315, %v4316
        %v4318 = vrot.slane %v4317, 1
        %v4319 = vmax.f32 %v4317, %v4318
        %v4320 = vrot.slane %v4137, 4
        %v4321 = vmax.f32 %v4137, %v4320
        %v4322 = vrot.slane %v4321, 2
        %v4323 = vmax.f32 %v4321, %v4322
        %v4324 = vrot.slane %v4323, 1
        %v4325 = vmax.f32 %v4323, %v4324
        %v4326 = vrot.slane %v4140, 4
        %v4327 = vmax.f32 %v4140, %v4326
        %v4328 = vrot.slane %v4327, 2
        %v4329 = vmax.f32 %v4327, %v4328
        %v4330 = vrot.slane %v4329, 1
        %v4331 = vmax.f32 %v4329, %v4330
        %v4332 = vrot.slane %v4143, 4
        %v4333 = vmax.f32 %v4143, %v4332
        %v4334 = vrot.slane %v4333, 2
        %v4335 = vmax.f32 %v4333, %v4334
        %v4336 = vrot.slane %v4335, 1
        %v4337 = vmax.f32 %v4335, %v4336
        %v4338 = vrot.slane %v4146, 4
        %v4339 = vmax.f32 %v4146, %v4338
        %v4340 = vrot.slane %v4339, 2
        %v4341 = vmax.f32 %v4339, %v4340
        %v4342 = vrot.slane %v4341, 1
        %v4343 = vmax.f32 %v4341, %v4342
        %v4344 = vrot.slane %v4149, 4
        %v4345 = vmax.f32 %v4149, %v4344
        %v4346 = vrot.slane %v4345, 2
        %v4347 = vmax.f32 %v4345, %v4346
        %v4348 = vrot.slane %v4347, 1
        %v4349 = vmax.f32 %v4347, %v4348
        %v4350 = vrot.slane %v4152, 4
        %v4351 = vmax.f32 %v4152, %v4350
        %v4352 = vrot.slane %v4351, 2
        %v4353 = vmax.f32 %v4351, %v4352
        %v4354 = vrot.slane %v4353, 1
        %v4355 = vmax.f32 %v4353, %v4354
        %v4356 = vrot.slane %v4155, 4
        %v4357 = vmax.f32 %v4155, %v4356
        %v4358 = vrot.slane %v4357, 2
        %v4359 = vmax.f32 %v4357, %v4358
        %v4360 = vrot.slane %v4359, 1
        %v4361 = vmax.f32 %v4359, %v4360
        %v4362 = vrot.slane %v4158, 4
        %v4363 = vmax.f32 %v4158, %v4362
        %v4364 = vrot.slane %v4363, 2
        %v4365 = vmax.f32 %v4363, %v4364
        %v4366 = vrot.slane %v4365, 1
        %v4367 = vmax.f32 %v4365, %v4366
        %v4368 = vrot.slane %v4161, 4
        %v4369 = vmax.f32 %v4161, %v4368
        %v4370 = vrot.slane %v4369, 2
        %v4371 = vmax.f32 %v4369, %v4370
        %v4372 = vrot.slane %v4371, 1
        %v4373 = vmax.f32 %v4371, %v4372
        %v4374 = vrot.slane %v4164, 4
        %v4375 = vmax.f32 %v4164, %v4374
        %v4376 = vrot.slane %v4375, 2
        %v4377 = vmax.f32 %v4375, %v4376
        %v4378 = vrot.slane %v4377, 1
        %v4379 = vmax.f32 %v4377, %v4378
        %v4380 = vrot.slane %v4167, 4
        %v4381 = vmax.f32 %v4167, %v4380
        %v4382 = vrot.slane %v4381, 2
        %v4383 = vmax.f32 %v4381, %v4382
        %v4384 = vrot.slane %v4383, 1
        %v4385 = vmax.f32 %v4383, %v4384
        %v4386 = vrot.slane %v4170, 4
        %v4387 = vmax.f32 %v4170, %v4386
        %v4388 = vrot.slane %v4387, 2
        %v4389 = vmax.f32 %v4387, %v4388
        %v4390 = vrot.slane %v4389, 1
        %v4391 = vmax.f32 %v4389, %v4390
        %v4392 = vrot.slane %v4173, 4
        %v4393 = vmax.f32 %v4173, %v4392
        %v4394 = vrot.slane %v4393, 2
        %v4395 = vmax.f32 %v4393, %v4394
        %v4396 = vrot.slane %v4395, 1
        %v4397 = vmax.f32 %v4395, %v4396
        %v4398 = vrot.slane %v4176, 4
        %v4399 = vmax.f32 %v4176, %v4398
        %v4400 = vrot.slane %v4399, 2
        %v4401 = vmax.f32 %v4399, %v4400
        %v4402 = vrot.slane %v4401, 1
        %v4403 = vmax.f32 %v4401, %v4402
        %v4404 = vrot.slane %v4179, 4
        %v4405 = vmax.f32 %v4179, %v4404
        %v4406 = vrot.slane %v4405, 2
        %v4407 = vmax.f32 %v4405, %v4406
        %v4408 = vrot.slane %v4407, 1
        %v4409 = vmax.f32 %v4407, %v4408
        %v4410 = vsub.f32 %v4134, %v4319
        %v4411 = vsub.f32 %v4137, %v4325
        %v4412 = vsub.f32 %v4140, %v4331
        %v4413 = vsub.f32 %v4143, %v4337
        %v4414 = vsub.f32 %v4146, %v4343
        %v4415 = vsub.f32 %v4149, %v4349
        %v4416 = vsub.f32 %v4152, %v4355
        %v4417 = vsub.f32 %v4155, %v4361
        %v4418 = vsub.f32 %v4158, %v4367
        %v4419 = vsub.f32 %v4161, %v4373
        %v4420 = vsub.f32 %v4164, %v4379
        %v4421 = vsub.f32 %v4167, %v4385
        %v4422 = vsub.f32 %v4170, %v4391
        %v4423 = vsub.f32 %v4173, %v4397
        %v4424 = vsub.f32 %v4176, %v4403
        %v4425 = vsub.f32 %v4179, %v4409
        %v4426 = vmul.f32 %v4410, 1.442695
        %v4427 = vpow.pop %v4426
        %v4428 = vmul.f32 %v4411, 1.442695
        %v4429 = vpow.pop %v4428
        %v4430 = vmul.f32 %v4412, 1.442695
        %v4431 = vpow.pop %v4430
        %v4432 = vmul.f32 %v4413, 1.442695
        %v4433 = vpow.pop %v4432
        %v4434 = vmul.f32 %v4414, 1.442695
        %v4435 = vpow.pop %v4434
        %v4436 = vmul.f32 %v4415, 1.442695
        %v4437 = vpow.pop %v4436
        %v4438 = vmul.f32 %v4416, 1.442695
        %v4439 = vpow.pop %v4438
        %v4440 = vmul.f32 %v4417, 1.442695
        %v4441 = vpow.pop %v4440
        %v4442 = vmul.f32 %v4418, 1.442695
        %v4443 = vpow.pop %v4442
        %v4444 = vmul.f32 %v4419, 1.442695
        %v4445 = vpow.pop %v4444
        %v4446 = vmul.f32 %v4420, 1.442695
        %v4447 = vpow.pop %v4446
        %v4448 = vmul.f32 %v4421, 1.442695
        %v4449 = vpow.pop %v4448
        %v4450 = vmul.f32 %v4422, 1.442695
        %v4451 = vpow.pop %v4450
        %v4452 = vmul.f32 %v4423, 1.442695
        %v4453 = vpow.pop %v4452
        %v4454 = vmul.f32 %v4424, 1.442695
        %v4455 = vpow.pop %v4454
        %v4456 = vmul.f32 %v4425, 1.442695
        %v4457 = vpow.pop %v4456
        %v4458 = vrot.slane %v4427, 4
        %v4459 = vadd.f32 %v4427, %v4458
        %v4460 = vrot.slane %v4459, 2
        %v4461 = vadd.f32 %v4459, %v4460
        %v4462 = vrot.slane %v4461, 1
        %v4463 = vadd.f32 %v4461, %v4462
        %v4464 = vrot.slane %v4429, 4
        %v4465 = vadd.f32 %v4429, %v4464
        %v4466 = vrot.slane %v4465, 2
        %v4467 = vadd.f32 %v4465, %v4466
        %v4468 = vrot.slane %v4467, 1
        %v4469 = vadd.f32 %v4467, %v4468
        %v4470 = vrot.slane %v4431, 4
        %v4471 = vadd.f32 %v4431, %v4470
        %v4472 = vrot.slane %v4471, 2
        %v4473 = vadd.f32 %v4471, %v4472
        %v4474 = vrot.slane %v4473, 1
        %v4475 = vadd.f32 %v4473, %v4474
        %v4476 = vrot.slane %v4433, 4
        %v4477 = vadd.f32 %v4433, %v4476
        %v4478 = vrot.slane %v4477, 2
        %v4479 = vadd.f32 %v4477, %v4478
        %v4480 = vrot.slane %v4479, 1
        %v4481 = vadd.f32 %v4479, %v4480
        %v4482 = vrot.slane %v4435, 4
        %v4483 = vadd.f32 %v4435, %v4482
        %v4484 = vrot.slane %v4483, 2
        %v4485 = vadd.f32 %v4483, %v4484
        %v4486 = vrot.slane %v4485, 1
        %v4487 = vadd.f32 %v4485, %v4486
        %v4488 = vrot.slane %v4437, 4
        %v4489 = vadd.f32 %v4437, %v4488
        %v4490 = vrot.slane %v4489, 2
        %v4491 = vadd.f32 %v4489, %v4490
        %v4492 = vrot.slane %v4491, 1
        %v4493 = vadd.f32 %v4491, %v4492
        %v4494 = vrot.slane %v4439, 4
        %v4495 = vadd.f32 %v4439, %v4494
        %v4496 = vrot.slane %v4495, 2
        %v4497 = vadd.f32 %v4495, %v4496
        %v4498 = vrot.slane %v4497, 1
        %v4499 = vadd.f32 %v4497, %v4498
        %v4500 = vrot.slane %v4441, 4
        %v4501 = vadd.f32 %v4441, %v4500
        %v4502 = vrot.slane %v4501, 2
        %v4503 = vadd.f32 %v4501, %v4502
        %v4504 = vrot.slane %v4503, 1
        %v4505 = vadd.f32 %v4503, %v4504
        %v4506 = vrot.slane %v4443, 4
        %v4507 = vadd.f32 %v4443, %v4506
        %v4508 = vrot.slane %v4507, 2
        %v4509 = vadd.f32 %v4507, %v4508
        %v4510 = vrot.slane %v4509, 1
        %v4511 = vadd.f32 %v4509, %v4510
        %v4512 = vrot.slane %v4445, 4
        %v4513 = vadd.f32 %v4445, %v4512
        %v4514 = vrot.slane %v4513, 2
        %v4515 = vadd.f32 %v4513, %v4514
        %v4516 = vrot.slane %v4515, 1
        %v4517 = vadd.f32 %v4515, %v4516
        %v4518 = vrot.slane %v4447, 4
        %v4519 = vadd.f32 %v4447, %v4518
        %v4520 = vrot.slane %v4519, 2
        %v4521 = vadd.f32 %v4519, %v4520
        %v4522 = vrot.slane %v4521, 1
        %v4523 = vadd.f32 %v4521, %v4522
        %v4524 = vrot.slane %v4449, 4
        %v4525 = vadd.f32 %v4449, %v4524
        %v4526 = vrot.slane %v4525, 2
        %v4527 = vadd.f32 %v4525, %v4526
        %v4528 = vrot.slane %v4527, 1
        %v4529 = vadd.f32 %v4527, %v4528
        %v4530 = vrot.slane %v4451, 4
        %v4531 = vadd.f32 %v4451, %v4530
        %v4532 = vrot.slane %v4531, 2
        %v4533 = vadd.f32 %v4531, %v4532
        %v4534 = vrot.slane %v4533, 1
        %v4535 = vadd.f32 %v4533, %v4534
        %v4536 = vrot.slane %v4453, 4
        %v4537 = vadd.f32 %v4453, %v4536
        %v4538 = vrot.slane %v4537, 2
        %v4539 = vadd.f32 %v4537, %v4538
        %v4540 = vrot.slane %v4539, 1
        %v4541 = vadd.f32 %v4539, %v4540
        %v4542 = vrot.slane %v4455, 4
        %v4543 = vadd.f32 %v4455, %v4542
        %v4544 = vrot.slane %v4543, 2
        %v4545 = vadd.f32 %v4543, %v4544
        %v4546 = vrot.slane %v4545, 1
        %v4547 = vadd.f32 %v4545, %v4546
        %v4548 = vrot.slane %v4457, 4
        %v4549 = vadd.f32 %v4457, %v4548
        %v4550 = vrot.slane %v4549, 2
        %v4551 = vadd.f32 %v4549, %v4550
        %v4552 = vrot.slane %v4551, 1
        %v4553 = vadd.f32 %v4551, %v4552
        %v4554 = vrcp.pop %v4463
        %v4555 = vmul.f32 %v4427, %v4554
        %v4556 = vrcp.pop %v4469
        %v4557 = vmul.f32 %v4429, %v4556
        %v4558 = vrcp.pop %v4475
        %v4559 = vmul.f32 %v4431, %v4558
        %v4560 = vrcp.pop %v4481
        %v4561 = vmul.f32 %v4433, %v4560
        %v4562 = vrcp.pop %v4487
        %v4563 = vmul.f32 %v4435, %v4562
        %v4564 = vrcp.pop %v4493
        %v4565 = vmul.f32 %v4437, %v4564
        %v4566 = vrcp.pop %v4499
        %v4567 = vmul.f32 %v4439, %v4566
        %v4568 = vrcp.pop %v4505
        %v4569 = vmul.f32 %v4441, %v4568
        %v4570 = vrcp.pop %v4511
        %v4571 = vmul.f32 %v4443, %v4570
        %v4572 = vrcp.pop %v4517
        %v4573 = vmul.f32 %v4445, %v4572
        %v4574 = vrcp.pop %v4523
        %v4575 = vmul.f32 %v4447, %v4574
        %v4576 = vrcp.pop %v4529
        %v4577 = vmul.f32 %v4449, %v4576
        %v4578 = vrcp.pop %v4535
        %v4579 = vmul.f32 %v4451, %v4578
        %v4580 = vrcp.pop %v4541
        %v4581 = vmul.f32 %v4453, %v4580
        %v4582 = vrcp.pop %v4547
        %v4583 = vmul.f32 %v4455, %v4582
        %v4584 = vrcp.pop %v4553
        %v4585 = vmul.f32 %v4457, %v4584
        %v4586 = vmax.f32 %v4220, %v4223
        %v4587 = vrot.slane %v4586, 4
        %v4588 = vmax.f32 %v4586, %v4587
        %v4589 = vrot.slane %v4588, 2
        %v4590 = vmax.f32 %v4588, %v4589
        %v4591 = vrot.slane %v4590, 1
        %v4592 = vmax.f32 %v4590, %v4591
        %v4593 = vmax.f32 %v4226, %v4229
        %v4594 = vrot.slane %v4593, 4
        %v4595 = vmax.f32 %v4593, %v4594
        %v4596 = vrot.slane %v4595, 2
        %v4597 = vmax.f32 %v4595, %v4596
        %v4598 = vrot.slane %v4597, 1
        %v4599 = vmax.f32 %v4597, %v4598
        %v4600 = vmax.f32 %v4232, %v4235
        %v4601 = vrot.slane %v4600, 4
        %v4602 = vmax.f32 %v4600, %v4601
        %v4603 = vrot.slane %v4602, 2
        %v4604 = vmax.f32 %v4602, %v4603
        %v4605 = vrot.slane %v4604, 1
        %v4606 = vmax.f32 %v4604, %v4605
        %v4607 = vmax.f32 %v4238, %v4241
        %v4608 = vrot.slane %v4607, 4
        %v4609 = vmax.f32 %v4607, %v4608
        %v4610 = vrot.slane %v4609, 2
        %v4611 = vmax.f32 %v4609, %v4610
        %v4612 = vrot.slane %v4611, 1
        %v4613 = vmax.f32 %v4611, %v4612
        %v4614 = vmax.f32 %v4244, %v4247
        %v4615 = vrot.slane %v4614, 4
        %v4616 = vmax.f32 %v4614, %v4615
        %v4617 = vrot.slane %v4616, 2
        %v4618 = vmax.f32 %v4616, %v4617
        %v4619 = vrot.slane %v4618, 1
        %v4620 = vmax.f32 %v4618, %v4619
        %v4621 = vmax.f32 %v4250, %v4253
        %v4622 = vrot.slane %v4621, 4
        %v4623 = vmax.f32 %v4621, %v4622
        %v4624 = vrot.slane %v4623, 2
        %v4625 = vmax.f32 %v4623, %v4624
        %v4626 = vrot.slane %v4625, 1
        %v4627 = vmax.f32 %v4625, %v4626
        %v4628 = vmax.f32 %v4256, %v4259
        %v4629 = vrot.slane %v4628, 4
        %v4630 = vmax.f32 %v4628, %v4629
        %v4631 = vrot.slane %v4630, 2
        %v4632 = vmax.f32 %v4630, %v4631
        %v4633 = vrot.slane %v4632, 1
        %v4634 = vmax.f32 %v4632, %v4633
        %v4635 = vmax.f32 %v4262, %v4265
        %v4636 = vrot.slane %v4635, 4
        %v4637 = vmax.f32 %v4635, %v4636
        %v4638 = vrot.slane %v4637, 2
        %v4639 = vmax.f32 %v4637, %v4638
        %v4640 = vrot.slane %v4639, 1
        %v4641 = vmax.f32 %v4639, %v4640
        %v4642 = vmax.f32 %v4268, %v4271
        %v4643 = vrot.slane %v4642, 4
        %v4644 = vmax.f32 %v4642, %v4643
        %v4645 = vrot.slane %v4644, 2
        %v4646 = vmax.f32 %v4644, %v4645
        %v4647 = vrot.slane %v4646, 1
        %v4648 = vmax.f32 %v4646, %v4647
        %v4649 = vmax.f32 %v4274, %v4277
        %v4650 = vrot.slane %v4649, 4
        %v4651 = vmax.f32 %v4649, %v4650
        %v4652 = vrot.slane %v4651, 2
        %v4653 = vmax.f32 %v4651, %v4652
        %v4654 = vrot.slane %v4653, 1
        %v4655 = vmax.f32 %v4653, %v4654
        %v4656 = vmax.f32 %v4280, %v4283
        %v4657 = vrot.slane %v4656, 4
        %v4658 = vmax.f32 %v4656, %v4657
        %v4659 = vrot.slane %v4658, 2
        %v4660 = vmax.f32 %v4658, %v4659
        %v4661 = vrot.slane %v4660, 1
        %v4662 = vmax.f32 %v4660, %v4661
        %v4663 = vmax.f32 %v4286, %v4289
        %v4664 = vrot.slane %v4663, 4
        %v4665 = vmax.f32 %v4663, %v4664
        %v4666 = vrot.slane %v4665, 2
        %v4667 = vmax.f32 %v4665, %v4666
        %v4668 = vrot.slane %v4667, 1
        %v4669 = vmax.f32 %v4667, %v4668
        %v4670 = vmax.f32 %v4292, %v4295
        %v4671 = vrot.slane %v4670, 4
        %v4672 = vmax.f32 %v4670, %v4671
        %v4673 = vrot.slane %v4672, 2
        %v4674 = vmax.f32 %v4672, %v4673
        %v4675 = vrot.slane %v4674, 1
        %v4676 = vmax.f32 %v4674, %v4675
        %v4677 = vmax.f32 %v4298, %v4301
        %v4678 = vrot.slane %v4677, 4
        %v4679 = vmax.f32 %v4677, %v4678
        %v4680 = vrot.slane %v4679, 2
        %v4681 = vmax.f32 %v4679, %v4680
        %v4682 = vrot.slane %v4681, 1
        %v4683 = vmax.f32 %v4681, %v4682
        %v4684 = vmax.f32 %v4304, %v4307
        %v4685 = vrot.slane %v4684, 4
        %v4686 = vmax.f32 %v4684, %v4685
        %v4687 = vrot.slane %v4686, 2
        %v4688 = vmax.f32 %v4686, %v4687
        %v4689 = vrot.slane %v4688, 1
        %v4690 = vmax.f32 %v4688, %v4689
        %v4691 = vmax.f32 %v4310, %v4313
        %v4692 = vrot.slane %v4691, 4
        %v4693 = vmax.f32 %v4691, %v4692
        %v4694 = vrot.slane %v4693, 2
        %v4695 = vmax.f32 %v4693, %v4694
        %v4696 = vrot.slane %v4695, 1
        %v4697 = vmax.f32 %v4695, %v4696
        %v4698 = vsub.f32 %v4220, %v4592
        %v4699 = vsub.f32 %v4223, %v4592
        %v4700 = vsub.f32 %v4226, %v4599
        %v4701 = vsub.f32 %v4229, %v4599
        %v4702 = vsub.f32 %v4232, %v4606
        %v4703 = vsub.f32 %v4235, %v4606
        %v4704 = vsub.f32 %v4238, %v4613
        %v4705 = vsub.f32 %v4241, %v4613
        %v4706 = vsub.f32 %v4244, %v4620
        %v4707 = vsub.f32 %v4247, %v4620
        %v4708 = vsub.f32 %v4250, %v4627
        %v4709 = vsub.f32 %v4253, %v4627
        %v4710 = vsub.f32 %v4256, %v4634
        %v4711 = vsub.f32 %v4259, %v4634
        %v4712 = vsub.f32 %v4262, %v4641
        %v4713 = vsub.f32 %v4265, %v4641
        %v4714 = vsub.f32 %v4268, %v4648
        %v4715 = vsub.f32 %v4271, %v4648
        %v4716 = vsub.f32 %v4274, %v4655
        %v4717 = vsub.f32 %v4277, %v4655
        %v4718 = vsub.f32 %v4280, %v4662
        %v4719 = vsub.f32 %v4283, %v4662
        %v4720 = vsub.f32 %v4286, %v4669
        %v4721 = vsub.f32 %v4289, %v4669
        %v4722 = vsub.f32 %v4292, %v4676
        %v4723 = vsub.f32 %v4295, %v4676
        %v4724 = vsub.f32 %v4298, %v4683
        %v4725 = vsub.f32 %v4301, %v4683
        %v4726 = vsub.f32 %v4304, %v4690
        %v4727 = vsub.f32 %v4307, %v4690
        %v4728 = vsub.f32 %v4310, %v4697
        %v4729 = vsub.f32 %v4313, %v4697
        %v4730 = vmul.f32 %v4698, 1.442695
        %v4731 = vpow.pop %v4730
        %v4732 = vmul.f32 %v4699, 1.442695
        %v4733 = vpow.pop %v4732
        %v4734 = vmul.f32 %v4700, 1.442695
        %v4735 = vpow.pop %v4734
        %v4736 = vmul.f32 %v4701, 1.442695
        %v4737 = vpow.pop %v4736
        %v4738 = vmul.f32 %v4702, 1.442695
        %v4739 = vpow.pop %v4738
        %v4740 = vmul.f32 %v4703, 1.442695
        %v4741 = vpow.pop %v4740
        %v4742 = vmul.f32 %v4704, 1.442695
        %v4743 = vpow.pop %v4742
        %v4744 = vmul.f32 %v4705, 1.442695
        %v4745 = vpow.pop %v4744
        %v4746 = vmul.f32 %v4706, 1.442695
        %v4747 = vpow.pop %v4746
        %v4748 = vmul.f32 %v4707, 1.442695
        %v4749 = vpow.pop %v4748
        %v4750 = vmul.f32 %v4708, 1.442695
        %v4751 = vpow.pop %v4750
        %v4752 = vmul.f32 %v4709, 1.442695
        %v4753 = vpow.pop %v4752
        %v4754 = vmul.f32 %v4710, 1.442695
        %v4755 = vpow.pop %v4754
        %v4756 = vmul.f32 %v4711, 1.442695
        %v4757 = vpow.pop %v4756
        %v4758 = vmul.f32 %v4712, 1.442695
        %v4759 = vpow.pop %v4758
        %v4760 = vmul.f32 %v4713, 1.442695
        %v4761 = vpow.pop %v4760
        %v4762 = vmul.f32 %v4714, 1.442695
        %v4763 = vpow.pop %v4762
        %v4764 = vmul.f32 %v4715, 1.442695
        %v4765 = vpow.pop %v4764
        %v4766 = vmul.f32 %v4716, 1.442695
        %v4767 = vpow.pop %v4766
        %v4768 = vmul.f32 %v4717, 1.442695
        %v4769 = vpow.pop %v4768
        %v4770 = vmul.f32 %v4718, 1.442695
        %v4771 = vpow.pop %v4770
        %v4772 = vmul.f32 %v4719, 1.442695
        %v4773 = vpow.pop %v4772
        %v4774 = vmul.f32 %v4720, 1.442695
        %v4775 = vpow.pop %v4774
        %v4776 = vmul.f32 %v4721, 1.442695
        %v4777 = vpow.pop %v4776
        %v4778 = vmul.f32 %v4722, 1.442695
        %v4779 = vpow.pop %v4778
        %v4780 = vmul.f32 %v4723, 1.442695
        %v4781 = vpow.pop %v4780
        %v4782 = vmul.f32 %v4724, 1.442695
        %v4783 = vpow.pop %v4782
        %v4784 = vmul.f32 %v4725, 1.442695
        %v4785 = vpow.pop %v4784
        %v4786 = vmul.f32 %v4726, 1.442695
        %v4787 = vpow.pop %v4786
        %v4788 = vmul.f32 %v4727, 1.442695
        %v4789 = vpow.pop %v4788
        %v4790 = vmul.f32 %v4728, 1.442695
        %v4791 = vpow.pop %v4790
        %v4792 = vmul.f32 %v4729, 1.442695
        %v4793 = vpow.pop %v4792
        %v4794 = vadd.f32 %v4731, %v4733
        %v4795 = vrot.slane %v4794, 4
        %v4796 = vadd.f32 %v4794, %v4795
        %v4797 = vrot.slane %v4796, 2
        %v4798 = vadd.f32 %v4796, %v4797
        %v4799 = vrot.slane %v4798, 1
        %v4800 = vadd.f32 %v4798, %v4799
        %v4801 = vadd.f32 %v4735, %v4737
        %v4802 = vrot.slane %v4801, 4
        %v4803 = vadd.f32 %v4801, %v4802
        %v4804 = vrot.slane %v4803, 2
        %v4805 = vadd.f32 %v4803, %v4804
        %v4806 = vrot.slane %v4805, 1
        %v4807 = vadd.f32 %v4805, %v4806
        %v4808 = vadd.f32 %v4739, %v4741
        %v4809 = vrot.slane %v4808, 4
        %v4810 = vadd.f32 %v4808, %v4809
        %v4811 = vrot.slane %v4810, 2
        %v4812 = vadd.f32 %v4810, %v4811
        %v4813 = vrot.slane %v4812, 1
        %v4814 = vadd.f32 %v4812, %v4813
        %v4815 = vadd.f32 %v4743, %v4745
        %v4816 = vrot.slane %v4815, 4
        %v4817 = vadd.f32 %v4815, %v4816
        %v4818 = vrot.slane %v4817, 2
        %v4819 = vadd.f32 %v4817, %v4818
        %v4820 = vrot.slane %v4819, 1
        %v4821 = vadd.f32 %v4819, %v4820
        %v4822 = vadd.f32 %v4747, %v4749
        %v4823 = vrot.slane %v4822, 4
        %v4824 = vadd.f32 %v4822, %v4823
        %v4825 = vrot.slane %v4824, 2
        %v4826 = vadd.f32 %v4824, %v4825
        %v4827 = vrot.slane %v4826, 1
        %v4828 = vadd.f32 %v4826, %v4827
        %v4829 = vadd.f32 %v4751, %v4753
        %v4830 = vrot.slane %v4829, 4
        %v4831 = vadd.f32 %v4829, %v4830
        %v4832 = vrot.slane %v4831, 2
        %v4833 = vadd.f32 %v4831, %v4832
        %v4834 = vrot.slane %v4833, 1
        %v4835 = vadd.f32 %v4833, %v4834
        %v4836 = vadd.f32 %v4755, %v4757
        %v4837 = vrot.slane %v4836, 4
        %v4838 = vadd.f32 %v4836, %v4837
        %v4839 = vrot.slane %v4838, 2
        %v4840 = vadd.f32 %v4838, %v4839
        %v4841 = vrot.slane %v4840, 1
        %v4842 = vadd.f32 %v4840, %v4841
        %v4843 = vadd.f32 %v4759, %v4761
        %v4844 = vrot.slane %v4843, 4
        %v4845 = vadd.f32 %v4843, %v4844
        %v4846 = vrot.slane %v4845, 2
        %v4847 = vadd.f32 %v4845, %v4846
        %v4848 = vrot.slane %v4847, 1
        %v4849 = vadd.f32 %v4847, %v4848
        %v4850 = vadd.f32 %v4763, %v4765
        %v4851 = vrot.slane %v4850, 4
        %v4852 = vadd.f32 %v4850, %v4851
        %v4853 = vrot.slane %v4852, 2
        %v4854 = vadd.f32 %v4852, %v4853
        %v4855 = vrot.slane %v4854, 1
        %v4856 = vadd.f32 %v4854, %v4855
        %v4857 = vadd.f32 %v4767, %v4769
        %v4858 = vrot.slane %v4857, 4
        %v4859 = vadd.f32 %v4857, %v4858
        %v4860 = vrot.slane %v4859, 2
        %v4861 = vadd.f32 %v4859, %v4860
        %v4862 = vrot.slane %v4861, 1
        %v4863 = vadd.f32 %v4861, %v4862
        %v4864 = vadd.f32 %v4771, %v4773
        %v4865 = vrot.slane %v4864, 4
        %v4866 = vadd.f32 %v4864, %v4865
        %v4867 = vrot.slane %v4866, 2
        %v4868 = vadd.f32 %v4866, %v4867
        %v4869 = vrot.slane %v4868, 1
        %v4870 = vadd.f32 %v4868, %v4869
        %v4871 = vadd.f32 %v4775, %v4777
        %v4872 = vrot.slane %v4871, 4
        %v4873 = vadd.f32 %v4871, %v4872
        %v4874 = vrot.slane %v4873, 2
        %v4875 = vadd.f32 %v4873, %v4874
        %v4876 = vrot.slane %v4875, 1
        %v4877 = vadd.f32 %v4875, %v4876
        %v4878 = vadd.f32 %v4779, %v4781
        %v4879 = vrot.slane %v4878, 4
        %v4880 = vadd.f32 %v4878, %v4879
        %v4881 = vrot.slane %v4880, 2
        %v4882 = vadd.f32 %v4880, %v4881
        %v4883 = vrot.slane %v4882, 1
        %v4884 = vadd.f32 %v4882, %v4883
        %v4885 = vadd.f32 %v4783, %v4785
        %v4886 = vrot.slane %v4885, 4
        %v4887 = vadd.f32 %v4885, %v4886
        %v4888 = vrot.slane %v4887, 2
        %v4889 = vadd.f32 %v4887, %v4888
        %v4890 = vrot.slane %v4889, 1
        %v4891 = vadd.f32 %v4889, %v4890
        %v4892 = vadd.f32 %v4787, %v4789
        %v4893 = vrot.slane %v4892, 4
        %v4894 = vadd.f32 %v4892, %v4893
        %v4895 = vrot.slane %v4894, 2
        %v4896 = vadd.f32 %v4894, %v4895
        %v4897 = vrot.slane %v4896, 1
        %v4898 = vadd.f32 %v4896, %v4897
        %v4899 = vadd.f32 %v4791, %v4793
        %v4900 = vrot.slane %v4899, 4
        %v4901 = vadd.f32 %v4899, %v4900
        %v4902 = vrot.slane %v4901, 2
        %v4903 = vadd.f32 %v4901, %v4902
        %v4904 = vrot.slane %v4903, 1
        %v4905 = vadd.f32 %v4903, %v4904
        %v4906 = vrcp.pop %v4800
        %v4907 = vmul.f32 %v4731, %v4906
        %v4908 = vmul.f32 %v4733, %v4906
        %v4909 = vrcp.pop %v4807
        %v4910 = vmul.f32 %v4735, %v4909
        %v4911 = vmul.f32 %v4737, %v4909
        %v4912 = vrcp.pop %v4814
        %v4913 = vmul.f32 %v4739, %v4912
        %v4914 = vmul.f32 %v4741, %v4912
        %v4915 = vrcp.pop %v4821
        %v4916 = vmul.f32 %v4743, %v4915
        %v4917 = vmul.f32 %v4745, %v4915
        %v4918 = vrcp.pop %v4828
        %v4919 = vmul.f32 %v4747, %v4918
        %v4920 = vmul.f32 %v4749, %v4918
        %v4921 = vrcp.pop %v4835
        %v4922 = vmul.f32 %v4751, %v4921
        %v4923 = vmul.f32 %v4753, %v4921
        %v4924 = vrcp.pop %v4842
        %v4925 = vmul.f32 %v4755, %v4924
        %v4926 = vmul.f32 %v4757, %v4924
        %v4927 = vrcp.pop %v4849
        %v4928 = vmul.f32 %v4759, %v4927
        %v4929 = vmul.f32 %v4761, %v4927
        %v4930 = vrcp.pop %v4856
        %v4931 = vmul.f32 %v4763, %v4930
        %v4932 = vmul.f32 %v4765, %v4930
        %v4933 = vrcp.pop %v4863
        %v4934 = vmul.f32 %v4767, %v4933
        %v4935 = vmul.f32 %v4769, %v4933
        %v4936 = vrcp.pop %v4870
        %v4937 = vmul.f32 %v4771, %v4936
        %v4938 = vmul.f32 %v4773, %v4936
        %v4939 = vrcp.pop %v4877
        %v4940 = vmul.f32 %v4775, %v4939
        %v4941 = vmul.f32 %v4777, %v4939
        %v4942 = vrcp.pop %v4884
        %v4943 = vmul.f32 %v4779, %v4942
        %v4944 = vmul.f32 %v4781, %v4942
        %v4945 = vrcp.pop %v4891
        %v4946 = vmul.f32 %v4783, %v4945
        %v4947 = vmul.f32 %v4785, %v4945
        %v4948 = vrcp.pop %v4898
        %v4949 = vmul.f32 %v4787, %v4948
        %v4950 = vmul.f32 %v4789, %v4948
        %v4951 = vrcp.pop %v4905
        %v4952 = vmul.f32 %v4791, %v4951
        %v4953 = vmul.f32 %v4793, %v4951
        %v4954 = vunpack.c.l.bf16 %v389
        %v4955 = vunpack.c.l.bf16 %v390
        %v4956 = vunpack.c.l.bf16 %v391
        %v4957 = vunpack.c.l.bf16 %v392
        %v4958 = vunpack.c.l.bf16 %v393
        %v4959 = vunpack.c.l.bf16 %v394
        %v4960 = vunpack.c.l.bf16 %v395
        %v4961 = vunpack.c.l.bf16 %v396
        %v4962 = vunpack.c.l.bf16 %v397
        %v4963 = vunpack.c.l.bf16 %v398
        %v4964 = vunpack.c.l.bf16 %v399
        %v4965 = vunpack.c.l.bf16 %v400
        %v4966 = vunpack.c.l.bf16 %v401
        %v4967 = vunpack.c.l.bf16 %v402
        %v4968 = vunpack.c.l.bf16 %v403
        %v4969 = vunpack.c.l.bf16 %v404
        %v4970 = vmul.f32 %v4555, %v4954
        %v4971 = vmul.f32 %v4557, %v4955
        %v4972 = vmul.f32 %v4559, %v4956
        %v4973 = vmul.f32 %v4561, %v4957
        %v4974 = vmul.f32 %v4563, %v4958
        %v4975 = vmul.f32 %v4565, %v4959
        %v4976 = vmul.f32 %v4567, %v4960
        %v4977 = vmul.f32 %v4569, %v4961
        %v4978 = vmul.f32 %v4571, %v4962
        %v4979 = vmul.f32 %v4573, %v4963
        %v4980 = vmul.f32 %v4575, %v4964
        %v4981 = vmul.f32 %v4577, %v4965
        %v4982 = vmul.f32 %v4579, %v4966
        %v4983 = vmul.f32 %v4581, %v4967
        %v4984 = vmul.f32 %v4583, %v4968
        %v4985 = vmul.f32 %v4585, %v4969
        %v4986 = vrot.slane %v4970, 4
        %v4987 = vadd.f32 %v4970, %v4986
        %v4988 = vrot.slane %v4987, 2
        %v4989 = vadd.f32 %v4987, %v4988
        %v4990 = vrot.slane %v4989, 1
        %v4991 = vadd.f32 %v4989, %v4990
        %v4992 = vrot.slane %v4971, 4
        %v4993 = vadd.f32 %v4971, %v4992
        %v4994 = vrot.slane %v4993, 2
        %v4995 = vadd.f32 %v4993, %v4994
        %v4996 = vrot.slane %v4995, 1
        %v4997 = vadd.f32 %v4995, %v4996
        %v4998 = vrot.slane %v4972, 4
        %v4999 = vadd.f32 %v4972, %v4998
        %v5000 = vrot.slane %v4999, 2
        %v5001 = vadd.f32 %v4999, %v5000
        %v5002 = vrot.slane %v5001, 1
        %v5003 = vadd.f32 %v5001, %v5002
        %v5004 = vrot.slane %v4973, 4
        %v5005 = vadd.f32 %v4973, %v5004
        %v5006 = vrot.slane %v5005, 2
        %v5007 = vadd.f32 %v5005, %v5006
        %v5008 = vrot.slane %v5007, 1
        %v5009 = vadd.f32 %v5007, %v5008
        %v5010 = vrot.slane %v4974, 4
        %v5011 = vadd.f32 %v4974, %v5010
        %v5012 = vrot.slane %v5011, 2
        %v5013 = vadd.f32 %v5011, %v5012
        %v5014 = vrot.slane %v5013, 1
        %v5015 = vadd.f32 %v5013, %v5014
        %v5016 = vrot.slane %v4975, 4
        %v5017 = vadd.f32 %v4975, %v5016
        %v5018 = vrot.slane %v5017, 2
        %v5019 = vadd.f32 %v5017, %v5018
        %v5020 = vrot.slane %v5019, 1
        %v5021 = vadd.f32 %v5019, %v5020
        %v5022 = vrot.slane %v4976, 4
        %v5023 = vadd.f32 %v4976, %v5022
        %v5024 = vrot.slane %v5023, 2
        %v5025 = vadd.f32 %v5023, %v5024
        %v5026 = vrot.slane %v5025, 1
        %v5027 = vadd.f32 %v5025, %v5026
        %v5028 = vrot.slane %v4977, 4
        %v5029 = vadd.f32 %v4977, %v5028
        %v5030 = vrot.slane %v5029, 2
        %v5031 = vadd.f32 %v5029, %v5030
        %v5032 = vrot.slane %v5031, 1
        %v5033 = vadd.f32 %v5031, %v5032
        %v5034 = vrot.slane %v4978, 4
        %v5035 = vadd.f32 %v4978, %v5034
        %v5036 = vrot.slane %v5035, 2
        %v5037 = vadd.f32 %v5035, %v5036
        %v5038 = vrot.slane %v5037, 1
        %v5039 = vadd.f32 %v5037, %v5038
        %v5040 = vrot.slane %v4979, 4
        %v5041 = vadd.f32 %v4979, %v5040
        %v5042 = vrot.slane %v5041, 2
        %v5043 = vadd.f32 %v5041, %v5042
        %v5044 = vrot.slane %v5043, 1
        %v5045 = vadd.f32 %v5043, %v5044
        %v5046 = vrot.slane %v4980, 4
        %v5047 = vadd.f32 %v4980, %v5046
        %v5048 = vrot.slane %v5047, 2
        %v5049 = vadd.f32 %v5047, %v5048
        %v5050 = vrot.slane %v5049, 1
        %v5051 = vadd.f32 %v5049, %v5050
        %v5052 = vrot.slane %v4981, 4
        %v5053 = vadd.f32 %v4981, %v5052
        %v5054 = vrot.slane %v5053, 2
        %v5055 = vadd.f32 %v5053, %v5054
        %v5056 = vrot.slane %v5055, 1
        %v5057 = vadd.f32 %v5055, %v5056
        %v5058 = vrot.slane %v4982, 4
        %v5059 = vadd.f32 %v4982, %v5058
        %v5060 = vrot.slane %v5059, 2
        %v5061 = vadd.f32 %v5059, %v5060
        %v5062 = vrot.slane %v5061, 1
        %v5063 = vadd.f32 %v5061, %v5062
        %v5064 = vrot.slane %v4983, 4
        %v5065 = vadd.f32 %v4983, %v5064
        %v5066 = vrot.slane %v5065, 2
        %v5067 = vadd.f32 %v5065, %v5066
        %v5068 = vrot.slane %v5067, 1
        %v5069 = vadd.f32 %v5067, %v5068
        %v5070 = vrot.slane %v4984, 4
        %v5071 = vadd.f32 %v4984, %v5070
        %v5072 = vrot.slane %v5071, 2
        %v5073 = vadd.f32 %v5071, %v5072
        %v5074 = vrot.slane %v5073, 1
        %v5075 = vadd.f32 %v5073, %v5074
        %v5076 = vrot.slane %v4985, 4
        %v5077 = vadd.f32 %v4985, %v5076
        %v5078 = vrot.slane %v5077, 2
        %v5079 = vadd.f32 %v5077, %v5078
        %v5080 = vrot.slane %v5079, 1
        %v5081 = vadd.f32 %v5079, %v5080
        %v5082 = vunpack.c.l.bf16 %v405
        %v5083 = vunpack.c.l.bf16 %v406
        %v5084 = vunpack.c.l.bf16 %v407
        %v5085 = vunpack.c.l.bf16 %v408
        %v5086 = vunpack.c.l.bf16 %v409
        %v5087 = vunpack.c.l.bf16 %v410
        %v5088 = vunpack.c.l.bf16 %v411
        %v5089 = vunpack.c.l.bf16 %v412
        %v5090 = vunpack.c.l.bf16 %v413
        %v5091 = vunpack.c.l.bf16 %v414
        %v5092 = vunpack.c.l.bf16 %v415
        %v5093 = vunpack.c.l.bf16 %v416
        %v5094 = vunpack.c.l.bf16 %v417
        %v5095 = vunpack.c.l.bf16 %v418
        %v5096 = vunpack.c.l.bf16 %v419
        %v5097 = vunpack.c.l.bf16 %v420
        %v5098 = vunpack.c.l.bf16 %v421
        %v5099 = vunpack.c.l.bf16 %v422
        %v5100 = vunpack.c.l.bf16 %v423
        %v5101 = vunpack.c.l.bf16 %v424
        %v5102 = vunpack.c.l.bf16 %v425
        %v5103 = vunpack.c.l.bf16 %v426
        %v5104 = vunpack.c.l.bf16 %v427
        %v5105 = vunpack.c.l.bf16 %v428
        %v5106 = vunpack.c.l.bf16 %v429
        %v5107 = vunpack.c.l.bf16 %v430
        %v5108 = vunpack.c.l.bf16 %v431
        %v5109 = vunpack.c.l.bf16 %v432
        %v5110 = vunpack.c.l.bf16 %v433
        %v5111 = vunpack.c.l.bf16 %v434
        %v5112 = vunpack.c.l.bf16 %v435
        %v5113 = vunpack.c.l.bf16 %v436
        %v5114 = vmul.f32 %v4907, %v5082
        %v5115 = vmul.f32 %v4908, %v5083
        %v5116 = vmul.f32 %v4910, %v5084
        %v5117 = vmul.f32 %v4911, %v5085
        %v5118 = vmul.f32 %v4913, %v5086
        %v5119 = vmul.f32 %v4914, %v5087
        %v5120 = vmul.f32 %v4916, %v5088
        %v5121 = vmul.f32 %v4917, %v5089
        %v5122 = vmul.f32 %v4919, %v5090
        %v5123 = vmul.f32 %v4920, %v5091
        %v5124 = vmul.f32 %v4922, %v5092
        %v5125 = vmul.f32 %v4923, %v5093
        %v5126 = vmul.f32 %v4925, %v5094
        %v5127 = vmul.f32 %v4926, %v5095
        %v5128 = vmul.f32 %v4928, %v5096
        %v5129 = vmul.f32 %v4929, %v5097
        %v5130 = vmul.f32 %v4931, %v5098
        %v5131 = vmul.f32 %v4932, %v5099
        %v5132 = vmul.f32 %v4934, %v5100
        %v5133 = vmul.f32 %v4935, %v5101
        %v5134 = vmul.f32 %v4937, %v5102
        %v5135 = vmul.f32 %v4938, %v5103
        %v5136 = vmul.f32 %v4940, %v5104
        %v5137 = vmul.f32 %v4941, %v5105
        %v5138 = vmul.f32 %v4943, %v5106
        %v5139 = vmul.f32 %v4944, %v5107
        %v5140 = vmul.f32 %v4946, %v5108
        %v5141 = vmul.f32 %v4947, %v5109
        %v5142 = vmul.f32 %v4949, %v5110
        %v5143 = vmul.f32 %v4950, %v5111
        %v5144 = vmul.f32 %v4952, %v5112
        %v5145 = vmul.f32 %v4953, %v5113
        %v5146 = vadd.f32 %v5114, %v5115
        %v5147 = vrot.slane %v5146, 4
        %v5148 = vadd.f32 %v5146, %v5147
        %v5149 = vrot.slane %v5148, 2
        %v5150 = vadd.f32 %v5148, %v5149
        %v5151 = vrot.slane %v5150, 1
        %v5152 = vadd.f32 %v5150, %v5151
        %v5153 = vadd.f32 %v5116, %v5117
        %v5154 = vrot.slane %v5153, 4
        %v5155 = vadd.f32 %v5153, %v5154
        %v5156 = vrot.slane %v5155, 2
        %v5157 = vadd.f32 %v5155, %v5156
        %v5158 = vrot.slane %v5157, 1
        %v5159 = vadd.f32 %v5157, %v5158
        %v5160 = vadd.f32 %v5118, %v5119
        %v5161 = vrot.slane %v5160, 4
        %v5162 = vadd.f32 %v5160, %v5161
        %v5163 = vrot.slane %v5162, 2
        %v5164 = vadd.f32 %v5162, %v5163
        %v5165 = vrot.slane %v5164, 1
        %v5166 = vadd.f32 %v5164, %v5165
        %v5167 = vadd.f32 %v5120, %v5121
        %v5168 = vrot.slane %v5167, 4
        %v5169 = vadd.f32 %v5167, %v5168
        %v5170 = vrot.slane %v5169, 2
        %v5171 = vadd.f32 %v5169, %v5170
        %v5172 = vrot.slane %v5171, 1
        %v5173 = vadd.f32 %v5171, %v5172
        %v5174 = vadd.f32 %v5122, %v5123
        %v5175 = vrot.slane %v5174, 4
        %v5176 = vadd.f32 %v5174, %v5175
        %v5177 = vrot.slane %v5176, 2
        %v5178 = vadd.f32 %v5176, %v5177
        %v5179 = vrot.slane %v5178, 1
        %v5180 = vadd.f32 %v5178, %v5179
        %v5181 = vadd.f32 %v5124, %v5125
        %v5182 = vrot.slane %v5181, 4
        %v5183 = vadd.f32 %v5181, %v5182
        %v5184 = vrot.slane %v5183, 2
        %v5185 = vadd.f32 %v5183, %v5184
        %v5186 = vrot.slane %v5185, 1
        %v5187 = vadd.f32 %v5185, %v5186
        %v5188 = vadd.f32 %v5126, %v5127
        %v5189 = vrot.slane %v5188, 4
        %v5190 = vadd.f32 %v5188, %v5189
        %v5191 = vrot.slane %v5190, 2
        %v5192 = vadd.f32 %v5190, %v5191
        %v5193 = vrot.slane %v5192, 1
        %v5194 = vadd.f32 %v5192, %v5193
        %v5195 = vadd.f32 %v5128, %v5129
        %v5196 = vrot.slane %v5195, 4
        %v5197 = vadd.f32 %v5195, %v5196
        %v5198 = vrot.slane %v5197, 2
        %v5199 = vadd.f32 %v5197, %v5198
        %v5200 = vrot.slane %v5199, 1
        %v5201 = vadd.f32 %v5199, %v5200
        %v5202 = vadd.f32 %v5130, %v5131
        %v5203 = vrot.slane %v5202, 4
        %v5204 = vadd.f32 %v5202, %v5203
        %v5205 = vrot.slane %v5204, 2
        %v5206 = vadd.f32 %v5204, %v5205
        %v5207 = vrot.slane %v5206, 1
        %v5208 = vadd.f32 %v5206, %v5207
        %v5209 = vadd.f32 %v5132, %v5133
        %v5210 = vrot.slane %v5209, 4
        %v5211 = vadd.f32 %v5209, %v5210
        %v5212 = vrot.slane %v5211, 2
        %v5213 = vadd.f32 %v5211, %v5212
        %v5214 = vrot.slane %v5213, 1
        %v5215 = vadd.f32 %v5213, %v5214
        %v5216 = vadd.f32 %v5134, %v5135
        %v5217 = vrot.slane %v5216, 4
        %v5218 = vadd.f32 %v5216, %v5217
        %v5219 = vrot.slane %v5218, 2
        %v5220 = vadd.f32 %v5218, %v5219
        %v5221 = vrot.slane %v5220, 1
        %v5222 = vadd.f32 %v5220, %v5221
        %v5223 = vadd.f32 %v5136, %v5137
        %v5224 = vrot.slane %v5223, 4
        %v5225 = vadd.f32 %v5223, %v5224
        %v5226 = vrot.slane %v5225, 2
        %v5227 = vadd.f32 %v5225, %v5226
        %v5228 = vrot.slane %v5227, 1
        %v5229 = vadd.f32 %v5227, %v5228
        %v5230 = vadd.f32 %v5138, %v5139
        %v5231 = vrot.slane %v5230, 4
        %v5232 = vadd.f32 %v5230, %v5231
        %v5233 = vrot.slane %v5232, 2
        %v5234 = vadd.f32 %v5232, %v5233
        %v5235 = vrot.slane %v5234, 1
        %v5236 = vadd.f32 %v5234, %v5235
        %v5237 = vadd.f32 %v5140, %v5141
        %v5238 = vrot.slane %v5237, 4
        %v5239 = vadd.f32 %v5237, %v5238
        %v5240 = vrot.slane %v5239, 2
        %v5241 = vadd.f32 %v5239, %v5240
        %v5242 = vrot.slane %v5241, 1
        %v5243 = vadd.f32 %v5241, %v5242
        %v5244 = vadd.f32 %v5142, %v5143
        %v5245 = vrot.slane %v5244, 4
        %v5246 = vadd.f32 %v5244, %v5245
        %v5247 = vrot.slane %v5246, 2
        %v5248 = vadd.f32 %v5246, %v5247
        %v5249 = vrot.slane %v5248, 1
        %v5250 = vadd.f32 %v5248, %v5249
        %v5251 = vadd.f32 %v5144, %v5145
        %v5252 = vrot.slane %v5251, 4
        %v5253 = vadd.f32 %v5251, %v5252
        %v5254 = vrot.slane %v5253, 2
        %v5255 = vadd.f32 %v5253, %v5254
        %v5256 = vrot.slane %v5255, 1
        %v5257 = vadd.f32 %v5255, %v5256
        %vm5274 = vcmask 1041409
        %v5275 = vsel %vm5274, %v4997, %v4991
        %vm5276 = vcmask 1042434
        %v5277 = vsel %vm5276, %v5003, %v5275
        %vm5278 = vcmask 1043459
        %v5279 = vsel %vm5278, %v5009, %v5277
        %vm5280 = vcmask 1044484
        %v5281 = vsel %vm5280, %v5015, %v5279
        %vm5282 = vcmask 1045509
        %v5283 = vsel %vm5282, %v5021, %v5281
        %vm5284 = vcmask 1046534
        %v5285 = vsel %vm5284, %v5027, %v5283
        %vm5286 = vcmask 1047559
        %v5287 = vsel %vm5286, %v5033, %v5285
        %v5288 = vsel %vm5274, %v5045, %v5039
        %v5289 = vsel %vm5276, %v5051, %v5288
        %v5290 = vsel %vm5278, %v5057, %v5289
        %v5291 = vsel %vm5280, %v5063, %v5290
        %v5292 = vsel %vm5282, %v5069, %v5291
        %v5293 = vsel %vm5284, %v5075, %v5292
        %v5294 = vsel %vm5286, %v5081, %v5293
        %5297 = vst [vmem:[%s345] sm:$0xff] %v5287
        %5298 = vst [vmem:[%s345 + $0x10] sm:$0xff] %v5294
        %v5315 = vsel %vm5274, %v5159, %v5152
        %v5316 = vsel %vm5276, %v5166, %v5315
        %v5317 = vsel %vm5278, %v5173, %v5316
        %v5318 = vsel %vm5280, %v5180, %v5317
        %v5319 = vsel %vm5282, %v5187, %v5318
        %v5320 = vsel %vm5284, %v5194, %v5319
        %v5321 = vsel %vm5286, %v5201, %v5320
        %v5322 = vsel %vm5274, %v5215, %v5208
        %v5323 = vsel %vm5276, %v5222, %v5322
        %v5324 = vsel %vm5278, %v5229, %v5323
        %v5325 = vsel %vm5280, %v5236, %v5324
        %v5326 = vsel %vm5282, %v5243, %v5325
        %v5327 = vsel %vm5284, %v5250, %v5326
        %v5328 = vsel %vm5286, %v5257, %v5327
        %5331 = vst [vmem:[%s345 + $0x8] sm:$0xff] %v5321
        %5332 = vst [vmem:[%s345 + $0x18] sm:$0xff] %v5328
        %vm5333 = vcmask 7168
        %5334 = vst.msk [vmem:[%s379] sm:$0xff] %vm5333, %v4555
        %5335 = vst.msk [vmem:[%s379 + $0x8] sm:$0xff] %vm5333, %v4557
        %5336 = vst.msk [vmem:[%s379 + $0x10] sm:$0xff] %vm5333, %v4559
        %5337 = vst.msk [vmem:[%s379 + $0x18] sm:$0xff] %vm5333, %v4561
        %5338 = vst.msk [vmem:[%s379 + $0x20] sm:$0xff] %vm5333, %v4563
        %5339 = vst.msk [vmem:[%s379 + $0x28] sm:$0xff] %vm5333, %v4565
        %5340 = vst.msk [vmem:[%s379 + $0x30] sm:$0xff] %vm5333, %v4567
        %5341 = vst.msk [vmem:[%s379 + $0x38] sm:$0xff] %vm5333, %v4569
        %5342 = vst.msk [vmem:[%s379 + $0x40] sm:$0xff] %vm5333, %v4571
        %5343 = vst.msk [vmem:[%s379 + $0x48] sm:$0xff] %vm5333, %v4573
        %5344 = vst.msk [vmem:[%s379 + $0x50] sm:$0xff] %vm5333, %v4575
        %5345 = vst.msk [vmem:[%s379 + $0x58] sm:$0xff] %vm5333, %v4577
        %5346 = vst.msk [vmem:[%s379 + $0x60] sm:$0xff] %vm5333, %v4579
        %5347 = vst.msk [vmem:[%s379 + $0x68] sm:$0xff] %vm5333, %v4581
        %5348 = vst.msk [vmem:[%s379 + $0x70] sm:$0xff] %vm5333, %v4583
        %5349 = vst.msk [vmem:[%s379 + $0x78] sm:$0xff] %vm5333, %v4585
        %5350 = vst.msk [vmem:[%s386] sm:$0xff] %vm5333, %v4907
        %5351 = vst.msk [vmem:[%s386 + $0x8] sm:$0xff] %vm5333, %v4908
        %5352 = vst.msk [vmem:[%s386 + $0x10] sm:$0xff] %vm5333, %v4910
        %5353 = vst.msk [vmem:[%s386 + $0x18] sm:$0xff] %vm5333, %v4911
        %5354 = vst.msk [vmem:[%s386 + $0x20] sm:$0xff] %vm5333, %v4913
        %5355 = vst.msk [vmem:[%s386 + $0x28] sm:$0xff] %vm5333, %v4914
        %5356 = vst.msk [vmem:[%s386 + $0x30] sm:$0xff] %vm5333, %v4916
        %5357 = vst.msk [vmem:[%s386 + $0x38] sm:$0xff] %vm5333, %v4917
        %5358 = vst.msk [vmem:[%s386 + $0x40] sm:$0xff] %vm5333, %v4919
        %5359 = vst.msk [vmem:[%s386 + $0x48] sm:$0xff] %vm5333, %v4920
        %5360 = vst.msk [vmem:[%s386 + $0x50] sm:$0xff] %vm5333, %v4922
        %5361 = vst.msk [vmem:[%s386 + $0x58] sm:$0xff] %vm5333, %v4923
        %5362 = vst.msk [vmem:[%s386 + $0x60] sm:$0xff] %vm5333, %v4925
        %5363 = vst.msk [vmem:[%s386 + $0x68] sm:$0xff] %vm5333, %v4926
        %5364 = vst.msk [vmem:[%s386 + $0x70] sm:$0xff] %vm5333, %v4928
        %5365 = vst.msk [vmem:[%s386 + $0x78] sm:$0xff] %vm5333, %v4929
        %5366 = vst.msk [vmem:[%s386 + $0x80] sm:$0xff] %vm5333, %v4931
        %5367 = vst.msk [vmem:[%s386 + $0x88] sm:$0xff] %vm5333, %v4932
        %5368 = vst.msk [vmem:[%s386 + $0x90] sm:$0xff] %vm5333, %v4934
        %5369 = vst.msk [vmem:[%s386 + $0x98] sm:$0xff] %vm5333, %v4935
        %5370 = vst.msk [vmem:[%s386 + $0xa0] sm:$0xff] %vm5333, %v4937
        %5371 = vst.msk [vmem:[%s386 + $0xa8] sm:$0xff] %vm5333, %v4938
        %5372 = vst.msk [vmem:[%s386 + $0xb0] sm:$0xff] %vm5333, %v4940
        %5373 = vst.msk [vmem:[%s386 + $0xb8] sm:$0xff] %vm5333, %v4941
        %5374 = vst.msk [vmem:[%s386 + $0xc0] sm:$0xff] %vm5333, %v4943
        %5375 = vst.msk [vmem:[%s386 + $0xc8] sm:$0xff] %vm5333, %v4944
        %5376 = vst.msk [vmem:[%s386 + $0xd0] sm:$0xff] %vm5333, %v4946
        %5377 = vst.msk [vmem:[%s386 + $0xd8] sm:$0xff] %vm5333, %v4947
        %5378 = vst.msk [vmem:[%s386 + $0xe0] sm:$0xff] %vm5333, %v4949
        %5379 = vst.msk [vmem:[%s386 + $0xe8] sm:$0xff] %vm5333, %v4950
        %5380 = vst.msk [vmem:[%s386 + $0xf0] sm:$0xff] %vm5333, %v4952
        %5381 = vst.msk [vmem:[%s386 + $0xf8] sm:$0xff] %vm5333, %v4953
        %s5382 = sand.u32 %s189, 1
        %s5383 = scalar_lea.sflag [#allocation3], %s5382
        %s5384 = sand.u32 %s189, 1
        %s5385 = smul.addr %s5384, 32
        %s5386 = scalar_lea.vmem [#allocation2], %s5385
        %s5387 = smul.u32 16, %s24
        %p5388 = scmp.lt.s32.totalorder %s5387, 31
        %s5389 = scalar_select %p5388, %s5387, 31
        %s5390 = smul.addr %s5389, 8
        %s5391 = scalar_lea.vmem %s8, %s5390
        %s5392 = smul.u32 16, %s24
        %p5393 = scmp.lt.s32.totalorder %s5392, 31
        %s5394 = scalar_select %p5393, %s5392, 31
        %s5395 = smul.addr %s5394, 2
        %s5396 = smul.addr %s5395, 8
        %s5397 = scalar_lea.vmem %s9, %s5396
        // Predicated region
        $region49: #{coattention_forward.1} parent=47 // pred_check
          %p5398 = pneg %p199
        $region50: #{coattention_forward.1} parent=47 // pred_check_branch
          %5400 = sbr.rel (%p5398) target = $region52
        $region51: #{coattention_forward.1} parent=47 // pred_region
          %s5401 = smul.u32 2, %s24
          %s5403 = ssub.s32 512, 512
          %5404 = vsyncadd %s5383, %s5403
          %s5405 = smul.addr %s5401, 2
          %s5406 = smul.addr %s5405, 128
          %s5407 = scalar_lea.hbm %s7, %s5406
          %s5408 = sshll.u32 %s5386, 4
          %s5409 = int_to_ptr.vmem [resolvable:$true] %s5408
          %5414 = dma.vmem_to_hbm [thread:$0]  %s5409, 512, %s5407, %s5383, 256, 256, 16
        $region52: #{coattention_forward.1} parent=47 // pred_fallthru
          _
        // Predicated region
        $region53: #{coattention_forward.1} parent=47 // pred_check
          %p5415 = pneg %p225
        $region54: #{coattention_forward.1} parent=47 // pred_check_branch
          %5417 = sbr.rel (%p5415) target = $region56
        $region55: #{coattention_forward.1} parent=47 // pred_region
          %s5418 = smul.u32 16, %s24
        $region56: #{coattention_forward.1} parent=47 // pred_fallthru
          _
        // Predicated region
        $region57: #{coattention_forward.1} parent=47 // pred_check
          %p5419 = pneg %p251
        $region58: #{coattention_forward.1} parent=47 // pred_check_branch
          %5421 = sbr.rel (%p5419) target = $region60
        $region59: #{coattention_forward.1} parent=47 // pred_region
          %s5422 = smul.u32 16, %s24
        $region60: #{coattention_forward.1} parent=47 // pred_fallthru
          _
      $region48: #{coattention_forward.1} parent=5 // pred_fallthru
        _
      %p5423 = scmp.le.s32.totalorder 2, %s19
      // Predicated region
      $region61: #{coattention_forward.1} parent=5 // pred_check
        %p5424 = pneg %p5423
      $region62: #{coattention_forward.1} parent=5 // pred_check_branch
        %5426 = sbr.rel (%p5424) target = $region64
      $region63: #{coattention_forward.1} parent=5 // pred_region
        %s5427 = ssub.s32 %s19, 2
        // Predicated region
        $region65: #{coattention_forward.1} parent=63 // pred_check
          %p5428 = pneg %p205
        $region66: #{coattention_forward.1} parent=63 // pred_check_branch
          %5430 = sbr.rel (%p5428) target = $region68
        $region67: #{coattention_forward.1} parent=63 // pred_region
          %s5431 = sand.u32 %s190, 1
          %s5432 = scalar_lea.sflag [#allocation3], %s5431
          %s5433 = sand.u32 %s190, 1
          %s5434 = smul.addr %s5433, 32
          %s5435 = scalar_lea.vmem [#allocation2], %s5434
          %5436 = dma.done %s5432, 512
        $region68: #{coattention_forward.1} parent=63 // pred_fallthru
          _
        // Predicated region
        $region69: #{coattention_forward.1} parent=63 // pred_check
          %p5437 = pneg %p231
        $region70: #{coattention_forward.1} parent=63 // pred_check_branch
          %5439 = sbr.rel (%p5437) target = $region72
        $region71: #{coattention_forward.1} parent=63 // pred_region
          %s5440 = smul.u32 16, %s25
          %p5441 = scmp.lt.s32.totalorder %s5440, 31
          %s5442 = scalar_select %p5441, %s5440, 31
          %s5443 = smul.addr %s5442, 8
          %s5444 = scalar_lea.vmem %s8, %s5443
        $region72: #{coattention_forward.1} parent=63 // pred_fallthru
          _
        // Predicated region
        $region73: #{coattention_forward.1} parent=63 // pred_check
          %p5445 = pneg %p257
        $region74: #{coattention_forward.1} parent=63 // pred_check_branch
          %5447 = sbr.rel (%p5445) target = $region76
        $region75: #{coattention_forward.1} parent=63 // pred_region
          %s5448 = smul.u32 16, %s25
          %p5449 = scmp.lt.s32.totalorder %s5448, 31
          %s5450 = scalar_select %p5449, %s5448, 31
          %s5451 = smul.addr %s5450, 2
          %s5452 = smul.addr %s5451, 8
          %s5453 = scalar_lea.vmem %s9, %s5452
        $region76: #{coattention_forward.1} parent=63 // pred_fallthru
          _
      $region64: #{coattention_forward.1} parent=5 // pred_fallthru
        _
    $region6: #{coattention_forward.1} parent=1 // loop_footer
      %s23 = sadd.s32 1, %s19
    $region7: #{coattention_forward.1} parent=1 // loop_footer_branch
      %18 = sbr.rel target = $region3
    $region8: #{coattention_forward.1} parent=1 // loop_exit
      _
    %5454 = vsyncpa [#allocation3], 1
    %s5455 = scalar_lea.sflag [#allocation3], 1
    %5456 = vsyncpa %s5455, 1

</llo_original>
